<compile_context>
chip_gen: v7x
topology: tpu7x:2x2x1
jax: 0.10.0
libtpu: 0.0.40
codegen_flags: <defaults>
</compile_context>

<pallas_src>
import functools

import jax
import jax.numpy as jnp
from jax.experimental import pallas as pl
from jax.experimental.pallas import tpu as pltpu


def _bottleneck_kernel(x_ref, w1_ref, b1_ref, w2_ref, b2_ref, w3_ref, b3_ref,
                       out_ref, *, H, W):
    """Rows = block_batch whole images, flattened: conv1x1->bn1->relu->
    conv3x3->bn2->relu->conv1x1->bn3->+x->relu."""
    HW = H * W
    M = x_ref.shape[0]            # block_batch * HW rows (whole images only)
    width = w1_ref.shape[1]

    # ---- conv1x1 (bn1 scale folded into w1) + shift + relu ------------------
    o1 = jnp.dot(x_ref[...], w1_ref[...], preferred_element_type=jnp.float32)
    o1 = jnp.maximum(o1 + b1_ref[...], 0.0)                 # (M, width) f32

    # ---- conv3x3 (stride 1, pad 1) as a single im2col matmul ----------------
    # Tap (ky,kx) of the 3x3 window for flat row r reads row r + d with
    # d = (ky-1)*W + (kx-1).  Build the (M, 9*width) im2col slab from sublane
    # rolls (XLU) + per-image boundary masks (VPU); each tap is cast to bf16
    # immediately so the 9-way concat, the VMEM slab and the matmul feed are
    # all bf16 (halved relayout / footprint vs an f32 slab).
    r = jax.lax.broadcasted_iota(jnp.int32, (M, width), 0)
    rp = r % HW                   # row within its own image
    xcol = r % W                  # pixel column
    blocks = []
    for ky in range(3):
        for kx in range(3):
            dy, dx = ky - 1, kx - 1
            d = dy * W + dx
            if d == 0:
                blocks.append(o1.astype(jnp.bfloat16))
                continue
            # shifted[r] = o1[(r + d) % M]; cross-image leakage is masked off.
            shifted = pltpu.roll(o1, shift=(-d) % M, axis=0)
            valid = ((rp + d >= 0) & (rp + d < HW)
                     & (xcol + dx >= 0) & (xcol + dx < W))
            blocks.append(jnp.where(valid, shifted.astype(jnp.bfloat16), 0))
    im2col = jnp.concatenate(blocks, axis=1)                 # (M, 9*width) bf16
    o2 = jnp.dot(im2col, w2_ref[...], preferred_element_type=jnp.float32)
    o2 = jnp.maximum(o2 + b2_ref[...], 0.0)                  # (M, width) f32

    # ---- conv1x1 (bn3 folded) + residual add + relu -------------------------
    o3 = jnp.dot(o2.astype(jnp.bfloat16), w3_ref[...],
                 preferred_element_type=jnp.float32)
    # Re-read x (bf16) only now and upcast for an f32 residual add: keeps the
    # identity path out of the live set during the three matmuls.
    identity = x_ref[...].astype(jnp.float32)
    out_ref[...] = jnp.maximum(o3 + b3_ref[...] + identity, 0.0)


def _pick_batch_block(n, hw, target_rows=256):
    """Largest divisor of n with block rows <= max(target_rows, hw), while
    keeping >= 2 grid steps (so both v7x TensorCores stay busy)."""
    best = 1
    for b in range(1, n + 1):
        if n % b:
            continue
        if n >= 2 and n // b < 2:
            continue
        if b * hw <= max(target_rows, hw):
            best = b
    return best


def bottleneck_forward(x_nhwc, w1, s1, b1, w2, s2, b2, w3, s3, b3,
                       *, block_batch=None):
    """x_nhwc: (N,H,W,Cin) f32.  w1:(Cin,width), w2:(3,3,width,width) HWIO,
    w3:(width,Cout).  s*/b* are folded-BN (inference) scale/shift, shape (1,C)."""
    N, H, W, Cin = x_nhwc.shape
    width = w1.shape[1]
    Cout = w3.shape[1]
    HW = H * W
    assert Cin == Cout, "downsample=None requires inplanes == planes*expansion"

    if block_batch is None:
        block_batch = _pick_batch_block(N, HW)
    assert N % block_batch == 0
    M = block_batch * HW
    # Row blocks must be sublane aligned unless they span the whole array.
    assert M % 8 == 0 or M == N * HW

    # Fold BN scales into the weight output-columns (constants w.r.t. the
    # input) and cast weights to bf16 for the MXU; shifts stay f32.
    w1b = (w1 * s1).astype(jnp.bfloat16)                             # (Cin, width)
    w2b = (w2 * s2).reshape(9 * width, width).astype(jnp.bfloat16)   # (9*width, width)
    w3b = (w3 * s3).astype(jnp.bfloat16)                             # (width, Cout)

    # Layout plumbing wrapper-side: flat (rows, channels) slabs, bf16 input DMA.
    xf = x_nhwc.reshape(N * HW, Cin).astype(jnp.bfloat16)

    kernel = functools.partial(_bottleneck_kernel, H=H, W=W)
    out = pl.pallas_call(
        kernel,
        out_shape=jax.ShapeDtypeStruct((N * HW, Cout), jnp.float32),
        grid=(N // block_batch,),
        in_specs=[
            pl.BlockSpec((M, Cin), lambda i: (i, 0)),
            pl.BlockSpec((Cin, width), lambda i: (0, 0)),
            pl.BlockSpec((1, width), lambda i: (0, 0)),
            pl.BlockSpec((9 * width, width), lambda i: (0, 0)),
            pl.BlockSpec((1, width), lambda i: (0, 0)),
            pl.BlockSpec((width, Cout), lambda i: (0, 0)),
            pl.BlockSpec((1, Cout), lambda i: (0, 0)),
        ],
        out_specs=pl.BlockSpec((M, Cout), lambda i: (i, 0)),
        compiler_params=pltpu.CompilerParams(
            # Row blocks are independent: shard over v7x's two TensorCores
            # (neutral serial loop on v5e/v6e).
            dimension_semantics=("parallel",),
            # Explicit scoped-VMEM limit: above v5e's 16 MiB default, safely
            # below v7x's 64 MiB physical.
            vmem_limit_bytes=32 * 1024 * 1024),
    )(xf, w1b, b1, w2b, b2, w3b, b3)
    return out.reshape(N, H, W, Cout)


def reference(x_nhwc, w1, s1, b1, w2, s2, b2, w3, s3, b3):
    """Pure-JAX f32 reference for correctness checking."""
    o = jnp.einsum('nhwc,cd->nhwd', x_nhwc, w1)
    o = jnp.maximum(o * s1 + b1, 0.0)
    o = jax.lax.conv_general_dilated(
        o, w2, window_strides=(1, 1), padding=((1, 1), (1, 1)),
        dimension_numbers=('NHWC', 'HWIO', 'NHWC'))
    o = jnp.maximum(o * s2 + b2, 0.0)
    o = jnp.einsum('nhwc,cd->nhwd', o, w3)
    o = o * s3 + b3
    return jnp.maximum(o + x_nhwc, 0.0)


if __name__ == "__main__":
    # Bottleneck hyperparameters (stride=1, groups=1, base_width=64,
    # dilation=1, downsample=None => inplanes must equal planes * expansion).
    def run_case(key, N, H, W, planes=32, groups=1, base_width=64):
        width = int(planes * (base_width / 64.0)) * groups
        inplanes = planes * 4                        # identity path
        cout = planes * 4                            # lane-dense output
        keys = jax.random.split(key, 8)

        # Input in PyTorch NCHW convention.
        x_nchw = jax.random.normal(keys[0], (N, inplanes, H, W), jnp.float32)

        # PyTorch conv weights (Cout, Cin, kH, kW), rearranged for NHWC matmuls.
        w1_pt = 0.1 * jax.random.normal(keys[1], (width, inplanes, 1, 1), jnp.float32)
        w2_pt = 0.1 * jax.random.normal(keys[2], (width, width, 3, 3), jnp.float32)
        w3_pt = 0.1 * jax.random.normal(keys[3], (cout, width, 1, 1), jnp.float32)
        w1 = w1_pt[:, :, 0, 0].T                     # (Cin,  width)
        w2 = jnp.transpose(w2_pt, (2, 3, 1, 0))      # (3, 3, I, O) HWIO
        w3 = w3_pt[:, :, 0, 0].T                     # (width, Cout)

        # BatchNorm (inference) folded into per-channel scale/shift.
        def bn_fold(k, c):
            kg, kb, km, kv = jax.random.split(k, 4)
            gamma = 1.0 + 0.1 * jax.random.normal(kg, (c,), jnp.float32)
            beta = 0.1 * jax.random.normal(kb, (c,), jnp.float32)
            mean = 0.1 * jax.random.normal(km, (c,), jnp.float32)
            var = jnp.abs(jax.random.normal(kv, (c,), jnp.float32)) + 0.5
            scale = gamma / jnp.sqrt(var + 1e-5)
            shift = beta - mean * scale
            return scale.reshape(1, c), shift.reshape(1, c)

        s1, b1 = bn_fold(keys[4], width)
        s2, b2 = bn_fold(keys[5], width)
        s3, b3 = bn_fold(keys[6], cout)

        x_nhwc = jnp.transpose(x_nchw, (0, 2, 3, 1))
        out_nhwc = bottleneck_forward(x_nhwc, w1, s1, b1, w2, s2, b2, w3, s3, b3)
        out_nhwc = jax.block_until_ready(out_nhwc)
        out_nchw = jnp.transpose(out_nhwc, (0, 3, 1, 2))   # back to PyTorch layout
        assert out_nchw.shape == (N, cout, H, W)

        ref = reference(x_nhwc, w1, s1, b1, w2, s2, b2, w3, s3, b3)
        max_err = float(jnp.max(jnp.abs(out_nhwc - ref)))
        # bf16 input DMA + bf16 weights/activations with f32 accumulation and
        # f32 residual add => loosened tolerance vs the f32 reference.
        assert jnp.allclose(out_nhwc, ref, atol=7.5e-2, rtol=5e-2), max_err
        return max_err

    key = jax.random.PRNGKey(0)
    k1, k2 = jax.random.split(key)
    # Main shape: 2 images per grid step -> M = 128 rows/matmul, 2 parallel steps.
    run_case(k1, N=4, H=8, W=8)
    # Guard case: H != W and W not a multiple of 8 (exercises the per-image
    # row/column boundary masks of the roll-based im2col).
    run_case(k2, N=2, H=6, W=12)

    print("KERNEL_OK")
</pallas_src>

<mosaic_0001>
module attributes {stable_mosaic.version = 11 : i64} {
  func.func @_bottleneck_kernel(%arg0: i32, %arg1: memref<128x128xbf16, #tpu.memory_space<vmem>>, %arg2: memref<128x32xbf16, #tpu.memory_space<vmem>>, %arg3: memref<1x32xf32, #tpu.memory_space<vmem>>, %arg4: memref<288x32xbf16, #tpu.memory_space<vmem>>, %arg5: memref<1x32xf32, #tpu.memory_space<vmem>>, %arg6: memref<32x128xbf16, #tpu.memory_space<vmem>>, %arg7: memref<1x128xf32, #tpu.memory_space<vmem>>, %arg8: memref<128x128xf32, #tpu.memory_space<vmem>>) attributes {dimension_semantics = [#tpu.dimension_semantics<parallel>], iteration_bounds = array<i64: 2>, scalar_prefetch = 0 : i64, scratch_operands = 0 : i64, tpu.core_type = #tpu.core_type<tc>, window_params = [{transform_indices = @transform_0, window_bounds = array<i64: 128, 128>}, {pipeline_mode = #tpu.pipeline_mode<synchronous>, transform_indices = @transform_1, window_bounds = array<i64: 128, 32>}, {pipeline_mode = #tpu.pipeline_mode<synchronous>, transform_indices = @transform_2, window_bounds = array<i64: 1, 32>}, {pipeline_mode = #tpu.pipeline_mode<synchronous>, transform_indices = @transform_3, window_bounds = array<i64: 288, 32>}, {pipeline_mode = #tpu.pipeline_mode<synchronous>, transform_indices = @transform_4, window_bounds = array<i64: 1, 32>}, {pipeline_mode = #tpu.pipeline_mode<synchronous>, transform_indices = @transform_5, window_bounds = array<i64: 32, 128>}, {pipeline_mode = #tpu.pipeline_mode<synchronous>, transform_indices = @transform_6, window_bounds = array<i64: 1, 128>}, {transform_indices = @transform_7, window_bounds = array<i64: 128, 128>}]} {
    %c0 = arith.constant 0 : index
    %c0_0 = arith.constant 0 : index
    %0 = vector.load %arg1[%c0, %c0_0] : memref<128x128xbf16, #tpu.memory_space<vmem>>, vector<128x128xbf16>
    %c0_1 = arith.constant 0 : index
    %c0_2 = arith.constant 0 : index
    %1 = vector.load %arg2[%c0_1, %c0_2] : memref<128x32xbf16, #tpu.memory_space<vmem>>, vector<128x32xbf16>
    %cst = arith.constant dense<0.000000e+00> : vector<128x32xf32>
    %2 = tpu.matmul %0, %1, %cst {dimension_numbers = #tpu.dot_dimension_numbers<[1], [0], [0], [1], [0, 0, 1, 1], [], []>} : vector<128x128xbf16>, vector<128x32xbf16>, vector<128x32xf32> -> vector<128x32xf32>
    %c0_3 = arith.constant 0 : index
    %c0_4 = arith.constant 0 : index
    %3 = vector.load %arg3[%c0_3, %c0_4] : memref<1x32xf32, #tpu.memory_space<vmem>>, vector<1x32xf32>
    %4 = vector.broadcast %3 : vector<1x32xf32> to vector<128x32xf32>
    %5 = arith.addf %2, %4 : vector<128x32xf32>
    %cst_5 = arith.constant 0.000000e+00 : f32
    %6 = vector.broadcast %cst_5 : f32 to vector<128x32xf32>
    %7 = arith.maximumf %5, %6 : vector<128x32xf32>
    %8 = tpu.iota {dimensions = array<i32: 0>} : vector<128x32xi32>
    %c64_i32 = arith.constant 64 : i32
    %c0_i32 = arith.constant 0 : i32
    %9 = arith.cmpi eq, %c64_i32, %c0_i32 : i32
    %c1_i32 = arith.constant 1 : i32
    %10 = arith.select %9, %c1_i32, %c64_i32 : i32
    %11 = vector.broadcast %10 : i32 to vector<128x32xi32>
    %12 = arith.remsi %8, %11 : vector<128x32xi32>
    %c0_i32_6 = arith.constant 0 : i32
    %13 = vector.broadcast %c0_i32_6 : i32 to vector<128x32xi32>
    %14 = arith.cmpi ne, %12, %13 : vector<128x32xi32>
    %c0_i32_7 = arith.constant 0 : i32
    %15 = vector.broadcast %c0_i32_7 : i32 to vector<128x32xi32>
    %16 = arith.cmpi slt, %12, %15 : vector<128x32xi32>
    %c0_i32_8 = arith.constant 0 : i32
    %17 = arith.cmpi slt, %10, %c0_i32_8 : i32
    %18 = vector.broadcast %17 : i1 to vector<128x32xi1>
    %19 = vector.broadcast %18 : vector<128x32xi1> to vector<128x32xi1>
    %20 = arith.xori %16, %19 : vector<128x32xi1>
    %21 = arith.andi %20, %14 : vector<128x32xi1>
    %22 = vector.broadcast %10 : i32 to vector<128x32xi32>
    %23 = arith.addi %12, %22 : vector<128x32xi32>
    %24 = arith.select %21, %23, %12 : vector<128x32xi1>, vector<128x32xi32>
    %c8_i32 = arith.constant 8 : i32
    %c0_i32_9 = arith.constant 0 : i32
    %25 = arith.cmpi eq, %c8_i32, %c0_i32_9 : i32
    %c1_i32_10 = arith.constant 1 : i32
    %26 = arith.select %25, %c1_i32_10, %c8_i32 : i32
    %27 = vector.broadcast %26 : i32 to vector<128x32xi32>
    %28 = arith.remsi %8, %27 : vector<128x32xi32>
    %c0_i32_11 = arith.constant 0 : i32
    %29 = vector.broadcast %c0_i32_11 : i32 to vector<128x32xi32>
    %30 = arith.cmpi ne, %28, %29 : vector<128x32xi32>
    %c0_i32_12 = arith.constant 0 : i32
    %31 = vector.broadcast %c0_i32_12 : i32 to vector<128x32xi32>
    %32 = arith.cmpi slt, %28, %31 : vector<128x32xi32>
    %c0_i32_13 = arith.constant 0 : i32
    %33 = arith.cmpi slt, %26, %c0_i32_13 : i32
    %34 = vector.broadcast %33 : i1 to vector<128x32xi1>
    %35 = vector.broadcast %34 : vector<128x32xi1> to vector<128x32xi1>
    %36 = arith.xori %32, %35 : vector<128x32xi1>
    %37 = arith.andi %36, %30 : vector<128x32xi1>
    %38 = vector.broadcast %26 : i32 to vector<128x32xi32>
    %39 = arith.addi %28, %38 : vector<128x32xi32>
    %40 = arith.select %37, %39, %28 : vector<128x32xi1>, vector<128x32xi32>
    %c9_i32 = arith.constant 9 : i32
    %41 = tpu.dynamic_rotate %7 by %c9_i32 dim 0 : vector<128x32xf32>, i32 -> vector<128x32xf32>
    %c-9_i32 = arith.constant -9 : i32
    %42 = vector.broadcast %c-9_i32 : i32 to vector<128x32xi32>
    %43 = arith.addi %24, %42 : vector<128x32xi32>
    %c0_i32_14 = arith.constant 0 : i32
    %44 = vector.broadcast %c0_i32_14 : i32 to vector<128x32xi32>
    %45 = arith.cmpi sge, %43, %44 : vector<128x32xi32>
    %c-9_i32_15 = arith.constant -9 : i32
    %46 = vector.broadcast %c-9_i32_15 : i32 to vector<128x32xi32>
    %47 = arith.addi %24, %46 : vector<128x32xi32>
    %c64_i32_16 = arith.constant 64 : i32
    %48 = vector.broadcast %c64_i32_16 : i32 to vector<128x32xi32>
    %49 = arith.cmpi slt, %47, %48 : vector<128x32xi32>
    %50 = arith.andi %45, %49 : vector<128x32xi1>
    %c-1_i32 = arith.constant -1 : i32
    %51 = vector.broadcast %c-1_i32 : i32 to vector<128x32xi32>
    %52 = arith.addi %40, %51 : vector<128x32xi32>
    %c0_i32_17 = arith.constant 0 : i32
    %53 = vector.broadcast %c0_i32_17 : i32 to vector<128x32xi32>
    %54 = arith.cmpi sge, %52, %53 : vector<128x32xi32>
    %55 = arith.andi %50, %54 : vector<128x32xi1>
    %c-1_i32_18 = arith.constant -1 : i32
    %56 = vector.broadcast %c-1_i32_18 : i32 to vector<128x32xi32>
    %57 = arith.addi %40, %56 : vector<128x32xi32>
    %c8_i32_19 = arith.constant 8 : i32
    %58 = vector.broadcast %c8_i32_19 : i32 to vector<128x32xi32>
    %59 = arith.cmpi slt, %57, %58 : vector<128x32xi32>
    %60 = arith.andi %55, %59 : vector<128x32xi1>
    %61 = arith.truncf %41 : vector<128x32xf32> to vector<128x32xbf16>
    %c0_i32_20 = arith.constant 0 : i32
    %62 = arith.sitofp %c0_i32_20 : i32 to bf16
    %63 = vector.broadcast %62 : bf16 to vector<128x32xbf16>
    %64 = arith.select %60, %61, %63 : vector<128x32xi1>, vector<128x32xbf16>
    %c8_i32_21 = arith.constant 8 : i32
    %65 = tpu.dynamic_rotate %7 by %c8_i32_21 dim 0 : vector<128x32xf32>, i32 -> vector<128x32xf32>
    %c-8_i32 = arith.constant -8 : i32
    %66 = vector.broadcast %c-8_i32 : i32 to vector<128x32xi32>
    %67 = arith.addi %24, %66 : vector<128x32xi32>
    %c0_i32_22 = arith.constant 0 : i32
    %68 = vector.broadcast %c0_i32_22 : i32 to vector<128x32xi32>
    %69 = arith.cmpi sge, %67, %68 : vector<128x32xi32>
    %c-8_i32_23 = arith.constant -8 : i32
    %70 = vector.broadcast %c-8_i32_23 : i32 to vector<128x32xi32>
    %71 = arith.addi %24, %70 : vector<128x32xi32>
    %c64_i32_24 = arith.constant 64 : i32
    %72 = vector.broadcast %c64_i32_24 : i32 to vector<128x32xi32>
    %73 = arith.cmpi slt, %71, %72 : vector<128x32xi32>
    %74 = arith.andi %69, %73 : vector<128x32xi1>
    %c0_i32_25 = arith.constant 0 : i32
    %75 = vector.broadcast %c0_i32_25 : i32 to vector<128x32xi32>
    %76 = arith.addi %40, %75 : vector<128x32xi32>
    %c0_i32_26 = arith.constant 0 : i32
    %77 = vector.broadcast %c0_i32_26 : i32 to vector<128x32xi32>
    %78 = arith.cmpi sge, %76, %77 : vector<128x32xi32>
    %79 = arith.andi %74, %78 : vector<128x32xi1>
    %c0_i32_27 = arith.constant 0 : i32
    %80 = vector.broadcast %c0_i32_27 : i32 to vector<128x32xi32>
    %81 = arith.addi %40, %80 : vector<128x32xi32>
    %c8_i32_28 = arith.constant 8 : i32
    %82 = vector.broadcast %c8_i32_28 : i32 to vector<128x32xi32>
    %83 = arith.cmpi slt, %81, %82 : vector<128x32xi32>
    %84 = arith.andi %79, %83 : vector<128x32xi1>
    %85 = arith.truncf %65 : vector<128x32xf32> to vector<128x32xbf16>
    %c0_i32_29 = arith.constant 0 : i32
    %86 = arith.sitofp %c0_i32_29 : i32 to bf16
    %87 = vector.broadcast %86 : bf16 to vector<128x32xbf16>
    %88 = arith.select %84, %85, %87 : vector<128x32xi1>, vector<128x32xbf16>
    %c7_i32 = arith.constant 7 : i32
    %89 = tpu.dynamic_rotate %7 by %c7_i32 dim 0 : vector<128x32xf32>, i32 -> vector<128x32xf32>
    %c-7_i32 = arith.constant -7 : i32
    %90 = vector.broadcast %c-7_i32 : i32 to vector<128x32xi32>
    %91 = arith.addi %24, %90 : vector<128x32xi32>
    %c0_i32_30 = arith.constant 0 : i32
    %92 = vector.broadcast %c0_i32_30 : i32 to vector<128x32xi32>
    %93 = arith.cmpi sge, %91, %92 : vector<128x32xi32>
    %c-7_i32_31 = arith.constant -7 : i32
    %94 = vector.broadcast %c-7_i32_31 : i32 to vector<128x32xi32>
    %95 = arith.addi %24, %94 : vector<128x32xi32>
    %c64_i32_32 = arith.constant 64 : i32
    %96 = vector.broadcast %c64_i32_32 : i32 to vector<128x32xi32>
    %97 = arith.cmpi slt, %95, %96 : vector<128x32xi32>
    %98 = arith.andi %93, %97 : vector<128x32xi1>
    %c1_i32_33 = arith.constant 1 : i32
    %99 = vector.broadcast %c1_i32_33 : i32 to vector<128x32xi32>
    %100 = arith.addi %40, %99 : vector<128x32xi32>
    %c0_i32_34 = arith.constant 0 : i32
    %101 = vector.broadcast %c0_i32_34 : i32 to vector<128x32xi32>
    %102 = arith.cmpi sge, %100, %101 : vector<128x32xi32>
    %103 = arith.andi %98, %102 : vector<128x32xi1>
    %c1_i32_35 = arith.constant 1 : i32
    %104 = vector.broadcast %c1_i32_35 : i32 to vector<128x32xi32>
    %105 = arith.addi %40, %104 : vector<128x32xi32>
    %c8_i32_36 = arith.constant 8 : i32
    %106 = vector.broadcast %c8_i32_36 : i32 to vector<128x32xi32>
    %107 = arith.cmpi slt, %105, %106 : vector<128x32xi32>
    %108 = arith.andi %103, %107 : vector<128x32xi1>
    %109 = arith.truncf %89 : vector<128x32xf32> to vector<128x32xbf16>
    %c0_i32_37 = arith.constant 0 : i32
    %110 = arith.sitofp %c0_i32_37 : i32 to bf16
    %111 = vector.broadcast %110 : bf16 to vector<128x32xbf16>
    %112 = arith.select %108, %109, %111 : vector<128x32xi1>, vector<128x32xbf16>
    %c1_i32_38 = arith.constant 1 : i32
    %113 = tpu.dynamic_rotate %7 by %c1_i32_38 dim 0 : vector<128x32xf32>, i32 -> vector<128x32xf32>
    %c-1_i32_39 = arith.constant -1 : i32
    %114 = vector.broadcast %c-1_i32_39 : i32 to vector<128x32xi32>
    %115 = arith.addi %24, %114 : vector<128x32xi32>
    %c0_i32_40 = arith.constant 0 : i32
    %116 = vector.broadcast %c0_i32_40 : i32 to vector<128x32xi32>
    %117 = arith.cmpi sge, %115, %116 : vector<128x32xi32>
    %c-1_i32_41 = arith.constant -1 : i32
    %118 = vector.broadcast %c-1_i32_41 : i32 to vector<128x32xi32>
    %119 = arith.addi %24, %118 : vector<128x32xi32>
    %c64_i32_42 = arith.constant 64 : i32
    %120 = vector.broadcast %c64_i32_42 : i32 to vector<128x32xi32>
    %121 = arith.cmpi slt, %119, %120 : vector<128x32xi32>
    %122 = arith.andi %117, %121 : vector<128x32xi1>
    %c-1_i32_43 = arith.constant -1 : i32
    %123 = vector.broadcast %c-1_i32_43 : i32 to vector<128x32xi32>
    %124 = arith.addi %40, %123 : vector<128x32xi32>
    %c0_i32_44 = arith.constant 0 : i32
    %125 = vector.broadcast %c0_i32_44 : i32 to vector<128x32xi32>
    %126 = arith.cmpi sge, %124, %125 : vector<128x32xi32>
    %127 = arith.andi %122, %126 : vector<128x32xi1>
    %c-1_i32_45 = arith.constant -1 : i32
    %128 = vector.broadcast %c-1_i32_45 : i32 to vector<128x32xi32>
    %129 = arith.addi %40, %128 : vector<128x32xi32>
    %c8_i32_46 = arith.constant 8 : i32
    %130 = vector.broadcast %c8_i32_46 : i32 to vector<128x32xi32>
    %131 = arith.cmpi slt, %129, %130 : vector<128x32xi32>
    %132 = arith.andi %127, %131 : vector<128x32xi1>
    %133 = arith.truncf %113 : vector<128x32xf32> to vector<128x32xbf16>
    %c0_i32_47 = arith.constant 0 : i32
    %134 = arith.sitofp %c0_i32_47 : i32 to bf16
    %135 = vector.broadcast %134 : bf16 to vector<128x32xbf16>
    %136 = arith.select %132, %133, %135 : vector<128x32xi1>, vector<128x32xbf16>
    %137 = arith.truncf %7 : vector<128x32xf32> to vector<128x32xbf16>
    %c127_i32 = arith.constant 127 : i32
    %138 = tpu.dynamic_rotate %7 by %c127_i32 dim 0 : vector<128x32xf32>, i32 -> vector<128x32xf32>
    %c1_i32_48 = arith.constant 1 : i32
    %139 = vector.broadcast %c1_i32_48 : i32 to vector<128x32xi32>
    %140 = arith.addi %24, %139 : vector<128x32xi32>
    %c0_i32_49 = arith.constant 0 : i32
    %141 = vector.broadcast %c0_i32_49 : i32 to vector<128x32xi32>
    %142 = arith.cmpi sge, %140, %141 : vector<128x32xi32>
    %c1_i32_50 = arith.constant 1 : i32
    %143 = vector.broadcast %c1_i32_50 : i32 to vector<128x32xi32>
    %144 = arith.addi %24, %143 : vector<128x32xi32>
    %c64_i32_51 = arith.constant 64 : i32
    %145 = vector.broadcast %c64_i32_51 : i32 to vector<128x32xi32>
    %146 = arith.cmpi slt, %144, %145 : vector<128x32xi32>
    %147 = arith.andi %142, %146 : vector<128x32xi1>
    %c1_i32_52 = arith.constant 1 : i32
    %148 = vector.broadcast %c1_i32_52 : i32 to vector<128x32xi32>
    %149 = arith.addi %40, %148 : vector<128x32xi32>
    %c0_i32_53 = arith.constant 0 : i32
    %150 = vector.broadcast %c0_i32_53 : i32 to vector<128x32xi32>
    %151 = arith.cmpi sge, %149, %150 : vector<128x32xi32>
    %152 = arith.andi %147, %151 : vector<128x32xi1>
    %c1_i32_54 = arith.constant 1 : i32
    %153 = vector.broadcast %c1_i32_54 : i32 to vector<128x32xi32>
    %154 = arith.addi %40, %153 : vector<128x32xi32>
    %c8_i32_55 = arith.constant 8 : i32
    %155 = vector.broadcast %c8_i32_55 : i32 to vector<128x32xi32>
    %156 = arith.cmpi slt, %154, %155 : vector<128x32xi32>
    %157 = arith.andi %152, %156 : vector<128x32xi1>
    %158 = arith.truncf %138 : vector<128x32xf32> to vector<128x32xbf16>
    %c0_i32_56 = arith.constant 0 : i32
    %159 = arith.sitofp %c0_i32_56 : i32 to bf16
    %160 = vector.broadcast %159 : bf16 to vector<128x32xbf16>
    %161 = arith.select %157, %158, %160 : vector<128x32xi1>, vector<128x32xbf16>
    %c121_i32 = arith.constant 121 : i32
    %162 = tpu.dynamic_rotate %7 by %c121_i32 dim 0 : vector<128x32xf32>, i32 -> vector<128x32xf32>
    %c7_i32_57 = arith.constant 7 : i32
    %163 = vector.broadcast %c7_i32_57 : i32 to vector<128x32xi32>
    %164 = arith.addi %24, %163 : vector<128x32xi32>
    %c0_i32_58 = arith.constant 0 : i32
    %165 = vector.broadcast %c0_i32_58 : i32 to vector<128x32xi32>
    %166 = arith.cmpi sge, %164, %165 : vector<128x32xi32>
    %c7_i32_59 = arith.constant 7 : i32
    %167 = vector.broadcast %c7_i32_59 : i32 to vector<128x32xi32>
    %168 = arith.addi %24, %167 : vector<128x32xi32>
    %c64_i32_60 = arith.constant 64 : i32
    %169 = vector.broadcast %c64_i32_60 : i32 to vector<128x32xi32>
    %170 = arith.cmpi slt, %168, %169 : vector<128x32xi32>
    %171 = arith.andi %166, %170 : vector<128x32xi1>
    %c-1_i32_61 = arith.constant -1 : i32
    %172 = vector.broadcast %c-1_i32_61 : i32 to vector<128x32xi32>
    %173 = arith.addi %40, %172 : vector<128x32xi32>
    %c0_i32_62 = arith.constant 0 : i32
    %174 = vector.broadcast %c0_i32_62 : i32 to vector<128x32xi32>
    %175 = arith.cmpi sge, %173, %174 : vector<128x32xi32>
    %176 = arith.andi %171, %175 : vector<128x32xi1>
    %c-1_i32_63 = arith.constant -1 : i32
    %177 = vector.broadcast %c-1_i32_63 : i32 to vector<128x32xi32>
    %178 = arith.addi %40, %177 : vector<128x32xi32>
    %c8_i32_64 = arith.constant 8 : i32
    %179 = vector.broadcast %c8_i32_64 : i32 to vector<128x32xi32>
    %180 = arith.cmpi slt, %178, %179 : vector<128x32xi32>
    %181 = arith.andi %176, %180 : vector<128x32xi1>
    %182 = arith.truncf %162 : vector<128x32xf32> to vector<128x32xbf16>
    %c0_i32_65 = arith.constant 0 : i32
    %183 = arith.sitofp %c0_i32_65 : i32 to bf16
    %184 = vector.broadcast %183 : bf16 to vector<128x32xbf16>
    %185 = arith.select %181, %182, %184 : vector<128x32xi1>, vector<128x32xbf16>
    %c120_i32 = arith.constant 120 : i32
    %186 = tpu.dynamic_rotate %7 by %c120_i32 dim 0 : vector<128x32xf32>, i32 -> vector<128x32xf32>
    %c8_i32_66 = arith.constant 8 : i32
    %187 = vector.broadcast %c8_i32_66 : i32 to vector<128x32xi32>
    %188 = arith.addi %24, %187 : vector<128x32xi32>
    %c0_i32_67 = arith.constant 0 : i32
    %189 = vector.broadcast %c0_i32_67 : i32 to vector<128x32xi32>
    %190 = arith.cmpi sge, %188, %189 : vector<128x32xi32>
    %c8_i32_68 = arith.constant 8 : i32
    %191 = vector.broadcast %c8_i32_68 : i32 to vector<128x32xi32>
    %192 = arith.addi %24, %191 : vector<128x32xi32>
    %c64_i32_69 = arith.constant 64 : i32
    %193 = vector.broadcast %c64_i32_69 : i32 to vector<128x32xi32>
    %194 = arith.cmpi slt, %192, %193 : vector<128x32xi32>
    %195 = arith.andi %190, %194 : vector<128x32xi1>
    %c0_i32_70 = arith.constant 0 : i32
    %196 = vector.broadcast %c0_i32_70 : i32 to vector<128x32xi32>
    %197 = arith.addi %40, %196 : vector<128x32xi32>
    %c0_i32_71 = arith.constant 0 : i32
    %198 = vector.broadcast %c0_i32_71 : i32 to vector<128x32xi32>
    %199 = arith.cmpi sge, %197, %198 : vector<128x32xi32>
    %200 = arith.andi %195, %199 : vector<128x32xi1>
    %c0_i32_72 = arith.constant 0 : i32
    %201 = vector.broadcast %c0_i32_72 : i32 to vector<128x32xi32>
    %202 = arith.addi %40, %201 : vector<128x32xi32>
    %c8_i32_73 = arith.constant 8 : i32
    %203 = vector.broadcast %c8_i32_73 : i32 to vector<128x32xi32>
    %204 = arith.cmpi slt, %202, %203 : vector<128x32xi32>
    %205 = arith.andi %200, %204 : vector<128x32xi1>
    %206 = arith.truncf %186 : vector<128x32xf32> to vector<128x32xbf16>
    %c0_i32_74 = arith.constant 0 : i32
    %207 = arith.sitofp %c0_i32_74 : i32 to bf16
    %208 = vector.broadcast %207 : bf16 to vector<128x32xbf16>
    %209 = arith.select %205, %206, %208 : vector<128x32xi1>, vector<128x32xbf16>
    %c119_i32 = arith.constant 119 : i32
    %210 = tpu.dynamic_rotate %7 by %c119_i32 dim 0 : vector<128x32xf32>, i32 -> vector<128x32xf32>
    %c9_i32_75 = arith.constant 9 : i32
    %211 = vector.broadcast %c9_i32_75 : i32 to vector<128x32xi32>
    %212 = arith.addi %24, %211 : vector<128x32xi32>
    %c0_i32_76 = arith.constant 0 : i32
    %213 = vector.broadcast %c0_i32_76 : i32 to vector<128x32xi32>
    %214 = arith.cmpi sge, %212, %213 : vector<128x32xi32>
    %c9_i32_77 = arith.constant 9 : i32
    %215 = vector.broadcast %c9_i32_77 : i32 to vector<128x32xi32>
    %216 = arith.addi %24, %215 : vector<128x32xi32>
    %c64_i32_78 = arith.constant 64 : i32
    %217 = vector.broadcast %c64_i32_78 : i32 to vector<128x32xi32>
    %218 = arith.cmpi slt, %216, %217 : vector<128x32xi32>
    %219 = arith.andi %214, %218 : vector<128x32xi1>
    %c1_i32_79 = arith.constant 1 : i32
    %220 = vector.broadcast %c1_i32_79 : i32 to vector<128x32xi32>
    %221 = arith.addi %40, %220 : vector<128x32xi32>
    %c0_i32_80 = arith.constant 0 : i32
    %222 = vector.broadcast %c0_i32_80 : i32 to vector<128x32xi32>
    %223 = arith.cmpi sge, %221, %222 : vector<128x32xi32>
    %224 = arith.andi %219, %223 : vector<128x32xi1>
    %c1_i32_81 = arith.constant 1 : i32
    %225 = vector.broadcast %c1_i32_81 : i32 to vector<128x32xi32>
    %226 = arith.addi %40, %225 : vector<128x32xi32>
    %c8_i32_82 = arith.constant 8 : i32
    %227 = vector.broadcast %c8_i32_82 : i32 to vector<128x32xi32>
    %228 = arith.cmpi slt, %226, %227 : vector<128x32xi32>
    %229 = arith.andi %224, %228 : vector<128x32xi1>
    %230 = arith.truncf %210 : vector<128x32xf32> to vector<128x32xbf16>
    %c0_i32_83 = arith.constant 0 : i32
    %231 = arith.sitofp %c0_i32_83 : i32 to bf16
    %232 = vector.broadcast %231 : bf16 to vector<128x32xbf16>
    %233 = arith.select %229, %230, %232 : vector<128x32xi1>, vector<128x32xbf16>
    %234 = tpu.concatenate %64, %88, %112, %136, %137, %161, %185, %209, %233 in 1 : vector<128x32xbf16>, vector<128x32xbf16>, vector<128x32xbf16>, vector<128x32xbf16>, vector<128x32xbf16>, vector<128x32xbf16>, vector<128x32xbf16>, vector<128x32xbf16>, vector<128x32xbf16> -> vector<128x288xbf16>
    %c0_84 = arith.constant 0 : index
    %c0_85 = arith.constant 0 : index
    %235 = vector.load %arg4[%c0_84, %c0_85] : memref<288x32xbf16, #tpu.memory_space<vmem>>, vector<288x32xbf16>
    %cst_86 = arith.constant dense<0.000000e+00> : vector<128x32xf32>
    %236 = tpu.matmul %234, %235, %cst_86 {dimension_numbers = #tpu.dot_dimension_numbers<[1], [0], [0], [1], [0, 0, 1, 1], [], []>} : vector<128x288xbf16>, vector<288x32xbf16>, vector<128x32xf32> -> vector<128x32xf32>
    %c0_87 = arith.constant 0 : index
    %c0_88 = arith.constant 0 : index
    %237 = vector.load %arg5[%c0_87, %c0_88] : memref<1x32xf32, #tpu.memory_space<vmem>>, vector<1x32xf32>
    %238 = vector.broadcast %237 : vector<1x32xf32> to vector<128x32xf32>
    %239 = arith.addf %236, %238 : vector<128x32xf32>
    %cst_89 = arith.constant 0.000000e+00 : f32
    %240 = vector.broadcast %cst_89 : f32 to vector<128x32xf32>
    %241 = arith.maximumf %239, %240 : vector<128x32xf32>
    %242 = arith.truncf %241 : vector<128x32xf32> to vector<128x32xbf16>
    %c0_90 = arith.constant 0 : index
    %c0_91 = arith.constant 0 : index
    %243 = vector.load %arg6[%c0_90, %c0_91] : memref<32x128xbf16, #tpu.memory_space<vmem>>, vector<32x128xbf16>
    %cst_92 = arith.constant dense<0.000000e+00> : vector<128x128xf32>
    %244 = tpu.matmul %242, %243, %cst_92 {dimension_numbers = #tpu.dot_dimension_numbers<[1], [0], [0], [1], [0, 0, 1, 1], [], []>} : vector<128x32xbf16>, vector<32x128xbf16>, vector<128x128xf32> -> vector<128x128xf32>
    %c0_93 = arith.constant 0 : index
    %c0_94 = arith.constant 0 : index
    %245 = vector.load %arg1[%c0_93, %c0_94] : memref<128x128xbf16, #tpu.memory_space<vmem>>, vector<128x128xbf16>
    %246 = arith.extf %245 : vector<128x128xbf16> to vector<128x128xf32>
    %c0_95 = arith.constant 0 : index
    %c0_96 = arith.constant 0 : index
    %247 = vector.load %arg7[%c0_95, %c0_96] : memref<1x128xf32, #tpu.memory_space<vmem>>, vector<1x128xf32>
    %248 = vector.broadcast %247 : vector<1x128xf32> to vector<128x128xf32>
    %249 = arith.addf %244, %248 : vector<128x128xf32>
    %250 = arith.addf %249, %246 : vector<128x128xf32>
    %cst_97 = arith.constant 0.000000e+00 : f32
    %251 = vector.broadcast %cst_97 : f32 to vector<128x128xf32>
    %252 = arith.maximumf %250, %251 : vector<128x128xf32>
    %c0_98 = arith.constant 0 : index
    %c0_99 = arith.constant 0 : index
    %253 = vector.load %arg8[%c0_98, %c0_99] : memref<128x128xf32, #tpu.memory_space<vmem>>, vector<128x128xf32>
    tpu.vector_store %arg8[%c0_98, %c0_99], %252 {strides = array<i32>} : memref<128x128xf32, #tpu.memory_space<vmem>>, vector<128x128xf32>,
    return
  }
  func.func @transform_0(%arg0: i32) -> (i32, i32) {
    %c0_i32 = arith.constant 0 : i32
    %c0_i32_0 = arith.constant 0 : i32
    return %arg0, %c0_i32 : i32, i32
  }
  func.func @transform_1(%arg0: i32) -> (i32, i32) {
    %c0_i32 = arith.constant 0 : i32
    %c0_i32_0 = arith.constant 0 : i32
    %c0_i32_1 = arith.constant 0 : i32
    return %c0_i32, %c0_i32_0 : i32, i32
  }
  func.func @transform_2(%arg0: i32) -> (i32, i32) {
    %c0_i32 = arith.constant 0 : i32
    %c0_i32_0 = arith.constant 0 : i32
    %c0_i32_1 = arith.constant 0 : i32
    return %c0_i32, %c0_i32_0 : i32, i32
  }
  func.func @transform_3(%arg0: i32) -> (i32, i32) {
    %c0_i32 = arith.constant 0 : i32
    %c0_i32_0 = arith.constant 0 : i32
    %c0_i32_1 = arith.constant 0 : i32
    return %c0_i32, %c0_i32_0 : i32, i32
  }
  func.func @transform_4(%arg0: i32) -> (i32, i32) {
    %c0_i32 = arith.constant 0 : i32
    %c0_i32_0 = arith.constant 0 : i32
    %c0_i32_1 = arith.constant 0 : i32
    return %c0_i32, %c0_i32_0 : i32, i32
  }
  func.func @transform_5(%arg0: i32) -> (i32, i32) {
    %c0_i32 = arith.constant 0 : i32
    %c0_i32_0 = arith.constant 0 : i32
    %c0_i32_1 = arith.constant 0 : i32
    return %c0_i32, %c0_i32_0 : i32, i32
  }
  func.func @transform_6(%arg0: i32) -> (i32, i32) {
    %c0_i32 = arith.constant 0 : i32
    %c0_i32_0 = arith.constant 0 : i32
    %c0_i32_1 = arith.constant 0 : i32
    return %c0_i32, %c0_i32_0 : i32, i32
  }
  func.func @transform_7(%arg0: i32) -> (i32, i32) {
    %c0_i32 = arith.constant 0 : i32
    %c0_i32_0 = arith.constant 0 : i32
    return %arg0, %c0_i32 : i32, i32
  }
}

</mosaic_0001>

<llo_original>
// kernel: tpu_custom_call.1
$region0: #{tpu_custom_call.1}
  #allocation0 [shape = 'u32[]', space=smem, size = 0x4, offset = 0x4, fixed_abs, tag = 'smem constant byte address 0x4 - core index']
  #allocation1 [shape = 'u32[144,128]{1,0:T(1,128)}', space=vmem, size = 0x12000, scoped, tag = 'internal scratch']
  %s0 = inlined_call_operand.vmem [shape: bf16[256,128], index: 0, kind: input, shape index: {}]
  %s1 = inlined_call_operand.vmem [shape: bf16[128,32], index: 1, kind: input, shape index: {}]
  %s2 = inlined_call_operand.vmem [shape: f32[1,32], index: 2, kind: input, shape index: {}]
  %s3 = inlined_call_operand.vmem [shape: bf16[288,32], index: 3, kind: input, shape index: {}]
  %s4 = inlined_call_operand.vmem [shape: f32[1,32], index: 4, kind: input, shape index: {}]
  %s5 = inlined_call_operand.vmem [shape: bf16[32,128], index: 5, kind: input, shape index: {}]
  %s6 = inlined_call_operand.vmem [shape: f32[1,128], index: 6, kind: input, shape index: {}]
  %s7 = inlined_call_operand.hbm [shape: f32[256,128], index: 7, kind: output, shape index: {}]
  %s8 = sld [smem:[#allocation0]]
  $region61: #{tpu_custom_call.1} parent=0
    _
  %s10 = ssub.s32 1, %s8
  %s11 = scalar_select 0, %s10, %s8
  $region1: #{tpu_custom_call.1} parent=0
    #allocation2 [shape = 'u8[131072]{0}', space=vmem, size = 0x20000, scoped, tag = 'output window, operand 0']
    #allocation3 [shape = 's32[2]{0}', space=sflag, size = 0x8, scoped, tag = 'scoped memory for tpu_custom_call.1']
    %12 = vsyncpa [#allocation3], 0
    %s13 = scalar_lea.sflag [#allocation3], 1
    %14 = vsyncpa %s13, 0
    loop: start=0, step=1, limit=4
    $region2: #{tpu_custom_call.1} parent=1 // loop_pre_header
      _
    $region3: #{tpu_custom_call.1} parent=1 // loop_header
      %s16 = sphi 0, %s20
      %p17 = scmp.ge.s32.totalorder %s16, 4
      %s26 = sphi 0, %s28
      %s29 = sphi 0, %s26
      %s30 = sphi 0, %s29
      %s46 = sphi 0, %s30
      %s50 = sphi 0, %s50
      %s52 = sphi 0, %s50
      %s53 = sphi 0, %s52
      %s67 = sphi 0, %s53
      %s71 = sphi 0, %s71
      %s73 = sphi 0, %s71
      %s74 = sphi 0, %s73
      %s88 = sphi 0, %s74
      %s92 = sphi 0, %s92
      %s94 = sphi 0, %s92
      %s95 = sphi 0, %s94
      %s109 = sphi 0, %s95
      %s113 = sphi 0, %s113
      %s115 = sphi 0, %s113
      %s116 = sphi 0, %s115
      %s130 = sphi 0, %s116
      %s134 = sphi 0, %s134
      %s136 = sphi 0, %s134
      %s137 = sphi 0, %s136
      %s151 = sphi 0, %s137
      %s155 = sphi 0, %s155
      %s157 = sphi 0, %s155
      %s158 = sphi 0, %s157
      %s172 = sphi 0, %s158
      %s178 = sphi 0, %s180
      %s181 = sphi 0, %s178
      %s182 = sphi 0, %s181
      %s198 = sphi 0, %s182
    $region4: #{tpu_custom_call.1} parent=1 // loop_header_branch
      %19 = sbr.rel (%p17) target = $region8
    $region5: #{tpu_custom_call.1} parent=1 // loop_body
      %s21 = ssub.s32 %s16, 1
      %s22 = ssub.s32 %s16, 2
      %s23 = sadd.s32 %s16, 1
      %s24 = ssub.s32 %s16, %s23
      %p25 = scmp.eq.s32.totalorder %s24, 0
      %s27 = sadd.s32 %s26, 1
      %s28 = scalar_select %p25, %s26, %s27
      %p31 = pneg %p25
      %p32 = scmp.eq.s32.totalorder %s16, 1
      %p33 = por %p31, %p32
      %p34 = scmp.ne.s32.totalorder %s26, %s29
      %p35 = scmp.eq.s32.totalorder %s16, 0
      %p36 = por %p34, %p35
      %p37 = scmp.ne.s32.totalorder %s26, %s29
      %p38 = scmp.eq.s32.totalorder %s21, 1
      %p39 = por %p37, %p38
      %p40 = scmp.ne.s32.totalorder %s29, %s30
      %p41 = scmp.eq.s32.totalorder %s21, 0
      %p42 = por %p40, %p41
      %p43 = scmp.ne.s32.totalorder %s29, %s30
      %p44 = scmp.eq.s32.totalorder %s22, 1
      %p45 = por %p43, %p44
      %p47 = scmp.ne.s32.totalorder %s30, %s46
      %p48 = scmp.eq.s32.totalorder %s22, 0
      %p49 = por %p47, %p48
      %s51 = sadd.s32 %s50, 1
      %p54 = scmp.eq.s32.totalorder %s16, 1
      %p55 = scmp.ne.s32.totalorder %s50, %s52
      %p56 = scmp.eq.s32.totalorder %s16, 0
      %p57 = por %p55, %p56
      %p58 = scmp.ne.s32.totalorder %s50, %s52
      %p59 = scmp.eq.s32.totalorder %s21, 1
      %p60 = por %p58, %p59
      %p61 = scmp.ne.s32.totalorder %s52, %s53
      %p62 = scmp.eq.s32.totalorder %s21, 0
      %p63 = por %p61, %p62
      %p64 = scmp.ne.s32.totalorder %s52, %s53
      %p65 = scmp.eq.s32.totalorder %s22, 1
      %p66 = por %p64, %p65
      %p68 = scmp.ne.s32.totalorder %s53, %s67
      %p69 = scmp.eq.s32.totalorder %s22, 0
      %p70 = por %p68, %p69
      %s72 = sadd.s32 %s71, 1
      %p75 = scmp.eq.s32.totalorder %s16, 1
      %p76 = scmp.ne.s32.totalorder %s71, %s73
      %p77 = scmp.eq.s32.totalorder %s16, 0
      %p78 = por %p76, %p77
      %p79 = scmp.ne.s32.totalorder %s71, %s73
      %p80 = scmp.eq.s32.totalorder %s21, 1
      %p81 = por %p79, %p80
      %p82 = scmp.ne.s32.totalorder %s73, %s74
      %p83 = scmp.eq.s32.totalorder %s21, 0
      %p84 = por %p82, %p83
      %p85 = scmp.ne.s32.totalorder %s73, %s74
      %p86 = scmp.eq.s32.totalorder %s22, 1
      %p87 = por %p85, %p86
      %p89 = scmp.ne.s32.totalorder %s74, %s88
      %p90 = scmp.eq.s32.totalorder %s22, 0
      %p91 = por %p89, %p90
      %s93 = sadd.s32 %s92, 1
      %p96 = scmp.eq.s32.totalorder %s16, 1
      %p97 = scmp.ne.s32.totalorder %s92, %s94
      %p98 = scmp.eq.s32.totalorder %s16, 0
      %p99 = por %p97, %p98
      %p100 = scmp.ne.s32.totalorder %s92, %s94
      %p101 = scmp.eq.s32.totalorder %s21, 1
      %p102 = por %p100, %p101
      %p103 = scmp.ne.s32.totalorder %s94, %s95
      %p104 = scmp.eq.s32.totalorder %s21, 0
      %p105 = por %p103, %p104
      %p106 = scmp.ne.s32.totalorder %s94, %s95
      %p107 = scmp.eq.s32.totalorder %s22, 1
      %p108 = por %p106, %p107
      %p110 = scmp.ne.s32.totalorder %s95, %s109
      %p111 = scmp.eq.s32.totalorder %s22, 0
      %p112 = por %p110, %p111
      %s114 = sadd.s32 %s113, 1
      %p117 = scmp.eq.s32.totalorder %s16, 1
      %p118 = scmp.ne.s32.totalorder %s113, %s115
      %p119 = scmp.eq.s32.totalorder %s16, 0
      %p120 = por %p118, %p119
      %p121 = scmp.ne.s32.totalorder %s113, %s115
      %p122 = scmp.eq.s32.totalorder %s21, 1
      %p123 = por %p121, %p122
      %p124 = scmp.ne.s32.totalorder %s115, %s116
      %p125 = scmp.eq.s32.totalorder %s21, 0
      %p126 = por %p124, %p125
      %p127 = scmp.ne.s32.totalorder %s115, %s116
      %p128 = scmp.eq.s32.totalorder %s22, 1
      %p129 = por %p127, %p128
      %p131 = scmp.ne.s32.totalorder %s116, %s130
      %p132 = scmp.eq.s32.totalorder %s22, 0
      %p133 = por %p131, %p132
      %s135 = sadd.s32 %s134, 1
      %p138 = scmp.eq.s32.totalorder %s16, 1
      %p139 = scmp.ne.s32.totalorder %s134, %s136
      %p140 = scmp.eq.s32.totalorder %s16, 0
      %p141 = por %p139, %p140
      %p142 = scmp.ne.s32.totalorder %s134, %s136
      %p143 = scmp.eq.s32.totalorder %s21, 1
      %p144 = por %p142, %p143
      %p145 = scmp.ne.s32.totalorder %s136, %s137
      %p146 = scmp.eq.s32.totalorder %s21, 0
      %p147 = por %p145, %p146
      %p148 = scmp.ne.s32.totalorder %s136, %s137
      %p149 = scmp.eq.s32.totalorder %s22, 1
      %p150 = por %p148, %p149
      %p152 = scmp.ne.s32.totalorder %s137, %s151
      %p153 = scmp.eq.s32.totalorder %s22, 0
      %p154 = por %p152, %p153
      %s156 = sadd.s32 %s155, 1
      %p159 = scmp.eq.s32.totalorder %s16, 1
      %p160 = scmp.ne.s32.totalorder %s155, %s157
      %p161 = scmp.eq.s32.totalorder %s16, 0
      %p162 = por %p160, %p161
      %p163 = scmp.ne.s32.totalorder %s155, %s157
      %p164 = scmp.eq.s32.totalorder %s21, 1
      %p165 = por %p163, %p164
      %p166 = scmp.ne.s32.totalorder %s157, %s158
      %p167 = scmp.eq.s32.totalorder %s21, 0
      %p168 = por %p166, %p167
      %p169 = scmp.ne.s32.totalorder %s157, %s158
      %p170 = scmp.eq.s32.totalorder %s22, 1
      %p171 = por %p169, %p170
      %p173 = scmp.ne.s32.totalorder %s158, %s172
      %p174 = scmp.eq.s32.totalorder %s22, 0
      %p175 = por %p173, %p174
      %s176 = ssub.s32 %s16, %s23
      %p177 = scmp.eq.s32.totalorder %s176, 0
      %s179 = sadd.s32 %s178, 1
      %s180 = scalar_select %p177, %s178, %s179
      %p183 = pneg %p177
      %p184 = scmp.eq.s32.totalorder %s16, 1
      %p185 = por %p183, %p184
      %p186 = scmp.ne.s32.totalorder %s178, %s181
      %p187 = scmp.eq.s32.totalorder %s16, 0
      %p188 = por %p186, %p187
      %p189 = scmp.ne.s32.totalorder %s178, %s181
      %p190 = scmp.eq.s32.totalorder %s21, 1
      %p191 = por %p189, %p190
      %p192 = scmp.ne.s32.totalorder %s181, %s182
      %p193 = scmp.eq.s32.totalorder %s21, 0
      %p194 = por %p192, %p193
      %p195 = scmp.ne.s32.totalorder %s181, %s182
      %p196 = scmp.eq.s32.totalorder %s22, 1
      %p197 = por %p195, %p196
      %p199 = scmp.ne.s32.totalorder %s182, %s198
      %p200 = scmp.eq.s32.totalorder %s22, 0
      %p201 = por %p199, %p200
      %p202 = scmp.le.s32.totalorder 1, %s16
      %p203 = scmp.lt.s32.totalorder %s16, 3
      %p204 = pnand %p202, %p203
      %p205 = pneg %p204
      // Predicated region
      $region9: #{tpu_custom_call.1} parent=5 // pred_check
        _
      $region10: #{tpu_custom_call.1} parent=5 // pred_check_branch
        %207 = sbr.rel (%p204) target = $region12
      $region11: #{tpu_custom_call.1} parent=5 // pred_region
        %s208 = ssub.s32 %s16, 1
        // Predicated region
        $region13: #{tpu_custom_call.1} parent=11 // pred_check
          %p209 = pneg %p63
        $region14: #{tpu_custom_call.1} parent=11 // pred_check_branch
          %211 = sbr.rel (%p209) target = $region16
        $region15: #{tpu_custom_call.1} parent=11 // pred_region
          _
        $region16: #{tpu_custom_call.1} parent=11 // pred_fallthru
          _
        // Predicated region
        $region17: #{tpu_custom_call.1} parent=11 // pred_check
          %p212 = pneg %p84
        $region18: #{tpu_custom_call.1} parent=11 // pred_check_branch
          %214 = sbr.rel (%p212) target = $region20
        $region19: #{tpu_custom_call.1} parent=11 // pred_region
          _
        $region20: #{tpu_custom_call.1} parent=11 // pred_fallthru
          _
        // Predicated region
        $region21: #{tpu_custom_call.1} parent=11 // pred_check
          %p215 = pneg %p105
        $region22: #{tpu_custom_call.1} parent=11 // pred_check_branch
          %217 = sbr.rel (%p215) target = $region24
        $region23: #{tpu_custom_call.1} parent=11 // pred_region
          _
        $region24: #{tpu_custom_call.1} parent=11 // pred_fallthru
          _
        // Predicated region
        $region25: #{tpu_custom_call.1} parent=11 // pred_check
          %p218 = pneg %p126
        $region26: #{tpu_custom_call.1} parent=11 // pred_check_branch
          %220 = sbr.rel (%p218) target = $region28
        $region27: #{tpu_custom_call.1} parent=11 // pred_region
          _
        $region28: #{tpu_custom_call.1} parent=11 // pred_fallthru
          _
        // Predicated region
        $region29: #{tpu_custom_call.1} parent=11 // pred_check
          %p221 = pneg %p147
        $region30: #{tpu_custom_call.1} parent=11 // pred_check_branch
          %223 = sbr.rel (%p221) target = $region32
        $region31: #{tpu_custom_call.1} parent=11 // pred_region
          _
        $region32: #{tpu_custom_call.1} parent=11 // pred_fallthru
          _
        // Predicated region
        $region33: #{tpu_custom_call.1} parent=11 // pred_check
          %p224 = pneg %p168
        $region34: #{tpu_custom_call.1} parent=11 // pred_check_branch
          %226 = sbr.rel (%p224) target = $region36
        $region35: #{tpu_custom_call.1} parent=11 // pred_region
          _
        $region36: #{tpu_custom_call.1} parent=11 // pred_fallthru
          _
      $region12: #{tpu_custom_call.1} parent=5 // pred_fallthru
        _
      %p227 = scmp.lt.s32.totalorder %s16, 2
      // Predicated region
      $region37: #{tpu_custom_call.1} parent=5 // pred_check
        %p228 = pneg %p227
      $region38: #{tpu_custom_call.1} parent=5 // pred_check_branch
        %230 = sbr.rel (%p228) target = $region40
      $region39: #{tpu_custom_call.1} parent=5 // pred_region
        // Predicated region
        $region41: #{tpu_custom_call.1} parent=39 // pred_check
          %p231 = pneg %p36
        $region42: #{tpu_custom_call.1} parent=39 // pred_check_branch
          %233 = sbr.rel (%p231) target = $region44
        $region43: #{tpu_custom_call.1} parent=39 // pred_region
          %s234 = smul.u32 16, %s16
          %p235 = scmp.lt.s32.totalorder %s234, 31
          %s236 = scalar_select %p235, %s234, 31
          %s237 = smul.addr %s236, 4
          %s238 = scalar_lea.vmem %s0, %s237
          %s239 = smul.u32 16, %s16
        $region44: #{tpu_custom_call.1} parent=39 // pred_fallthru
          _
      $region40: #{tpu_custom_call.1} parent=5 // pred_fallthru
        _
      %p240 = scmp.le.s32.totalorder 1, %s16
      %p241 = scmp.lt.s32.totalorder %s16, 3
      %p242 = pnand %p240, %p241
      %p243 = pneg %p242
      // Predicated region
      $region45: #{tpu_custom_call.1} parent=5 // pred_check
        _
      $region46: #{tpu_custom_call.1} parent=5 // pred_check_branch
        %245 = sbr.rel (%p242) target = $region48
      $region47: #{tpu_custom_call.1} parent=5 // pred_region
        %s246 = ssub.s32 %s16, 1
        %s247 = smul.u32 16, %s21
        %p248 = scmp.lt.s32.totalorder %s247, 31
        %s249 = scalar_select %p248, %s247, 31
        %s250 = smul.addr %s249, 4
        %s251 = scalar_lea.vmem %s0, %s250
        %p252 = pneg %p42
        %p253 = pneg %p39
        %p254 = pneg %p63
        %p255 = pneg %p60
        %p256 = pneg %p84
        %p257 = pneg %p81
        %p258 = pneg %p105
        %p259 = pneg %p102
        %p260 = pneg %p126
        %p261 = pneg %p123
        %p262 = pneg %p147
        %p263 = pneg %p144
        %p264 = pneg %p168
        %p265 = pneg %p165
        %p266 = pneg %p194
        %p267 = pneg %p191
        %s268 = sand.u32 %s181, 1
        %s269 = scalar_lea.sflag [#allocation3], %s268
        %s270 = sand.u32 %s181, 1
        %s271 = smul.addr %s270, 128
        %s272 = scalar_lea.vmem [#allocation2], %s271
        %s273 = smul.u32 16, %s21
        %p274 = scmp.lt.s32.totalorder %s273, 31
        %s275 = scalar_select %p274, %s273, 31
        %s276 = smul.addr %s275, 4
        %s277 = scalar_lea.vmem %s0, %s276
        %s278 = smul.u32 16, %s21
        %s279 = smul.u32 16, %s21
        %v283 = vld [vmem:[%s277] sm:$0xf]
        %v284 = vld [vmem:[%s277 + $0x4] sm:$0xf]
        %v285 = vld [vmem:[%s277 + $0x8] sm:$0xf]
        %v286 = vld [vmem:[%s277 + $0xc] sm:$0xf]
        %v287 = vld [vmem:[%s277 + $0x10] sm:$0xf]
        %v288 = vld [vmem:[%s277 + $0x14] sm:$0xf]
        %v289 = vld [vmem:[%s277 + $0x18] sm:$0xf]
        %v290 = vld [vmem:[%s277 + $0x1c] sm:$0xf]
        %v291 = vld [vmem:[%s277 + $0x20] sm:$0xf]
        %v292 = vld [vmem:[%s277 + $0x24] sm:$0xf]
        %v293 = vld [vmem:[%s277 + $0x28] sm:$0xf]
        %v294 = vld [vmem:[%s277 + $0x2c] sm:$0xf]
        %v295 = vld [vmem:[%s277 + $0x30] sm:$0xf]
        %v296 = vld [vmem:[%s277 + $0x34] sm:$0xf]
        %v297 = vld [vmem:[%s277 + $0x38] sm:$0xf]
        %v298 = vld [vmem:[%s277 + $0x3c] sm:$0xf]
        %v299 = vld [vmem:[%s1] sm:$0xf]
        %v300 = vld [vmem:[%s1 + $0x4] sm:$0xf]
        %v301 = vld [vmem:[%s1 + $0x8] sm:$0xf]
        %v302 = vld [vmem:[%s1 + $0xc] sm:$0xf]
        %v303 = vld [vmem:[%s1 + $0x10] sm:$0xf]
        %v304 = vld [vmem:[%s1 + $0x14] sm:$0xf]
        %v305 = vld [vmem:[%s1 + $0x18] sm:$0xf]
        %v306 = vld [vmem:[%s1 + $0x1c] sm:$0xf]
        %v307 = vld [vmem:[%s1 + $0x20] sm:$0xf]
        %v308 = vld [vmem:[%s1 + $0x24] sm:$0xf]
        %v309 = vld [vmem:[%s1 + $0x28] sm:$0xf]
        %v310 = vld [vmem:[%s1 + $0x2c] sm:$0xf]
        %v311 = vld [vmem:[%s1 + $0x30] sm:$0xf]
        %v312 = vld [vmem:[%s1 + $0x34] sm:$0xf]
        %v313 = vld [vmem:[%s1 + $0x38] sm:$0xf]
        %v314 = vld [vmem:[%s1 + $0x3c] sm:$0xf]
        %v315 = vld [vmem:[%s2] sm:$0x1]
        %v317 = vlaneseq
        %v318 = vshrl.u32 %v317, 7
        %v319 = vsub.s32 0, %v318
        %v320 = vrot.slane %v315, %v319
        %v338 = vunpack.c.l.b16 %v283
        %v339 = vunpack.c.l.b16 %v284
        %v340 = vunpack.c.l.b16 %v285
        %v341 = vunpack.c.l.b16 %v286
        %v342 = vunpack.c.l.b16 %v287
        %v343 = vunpack.c.l.b16 %v288
        %v344 = vunpack.c.l.b16 %v289
        %v345 = vunpack.c.l.b16 %v290
        %v346 = vunpack.c.l.b16 %v291
        %v347 = vunpack.c.l.b16 %v292
        %v348 = vunpack.c.l.b16 %v293
        %v349 = vunpack.c.l.b16 %v294
        %v350 = vunpack.c.l.b16 %v295
        %v351 = vunpack.c.l.b16 %v296
        %v352 = vunpack.c.l.b16 %v297
        %v353 = vunpack.c.l.b16 %v298
        %v354 = vpack.c.b16 %v339, %v338
        %v355 = vpack.c.b16 %v341, %v340
        %v356 = vpack.c.b16 %v343, %v342
        %v357 = vpack.c.b16 %v345, %v344
        %v358 = vpack.c.b16 %v347, %v346
        %v359 = vpack.c.b16 %v349, %v348
        %v360 = vpack.c.b16 %v351, %v350
        %v361 = vpack.c.b16 %v353, %v352
        %v386 = vunpack.c.l.b16 %v299
        %v387 = vunpack.c.l.b16 %v300
        %v388 = vunpack.c.l.b16 %v301
        %v389 = vunpack.c.l.b16 %v302
        %v390 = vunpack.c.l.b16 %v303
        %v391 = vunpack.c.l.b16 %v304
        %v392 = vunpack.c.l.b16 %v305
        %v393 = vunpack.c.l.b16 %v306
        %v394 = vunpack.c.l.b16 %v307
        %v395 = vunpack.c.l.b16 %v308
        %v396 = vunpack.c.l.b16 %v309
        %v397 = vunpack.c.l.b16 %v310
        %v398 = vunpack.c.l.b16 %v311
        %v399 = vunpack.c.l.b16 %v312
        %v400 = vunpack.c.l.b16 %v313
        %v401 = vunpack.c.l.b16 %v314
        %v402 = vpack.c.b16 %v387, %v386
        %v403 = vpack.c.b16 %v389, %v388
        %v404 = vpack.c.b16 %v391, %v390
        %v405 = vpack.c.b16 %v393, %v392
        %v406 = vpack.c.b16 %v395, %v394
        %v407 = vpack.c.b16 %v397, %v396
        %v408 = vpack.c.b16 %v399, %v398
        %v409 = vpack.c.b16 %v401, %v400
        %418 = vmatprep.subr.bf16.mxu0 0
        %419 = vmatpush1.bf16.msra.mxu0 %v402
        %420 = vmatprep.subr.bf16.mxu0 0
        %421 = vmatpush1.bf16.msra.mxu0 %v403
        %422 = vmatprep.subr.bf16.mxu0 0
        %423 = vmatpush1.bf16.msra.mxu0 %v404
        %424 = vmatprep.subr.bf16.mxu0 0
        %425 = vmatpush1.bf16.msra.mxu0 %v405
        %426 = vmatprep.subr.bf16.mxu0 0
        %427 = vmatpush1.bf16.msra.mxu0 %v406
        %428 = vmatprep.subr.bf16.mxu0 0
        %429 = vmatpush1.bf16.msra.mxu0 %v407
        %430 = vmatprep.subr.bf16.mxu0 0
        %431 = vmatpush1.bf16.msra.mxu0 %v408
        %432 = vmatprep.subr.bf16.mxu0 0
        %433 = vmatpush1.bf16.msra.mxu0 %v409
        %434 = vmatprep.subr.bf16.mxu0 0
        %435 = vmatpush1.bf16.msra.mxu0 0
        %436 = vmatprep.subr.bf16.mxu0 0
        %437 = vmatpush1.bf16.msra.mxu0 0
        %438 = vmatprep.subr.bf16.mxu0 0
        %439 = vmatpush1.bf16.msra.mxu0 0
        %440 = vmatprep.subr.bf16.mxu0 0
        %441 = vmatpush1.bf16.msra.mxu0 0
        %442 = vmatprep.subr.bf16.mxu0 0
        %443 = vmatpush1.bf16.msra.mxu0 0
        %444 = vmatprep.subr.bf16.mxu0 0
        %445 = vmatpush1.bf16.msra.mxu0 0
        %446 = vmatprep.subr.bf16.mxu0 0
        %447 = vmatpush1.bf16.msra.mxu0 0
        %448 = vmatprep.subr.bf16.mxu0 0
        %449 = vmatpush1.bf16.msra.mxu0 0
        %450 = vmatprep.mubr.bf16.mxu0 0
        %451 = vmatmul.mubr.bf16.gmra.mrb[0].mxu0 %v354
        %v452 = vpop.f32.mrb[0].mxu0
        %v453 = vadd.f32 %v320, %v452
        %v454 = vpop.f32.mrb[0].mxu0
        %v455 = vpop.f32.mrb[0].mxu0
        %v456 = vadd.f32 %v320, %v455
        %v457 = vpop.f32.mrb[0].mxu0
        %458 = vmatprep.mubr.bf16.mxu0 0
        %459 = vmatmul.mubr.bf16.gmra.mrb[0].mxu0 %v355
        %v460 = vpop.f32.mrb[0].mxu0
        %v461 = vadd.f32 %v320, %v460
        %v462 = vpop.f32.mrb[0].mxu0
        %v463 = vpop.f32.mrb[0].mxu0
        %v464 = vadd.f32 %v320, %v463
        %v465 = vpop.f32.mrb[0].mxu0
        %466 = vmatprep.mubr.bf16.mxu0 0
        %467 = vmatmul.mubr.bf16.gmra.mrb[0].mxu0 %v356
        %v468 = vpop.f32.mrb[0].mxu0
        %v469 = vadd.f32 %v320, %v468
        %v470 = vpop.f32.mrb[0].mxu0
        %v471 = vpop.f32.mrb[0].mxu0
        %v472 = vadd.f32 %v320, %v471
        %v473 = vpop.f32.mrb[0].mxu0
        %474 = vmatprep.mubr.bf16.mxu0 0
        %475 = vmatmul.mubr.bf16.gmra.mrb[0].mxu0 %v357
        %v476 = vpop.f32.mrb[0].mxu0
        %v477 = vadd.f32 %v320, %v476
        %v478 = vpop.f32.mrb[0].mxu0
        %v479 = vpop.f32.mrb[0].mxu0
        %v480 = vadd.f32 %v320, %v479
        %v481 = vpop.f32.mrb[0].mxu0
        %482 = vmatprep.mubr.bf16.mxu0 0
        %483 = vmatmul.mubr.bf16.gmra.mrb[0].mxu0 %v358
        %v484 = vpop.f32.mrb[0].mxu0
        %v485 = vadd.f32 %v320, %v484
        %v486 = vpop.f32.mrb[0].mxu0
        %v487 = vpop.f32.mrb[0].mxu0
        %v488 = vadd.f32 %v320, %v487
        %v489 = vpop.f32.mrb[0].mxu0
        %490 = vmatprep.mubr.bf16.mxu0 0
        %491 = vmatmul.mubr.bf16.gmra.mrb[0].mxu0 %v359
        %v492 = vpop.f32.mrb[0].mxu0
        %v493 = vadd.f32 %v320, %v492
        %v494 = vpop.f32.mrb[0].mxu0
        %v495 = vpop.f32.mrb[0].mxu0
        %v496 = vadd.f32 %v320, %v495
        %v497 = vpop.f32.mrb[0].mxu0
        %498 = vmatprep.mubr.bf16.mxu0 0
        %499 = vmatmul.mubr.bf16.gmra.mrb[0].mxu0 %v360
        %v500 = vpop.f32.mrb[0].mxu0
        %v501 = vadd.f32 %v320, %v500
        %v502 = vpop.f32.mrb[0].mxu0
        %v503 = vpop.f32.mrb[0].mxu0
        %v504 = vadd.f32 %v320, %v503
        %v505 = vpop.f32.mrb[0].mxu0
        %506 = vmatprep.mubr.bf16.mxu0 0
        %507 = vmatmul.mubr.bf16.gmra.mrb[0].mxu0 %v361
        %v508 = vpop.f32.mrb[0].mxu0
        %v509 = vadd.f32 %v320, %v508
        %v510 = vpop.f32.mrb[0].mxu0
        %v511 = vpop.f32.mrb[0].mxu0
        %v512 = vadd.f32 %v320, %v511
        %v513 = vpop.f32.mrb[0].mxu0
        %514 = vdwg.mxu0
        %v515 = vmax.f32 %v453, 0.0
        %v516 = vmax.f32 %v456, 0.0
        %v517 = vmax.f32 %v461, 0.0
        %v518 = vmax.f32 %v464, 0.0
        %v519 = vmax.f32 %v469, 0.0
        %v520 = vmax.f32 %v472, 0.0
        %v521 = vmax.f32 %v477, 0.0
        %v522 = vmax.f32 %v480, 0.0
        %v523 = vmax.f32 %v485, 0.0
        %v524 = vmax.f32 %v488, 0.0
        %v525 = vmax.f32 %v493, 0.0
        %v526 = vmax.f32 %v496, 0.0
        %v527 = vmax.f32 %v501, 0.0
        %v528 = vmax.f32 %v504, 0.0
        %v529 = vmax.f32 %v509, 0.0
        %v530 = vmax.f32 %v512, 0.0
        %v531 = vlaneseq
        %v532 = vshrl.u32 %v531, 7
        %v533 = vadd.s32 %v532, 8
        %v534 = vadd.s32 %v532, 16
        %v535 = vadd.s32 %v532, 24
        %v536 = vadd.s32 %v532, 32
        %v537 = vadd.s32 %v532, 40
        %v538 = vadd.s32 %v532, 48
        %v539 = vadd.s32 %v532, 56
        %v540 = vadd.s32 %v532, 64
        %v541 = vadd.s32 %v532, 72
        %v542 = vadd.s32 %v532, 80
        %v543 = vadd.s32 %v532, 88
        %v544 = vadd.s32 %v532, 96
        %v545 = vadd.s32 %v532, 104
        %v546 = vadd.s32 %v532, 112
        %v547 = vadd.s32 %v532, 120
        %vm548 = vcmp.lt.s32.totalorder %v532, 0
        %v549 = vsub.s32 0, %v532
        %v550 = vsel %vm548, %v549, %v532
        %v551 = vshrl.u32 %v550, 6
        %v552 = vand.u32 %v550, 63
        %v553 = vsub.s32 0, %v552
        %v554 = vsel %vm548, %v553, %v552
        %vm555 = vcmp.lt.s32.totalorder %v533, 0
        %v556 = vsub.s32 0, %v533
        %v557 = vsel %vm555, %v556, %v533
        %v558 = vshrl.u32 %v557, 6
        %v559 = vand.u32 %v557, 63
        %v560 = vsub.s32 0, %v559
        %v561 = vsel %vm555, %v560, %v559
        %vm562 = vcmp.lt.s32.totalorder %v534, 0
        %v563 = vsub.s32 0, %v534
        %v564 = vsel %vm562, %v563, %v534
        %v565 = vshrl.u32 %v564, 6
        %v566 = vand.u32 %v564, 63
        %v567 = vsub.s32 0, %v566
        %v568 = vsel %vm562, %v567, %v566
        %vm569 = vcmp.lt.s32.totalorder %v535, 0
        %v570 = vsub.s32 0, %v535
        %v571 = vsel %vm569, %v570, %v535
        %v572 = vshrl.u32 %v571, 6
        %v573 = vand.u32 %v571, 63
        %v574 = vsub.s32 0, %v573
        %v575 = vsel %vm569, %v574, %v573
        %vm576 = vcmp.lt.s32.totalorder %v536, 0
        %v577 = vsub.s32 0, %v536
        %v578 = vsel %vm576, %v577, %v536
        %v579 = vshrl.u32 %v578, 6
        %v580 = vand.u32 %v578, 63
        %v581 = vsub.s32 0, %v580
        %v582 = vsel %vm576, %v581, %v580
        %vm583 = vcmp.lt.s32.totalorder %v537, 0
        %v584 = vsub.s32 0, %v537
        %v585 = vsel %vm583, %v584, %v537
        %v586 = vshrl.u32 %v585, 6
        %v587 = vand.u32 %v585, 63
        %v588 = vsub.s32 0, %v587
        %v589 = vsel %vm583, %v588, %v587
        %vm590 = vcmp.lt.s32.totalorder %v538, 0
        %v591 = vsub.s32 0, %v538
        %v592 = vsel %vm590, %v591, %v538
        %v593 = vshrl.u32 %v592, 6
        %v594 = vand.u32 %v592, 63
        %v595 = vsub.s32 0, %v594
        %v596 = vsel %vm590, %v595, %v594
        %vm597 = vcmp.lt.s32.totalorder %v539, 0
        %v598 = vsub.s32 0, %v539
        %v599 = vsel %vm597, %v598, %v539
        %v600 = vshrl.u32 %v599, 6
        %v601 = vand.u32 %v599, 63
        %v602 = vsub.s32 0, %v601
        %v603 = vsel %vm597, %v602, %v601
        %vm604 = vcmp.lt.s32.totalorder %v540, 0
        %v605 = vsub.s32 0, %v540
        %v606 = vsel %vm604, %v605, %v540
        %v607 = vshrl.u32 %v606, 6
        %v608 = vand.u32 %v606, 63
        %v609 = vsub.s32 0, %v608
        %v610 = vsel %vm604, %v609, %v608
        %vm611 = vcmp.lt.s32.totalorder %v541, 0
        %v612 = vsub.s32 0, %v541
        %v613 = vsel %vm611, %v612, %v541
        %v614 = vshrl.u32 %v613, 6
        %v615 = vand.u32 %v613, 63
        %v616 = vsub.s32 0, %v615
        %v617 = vsel %vm611, %v616, %v615
        %vm618 = vcmp.lt.s32.totalorder %v542, 0
        %v619 = vsub.s32 0, %v542
        %v620 = vsel %vm618, %v619, %v542
        %v621 = vshrl.u32 %v620, 6
        %v622 = vand.u32 %v620, 63
        %v623 = vsub.s32 0, %v622
        %v624 = vsel %vm618, %v623, %v622
        %vm625 = vcmp.lt.s32.totalorder %v543, 0
        %v626 = vsub.s32 0, %v543
        %v627 = vsel %vm625, %v626, %v543
        %v628 = vshrl.u32 %v627, 6
        %v629 = vand.u32 %v627, 63
        %v630 = vsub.s32 0, %v629
        %v631 = vsel %vm625, %v630, %v629
        %vm632 = vcmp.lt.s32.totalorder %v544, 0
        %v633 = vsub.s32 0, %v544
        %v634 = vsel %vm632, %v633, %v544
        %v635 = vshrl.u32 %v634, 6
        %v636 = vand.u32 %v634, 63
        %v637 = vsub.s32 0, %v636
        %v638 = vsel %vm632, %v637, %v636
        %vm639 = vcmp.lt.s32.totalorder %v545, 0
        %v640 = vsub.s32 0, %v545
        %v641 = vsel %vm639, %v640, %v545
        %v642 = vshrl.u32 %v641, 6
        %v643 = vand.u32 %v641, 63
        %v644 = vsub.s32 0, %v643
        %v645 = vsel %vm639, %v644, %v643
        %vm646 = vcmp.lt.s32.totalorder %v546, 0
        %v647 = vsub.s32 0, %v546
        %v648 = vsel %vm646, %v647, %v546
        %v649 = vshrl.u32 %v648, 6
        %v650 = vand.u32 %v648, 63
        %v651 = vsub.s32 0, %v650
        %v652 = vsel %vm646, %v651, %v650
        %vm653 = vcmp.lt.s32.totalorder %v547, 0
        %v654 = vsub.s32 0, %v547
        %v655 = vsel %vm653, %v654, %v547
        %v656 = vshrl.u32 %v655, 6
        %v657 = vand.u32 %v655, 63
        %v658 = vsub.s32 0, %v657
        %v659 = vsel %vm653, %v658, %v657
        %vm660 = vcmp.ne.s32.totalorder %v554, 0
        %vm661 = vcmp.ne.s32.totalorder %v561, 0
        %vm662 = vcmp.ne.s32.totalorder %v568, 0
        %vm663 = vcmp.ne.s32.totalorder %v575, 0
        %vm664 = vcmp.ne.s32.totalorder %v582, 0
        %vm665 = vcmp.ne.s32.totalorder %v589, 0
        %vm666 = vcmp.ne.s32.totalorder %v596, 0
        %vm667 = vcmp.ne.s32.totalorder %v603, 0
        %vm668 = vcmp.ne.s32.totalorder %v610, 0
        %vm669 = vcmp.ne.s32.totalorder %v617, 0
        %vm670 = vcmp.ne.s32.totalorder %v624, 0
        %vm671 = vcmp.ne.s32.totalorder %v631, 0
        %vm672 = vcmp.ne.s32.totalorder %v638, 0
        %vm673 = vcmp.ne.s32.totalorder %v645, 0
        %vm674 = vcmp.ne.s32.totalorder %v652, 0
        %vm675 = vcmp.ne.s32.totalorder %v659, 0
        %vm676 = vcmp.lt.s32.totalorder %v554, 0
        %vm677 = vcmp.lt.s32.totalorder %v561, 0
        %vm678 = vcmp.lt.s32.totalorder %v568, 0
        %vm679 = vcmp.lt.s32.totalorder %v575, 0
        %vm680 = vcmp.lt.s32.totalorder %v582, 0
        %vm681 = vcmp.lt.s32.totalorder %v589, 0
        %vm682 = vcmp.lt.s32.totalorder %v596, 0
        %vm683 = vcmp.lt.s32.totalorder %v603, 0
        %vm684 = vcmp.lt.s32.totalorder %v610, 0
        %vm685 = vcmp.lt.s32.totalorder %v617, 0
        %vm686 = vcmp.lt.s32.totalorder %v624, 0
        %vm687 = vcmp.lt.s32.totalorder %v631, 0
        %vm688 = vcmp.lt.s32.totalorder %v638, 0
        %vm689 = vcmp.lt.s32.totalorder %v645, 0
        %vm690 = vcmp.lt.s32.totalorder %v652, 0
        %vm691 = vcmp.lt.s32.totalorder %v659, 0
        %vm692 = vmand %vm676, %vm660
        %vm693 = vmand %vm677, %vm661
        %vm694 = vmand %vm678, %vm662
        %vm695 = vmand %vm679, %vm663
        %vm696 = vmand %vm680, %vm664
        %vm697 = vmand %vm681, %vm665
        %vm698 = vmand %vm682, %vm666
        %vm699 = vmand %vm683, %vm667
        %vm700 = vmand %vm684, %vm668
        %vm701 = vmand %vm685, %vm669
        %vm702 = vmand %vm686, %vm670
        %vm703 = vmand %vm687, %vm671
        %vm704 = vmand %vm688, %vm672
        %vm705 = vmand %vm689, %vm673
        %vm706 = vmand %vm690, %vm674
        %vm707 = vmand %vm691, %vm675
        %v708 = vadd.s32 %v554, 64
        %v709 = vadd.s32 %v561, 64
        %v710 = vadd.s32 %v568, 64
        %v711 = vadd.s32 %v575, 64
        %v712 = vadd.s32 %v582, 64
        %v713 = vadd.s32 %v589, 64
        %v714 = vadd.s32 %v596, 64
        %v715 = vadd.s32 %v603, 64
        %v716 = vadd.s32 %v610, 64
        %v717 = vadd.s32 %v617, 64
        %v718 = vadd.s32 %v624, 64
        %v719 = vadd.s32 %v631, 64
        %v720 = vadd.s32 %v638, 64
        %v721 = vadd.s32 %v645, 64
        %v722 = vadd.s32 %v652, 64
        %v723 = vadd.s32 %v659, 64
        %v724 = vsel %vm692, %v708, %v554
        %v725 = vsel %vm693, %v709, %v561
        %v726 = vsel %vm694, %v710, %v568
        %v727 = vsel %vm695, %v711, %v575
        %v728 = vsel %vm696, %v712, %v582
        %v729 = vsel %vm697, %v713, %v589
        %v730 = vsel %vm698, %v714, %v596
        %v731 = vsel %vm699, %v715, %v603
        %v732 = vsel %vm700, %v716, %v610
        %v733 = vsel %vm701, %v717, %v617
        %v734 = vsel %vm702, %v718, %v624
        %v735 = vsel %vm703, %v719, %v631
        %v736 = vsel %vm704, %v720, %v638
        %v737 = vsel %vm705, %v721, %v645
        %v738 = vsel %vm706, %v722, %v652
        %v739 = vsel %vm707, %v723, %v659
        %vm740 = vcmp.lt.s32.totalorder %v532, 0
        %v741 = vsub.s32 0, %v532
        %v742 = vsel %vm740, %v741, %v532
        %v743 = vshrl.u32 %v742, 3
        %v744 = vand.u32 %v742, 7
        %v745 = vsub.s32 0, %v744
        %v746 = vsel %vm740, %v745, %v744
        %vm747 = vcmp.lt.s32.totalorder %v533, 0
        %v748 = vsub.s32 0, %v533
        %v749 = vsel %vm747, %v748, %v533
        %v750 = vshrl.u32 %v749, 3
        %v751 = vand.u32 %v749, 7
        %v752 = vsub.s32 0, %v751
        %v753 = vsel %vm747, %v752, %v751
        %vm754 = vcmp.lt.s32.totalorder %v534, 0
        %v755 = vsub.s32 0, %v534
        %v756 = vsel %vm754, %v755, %v534
        %v757 = vshrl.u32 %v756, 3
        %v758 = vand.u32 %v756, 7
        %v759 = vsub.s32 0, %v758
        %v760 = vsel %vm754, %v759, %v758
        %vm761 = vcmp.lt.s32.totalorder %v535, 0
        %v762 = vsub.s32 0, %v535
        %v763 = vsel %vm761, %v762, %v535
        %v764 = vshrl.u32 %v763, 3
        %v765 = vand.u32 %v763, 7
        %v766 = vsub.s32 0, %v765
        %v767 = vsel %vm761, %v766, %v765
        %vm768 = vcmp.lt.s32.totalorder %v536, 0
        %v769 = vsub.s32 0, %v536
        %v770 = vsel %vm768, %v769, %v536
        %v771 = vshrl.u32 %v770, 3
        %v772 = vand.u32 %v770, 7
        %v773 = vsub.s32 0, %v772
        %v774 = vsel %vm768, %v773, %v772
        %vm775 = vcmp.lt.s32.totalorder %v537, 0
        %v776 = vsub.s32 0, %v537
        %v777 = vsel %vm775, %v776, %v537
        %v778 = vshrl.u32 %v777, 3
        %v779 = vand.u32 %v777, 7
        %v780 = vsub.s32 0, %v779
        %v781 = vsel %vm775, %v780, %v779
        %vm782 = vcmp.lt.s32.totalorder %v538, 0
        %v783 = vsub.s32 0, %v538
        %v784 = vsel %vm782, %v783, %v538
        %v785 = vshrl.u32 %v784, 3
        %v786 = vand.u32 %v784, 7
        %v787 = vsub.s32 0, %v786
        %v788 = vsel %vm782, %v787, %v786
        %vm789 = vcmp.lt.s32.totalorder %v539, 0
        %v790 = vsub.s32 0, %v539
        %v791 = vsel %vm789, %v790, %v539
        %v792 = vshrl.u32 %v791, 3
        %v793 = vand.u32 %v791, 7
        %v794 = vsub.s32 0, %v793
        %v795 = vsel %vm789, %v794, %v793
        %vm796 = vcmp.lt.s32.totalorder %v540, 0
        %v797 = vsub.s32 0, %v540
        %v798 = vsel %vm796, %v797, %v540
        %v799 = vshrl.u32 %v798, 3
        %v800 = vand.u32 %v798, 7
        %v801 = vsub.s32 0, %v800
        %v802 = vsel %vm796, %v801, %v800
        %vm803 = vcmp.lt.s32.totalorder %v541, 0
        %v804 = vsub.s32 0, %v541
        %v805 = vsel %vm803, %v804, %v541
        %v806 = vshrl.u32 %v805, 3
        %v807 = vand.u32 %v805, 7
        %v808 = vsub.s32 0, %v807
        %v809 = vsel %vm803, %v808, %v807
        %vm810 = vcmp.lt.s32.totalorder %v542, 0
        %v811 = vsub.s32 0, %v542
        %v812 = vsel %vm810, %v811, %v542
        %v813 = vshrl.u32 %v812, 3
        %v814 = vand.u32 %v812, 7
        %v815 = vsub.s32 0, %v814
        %v816 = vsel %vm810, %v815, %v814
        %vm817 = vcmp.lt.s32.totalorder %v543, 0
        %v818 = vsub.s32 0, %v543
        %v819 = vsel %vm817, %v818, %v543
        %v820 = vshrl.u32 %v819, 3
        %v821 = vand.u32 %v819, 7
        %v822 = vsub.s32 0, %v821
        %v823 = vsel %vm817, %v822, %v821
        %vm824 = vcmp.lt.s32.totalorder %v544, 0
        %v825 = vsub.s32 0, %v544
        %v826 = vsel %vm824, %v825, %v544
        %v827 = vshrl.u32 %v826, 3
        %v828 = vand.u32 %v826, 7
        %v829 = vsub.s32 0, %v828
        %v830 = vsel %vm824, %v829, %v828
        %vm831 = vcmp.lt.s32.totalorder %v545, 0
        %v832 = vsub.s32 0, %v545
        %v833 = vsel %vm831, %v832, %v545
        %v834 = vshrl.u32 %v833, 3
        %v835 = vand.u32 %v833, 7
        %v836 = vsub.s32 0, %v835
        %v837 = vsel %vm831, %v836, %v835
        %vm838 = vcmp.lt.s32.totalorder %v546, 0
        %v839 = vsub.s32 0, %v546
        %v840 = vsel %vm838, %v839, %v546
        %v841 = vshrl.u32 %v840, 3
        %v842 = vand.u32 %v840, 7
        %v843 = vsub.s32 0, %v842
        %v844 = vsel %vm838, %v843, %v842
        %vm845 = vcmp.lt.s32.totalorder %v547, 0
        %v846 = vsub.s32 0, %v547
        %v847 = vsel %vm845, %v846, %v547
        %v848 = vshrl.u32 %v847, 3
        %v849 = vand.u32 %v847, 7
        %v850 = vsub.s32 0, %v849
        %v851 = vsel %vm845, %v850, %v849
        %vm852 = vcmp.ne.s32.totalorder %v746, 0
        %vm853 = vcmp.ne.s32.totalorder %v753, 0
        %vm854 = vcmp.ne.s32.totalorder %v760, 0
        %vm855 = vcmp.ne.s32.totalorder %v767, 0
        %vm856 = vcmp.ne.s32.totalorder %v774, 0
        %vm857 = vcmp.ne.s32.totalorder %v781, 0
        %vm858 = vcmp.ne.s32.totalorder %v788, 0
        %vm859 = vcmp.ne.s32.totalorder %v795, 0
        %vm860 = vcmp.ne.s32.totalorder %v802, 0
        %vm861 = vcmp.ne.s32.totalorder %v809, 0
        %vm862 = vcmp.ne.s32.totalorder %v816, 0
        %vm863 = vcmp.ne.s32.totalorder %v823, 0
        %vm864 = vcmp.ne.s32.totalorder %v830, 0
        %vm865 = vcmp.ne.s32.totalorder %v837, 0
        %vm866 = vcmp.ne.s32.totalorder %v844, 0
        %vm867 = vcmp.ne.s32.totalorder %v851, 0
        %vm868 = vcmp.lt.s32.totalorder %v746, 0
        %vm869 = vcmp.lt.s32.totalorder %v753, 0
        %vm870 = vcmp.lt.s32.totalorder %v760, 0
        %vm871 = vcmp.lt.s32.totalorder %v767, 0
        %vm872 = vcmp.lt.s32.totalorder %v774, 0
        %vm873 = vcmp.lt.s32.totalorder %v781, 0
        %vm874 = vcmp.lt.s32.totalorder %v788, 0
        %vm875 = vcmp.lt.s32.totalorder %v795, 0
        %vm876 = vcmp.lt.s32.totalorder %v802, 0
        %vm877 = vcmp.lt.s32.totalorder %v809, 0
        %vm878 = vcmp.lt.s32.totalorder %v816, 0
        %vm879 = vcmp.lt.s32.totalorder %v823, 0
        %vm880 = vcmp.lt.s32.totalorder %v830, 0
        %vm881 = vcmp.lt.s32.totalorder %v837, 0
        %vm882 = vcmp.lt.s32.totalorder %v844, 0
        %vm883 = vcmp.lt.s32.totalorder %v851, 0
        %vm884 = vmand %vm868, %vm852
        %vm885 = vmand %vm869, %vm853
        %vm886 = vmand %vm870, %vm854
        %vm887 = vmand %vm871, %vm855
        %vm888 = vmand %vm872, %vm856
        %vm889 = vmand %vm873, %vm857
        %vm890 = vmand %vm874, %vm858
        %vm891 = vmand %vm875, %vm859
        %vm892 = vmand %vm876, %vm860
        %vm893 = vmand %vm877, %vm861
        %vm894 = vmand %vm878, %vm862
        %vm895 = vmand %vm879, %vm863
        %vm896 = vmand %vm880, %vm864
        %vm897 = vmand %vm881, %vm865
        %vm898 = vmand %vm882, %vm866
        %vm899 = vmand %vm883, %vm867
        %v900 = vadd.s32 %v746, 8
        %v901 = vadd.s32 %v753, 8
        %v902 = vadd.s32 %v760, 8
        %v903 = vadd.s32 %v767, 8
        %v904 = vadd.s32 %v774, 8
        %v905 = vadd.s32 %v781, 8
        %v906 = vadd.s32 %v788, 8
        %v907 = vadd.s32 %v795, 8
        %v908 = vadd.s32 %v802, 8
        %v909 = vadd.s32 %v809, 8
        %v910 = vadd.s32 %v816, 8
        %v911 = vadd.s32 %v823, 8
        %v912 = vadd.s32 %v830, 8
        %v913 = vadd.s32 %v837, 8
        %v914 = vadd.s32 %v844, 8
        %v915 = vadd.s32 %v851, 8
        %v916 = vsel %vm884, %v900, %v746
        %v917 = vsel %vm885, %v901, %v753
        %v918 = vsel %vm886, %v902, %v760
        %v919 = vsel %vm887, %v903, %v767
        %v920 = vsel %vm888, %v904, %v774
        %v921 = vsel %vm889, %v905, %v781
        %v922 = vsel %vm890, %v906, %v788
        %v923 = vsel %vm891, %v907, %v795
        %v924 = vsel %vm892, %v908, %v802
        %v925 = vsel %vm893, %v909, %v809
        %v926 = vsel %vm894, %v910, %v816
        %v927 = vsel %vm895, %v911, %v823
        %v928 = vsel %vm896, %v912, %v830
        %v929 = vsel %vm897, %v913, %v837
        %v930 = vsel %vm898, %v914, %v844
        %v931 = vsel %vm899, %v915, %v851
        %v932 = vrot.slane %v515, 7
        %v933 = vrot.slane %v516, 7
        %v934 = vrot.slane %v517, 7
        %v935 = vrot.slane %v518, 7
        %v936 = vrot.slane %v519, 7
        %v937 = vrot.slane %v520, 7
        %v938 = vrot.slane %v521, 7
        %v939 = vrot.slane %v522, 7
        %v940 = vrot.slane %v523, 7
        %v941 = vrot.slane %v524, 7
        %v942 = vrot.slane %v525, 7
        %v943 = vrot.slane %v526, 7
        %v944 = vrot.slane %v527, 7
        %v945 = vrot.slane %v528, 7
        %v946 = vrot.slane %v529, 7
        %v947 = vrot.slane %v530, 7
        %vm948 = vcmp.lt.s32.totalorder %v532, 1
        %v949 = vsel %vm948, %v946, %v947
        %v950 = vsel %vm948, %v945, %v946
        %v951 = vsel %vm948, %v944, %v945
        %v952 = vsel %vm948, %v943, %v944
        %v953 = vsel %vm948, %v942, %v943
        %v954 = vsel %vm948, %v941, %v942
        %v955 = vsel %vm948, %v940, %v941
        %v956 = vsel %vm948, %v939, %v940
        %v957 = vsel %vm948, %v938, %v939
        %v958 = vsel %vm948, %v937, %v938
        %v959 = vsel %vm948, %v936, %v937
        %v960 = vsel %vm948, %v935, %v936
        %v961 = vsel %vm948, %v934, %v935
        %v962 = vsel %vm948, %v933, %v934
        %v963 = vsel %vm948, %v932, %v933
        %v964 = vsel %vm948, %v947, %v932
        %v965 = vadd.s32 %v724, 4294967287
        %v966 = vadd.s32 %v725, 4294967287
        %v967 = vadd.s32 %v726, 4294967287
        %v968 = vadd.s32 %v727, 4294967287
        %v969 = vadd.s32 %v728, 4294967287
        %v970 = vadd.s32 %v729, 4294967287
        %v971 = vadd.s32 %v730, 4294967287
        %v972 = vadd.s32 %v731, 4294967287
        %v973 = vadd.s32 %v732, 4294967287
        %v974 = vadd.s32 %v733, 4294967287
        %v975 = vadd.s32 %v734, 4294967287
        %v976 = vadd.s32 %v735, 4294967287
        %v977 = vadd.s32 %v736, 4294967287
        %v978 = vadd.s32 %v737, 4294967287
        %v979 = vadd.s32 %v738, 4294967287
        %v980 = vadd.s32 %v739, 4294967287
        %vm981 = vcmp.ge.s32.totalorder %v965, 0
        %vm982 = vcmp.ge.s32.totalorder %v966, 0
        %vm983 = vcmp.ge.s32.totalorder %v967, 0
        %vm984 = vcmp.ge.s32.totalorder %v968, 0
        %vm985 = vcmp.ge.s32.totalorder %v969, 0
        %vm986 = vcmp.ge.s32.totalorder %v970, 0
        %vm987 = vcmp.ge.s32.totalorder %v971, 0
        %vm988 = vcmp.ge.s32.totalorder %v972, 0
        %vm989 = vcmp.ge.s32.totalorder %v973, 0
        %vm990 = vcmp.ge.s32.totalorder %v974, 0
        %vm991 = vcmp.ge.s32.totalorder %v975, 0
        %vm992 = vcmp.ge.s32.totalorder %v976, 0
        %vm993 = vcmp.ge.s32.totalorder %v977, 0
        %vm994 = vcmp.ge.s32.totalorder %v978, 0
        %vm995 = vcmp.ge.s32.totalorder %v979, 0
        %vm996 = vcmp.ge.s32.totalorder %v980, 0
        %vm997 = vcmp.lt.s32.totalorder %v965, 64
        %vm998 = vcmp.lt.s32.totalorder %v966, 64
        %vm999 = vcmp.lt.s32.totalorder %v967, 64
        %vm1000 = vcmp.lt.s32.totalorder %v968, 64
        %vm1001 = vcmp.lt.s32.totalorder %v969, 64
        %vm1002 = vcmp.lt.s32.totalorder %v970, 64
        %vm1003 = vcmp.lt.s32.totalorder %v971, 64
        %vm1004 = vcmp.lt.s32.totalorder %v972, 64
        %vm1005 = vcmp.lt.s32.totalorder %v973, 64
        %vm1006 = vcmp.lt.s32.totalorder %v974, 64
        %vm1007 = vcmp.lt.s32.totalorder %v975, 64
        %vm1008 = vcmp.lt.s32.totalorder %v976, 64
        %vm1009 = vcmp.lt.s32.totalorder %v977, 64
        %vm1010 = vcmp.lt.s32.totalorder %v978, 64
        %vm1011 = vcmp.lt.s32.totalorder %v979, 64
        %vm1012 = vcmp.lt.s32.totalorder %v980, 64
        %vm1013 = vmand %vm981, %vm997
        %vm1014 = vmand %vm982, %vm998
        %vm1015 = vmand %vm983, %vm999
        %vm1016 = vmand %vm984, %vm1000
        %vm1017 = vmand %vm985, %vm1001
        %vm1018 = vmand %vm986, %vm1002
        %vm1019 = vmand %vm987, %vm1003
        %vm1020 = vmand %vm988, %vm1004
        %vm1021 = vmand %vm989, %vm1005
        %vm1022 = vmand %vm990, %vm1006
        %vm1023 = vmand %vm991, %vm1007
        %vm1024 = vmand %vm992, %vm1008
        %vm1025 = vmand %vm993, %vm1009
        %vm1026 = vmand %vm994, %vm1010
        %vm1027 = vmand %vm995, %vm1011
        %vm1028 = vmand %vm996, %vm1012
        %v1029 = vadd.s32 %v916, 4294967295
        %v1030 = vadd.s32 %v917, 4294967295
        %v1031 = vadd.s32 %v918, 4294967295
        %v1032 = vadd.s32 %v919, 4294967295
        %v1033 = vadd.s32 %v920, 4294967295
        %v1034 = vadd.s32 %v921, 4294967295
        %v1035 = vadd.s32 %v922, 4294967295
        %v1036 = vadd.s32 %v923, 4294967295
        %v1037 = vadd.s32 %v924, 4294967295
        %v1038 = vadd.s32 %v925, 4294967295
        %v1039 = vadd.s32 %v926, 4294967295
        %v1040 = vadd.s32 %v927, 4294967295
        %v1041 = vadd.s32 %v928, 4294967295
        %v1042 = vadd.s32 %v929, 4294967295
        %v1043 = vadd.s32 %v930, 4294967295
        %v1044 = vadd.s32 %v931, 4294967295
        %vm1045 = vcmp.ge.s32.totalorder %v1029, 0
        %vm1046 = vcmp.ge.s32.totalorder %v1030, 0
        %vm1047 = vcmp.ge.s32.totalorder %v1031, 0
        %vm1048 = vcmp.ge.s32.totalorder %v1032, 0
        %vm1049 = vcmp.ge.s32.totalorder %v1033, 0
        %vm1050 = vcmp.ge.s32.totalorder %v1034, 0
        %vm1051 = vcmp.ge.s32.totalorder %v1035, 0
        %vm1052 = vcmp.ge.s32.totalorder %v1036, 0
        %vm1053 = vcmp.ge.s32.totalorder %v1037, 0
        %vm1054 = vcmp.ge.s32.totalorder %v1038, 0
        %vm1055 = vcmp.ge.s32.totalorder %v1039, 0
        %vm1056 = vcmp.ge.s32.totalorder %v1040, 0
        %vm1057 = vcmp.ge.s32.totalorder %v1041, 0
        %vm1058 = vcmp.ge.s32.totalorder %v1042, 0
        %vm1059 = vcmp.ge.s32.totalorder %v1043, 0
        %vm1060 = vcmp.ge.s32.totalorder %v1044, 0
        %vm1061 = vmand %vm1013, %vm1045
        %vm1062 = vmand %vm1014, %vm1046
        %vm1063 = vmand %vm1015, %vm1047
        %vm1064 = vmand %vm1016, %vm1048
        %vm1065 = vmand %vm1017, %vm1049
        %vm1066 = vmand %vm1018, %vm1050
        %vm1067 = vmand %vm1019, %vm1051
        %vm1068 = vmand %vm1020, %vm1052
        %vm1069 = vmand %vm1021, %vm1053
        %vm1070 = vmand %vm1022, %vm1054
        %vm1071 = vmand %vm1023, %vm1055
        %vm1072 = vmand %vm1024, %vm1056
        %vm1073 = vmand %vm1025, %vm1057
        %vm1074 = vmand %vm1026, %vm1058
        %vm1075 = vmand %vm1027, %vm1059
        %vm1076 = vmand %vm1028, %vm1060
        %vm1077 = vcmp.lt.s32.totalorder %v1029, 8
        %vm1078 = vcmp.lt.s32.totalorder %v1030, 8
        %vm1079 = vcmp.lt.s32.totalorder %v1031, 8
        %vm1080 = vcmp.lt.s32.totalorder %v1032, 8
        %vm1081 = vcmp.lt.s32.totalorder %v1033, 8
        %vm1082 = vcmp.lt.s32.totalorder %v1034, 8
        %vm1083 = vcmp.lt.s32.totalorder %v1035, 8
        %vm1084 = vcmp.lt.s32.totalorder %v1036, 8
        %vm1085 = vcmp.lt.s32.totalorder %v1037, 8
        %vm1086 = vcmp.lt.s32.totalorder %v1038, 8
        %vm1087 = vcmp.lt.s32.totalorder %v1039, 8
        %vm1088 = vcmp.lt.s32.totalorder %v1040, 8
        %vm1089 = vcmp.lt.s32.totalorder %v1041, 8
        %vm1090 = vcmp.lt.s32.totalorder %v1042, 8
        %vm1091 = vcmp.lt.s32.totalorder %v1043, 8
        %vm1092 = vcmp.lt.s32.totalorder %v1044, 8
        %vm1093 = vmand %vm1061, %vm1077
        %vm1094 = vmand %vm1062, %vm1078
        %vm1095 = vmand %vm1063, %vm1079
        %vm1096 = vmand %vm1064, %vm1080
        %vm1097 = vmand %vm1065, %vm1081
        %vm1098 = vmand %vm1066, %vm1082
        %vm1099 = vmand %vm1067, %vm1083
        %vm1100 = vmand %vm1068, %vm1084
        %vm1101 = vmand %vm1069, %vm1085
        %vm1102 = vmand %vm1070, %vm1086
        %vm1103 = vmand %vm1071, %vm1087
        %vm1104 = vmand %vm1072, %vm1088
        %vm1105 = vmand %vm1073, %vm1089
        %vm1106 = vmand %vm1074, %vm1090
        %vm1107 = vmand %vm1075, %vm1091
        %vm1108 = vmand %vm1076, %vm1092
        %v1109 = vpack.c.bf16 %v964, %v949
        %v1110 = vpack.c.bf16 %v962, %v963
        %v1111 = vpack.c.bf16 %v960, %v961
        %v1112 = vpack.c.bf16 %v958, %v959
        %v1113 = vpack.c.bf16 %v956, %v957
        %v1114 = vpack.c.bf16 %v954, %v955
        %v1115 = vpack.c.bf16 %v952, %v953
        %v1116 = vpack.c.bf16 %v950, %v951
        %vm1117 = vmpackc.low %vm1093, %vm1093
        %vm1118 = vmpackc.low %vm1094, %vm1094
        %vm1119 = vmpackc.low %vm1095, %vm1095
        %vm1120 = vmpackc.low %vm1096, %vm1096
        %vm1121 = vmpackc.low %vm1097, %vm1097
        %vm1122 = vmpackc.low %vm1098, %vm1098
        %vm1123 = vmpackc.low %vm1099, %vm1099
        %vm1124 = vmpackc.low %vm1100, %vm1100
        %vm1125 = vmpackc.low %vm1101, %vm1101
        %vm1126 = vmpackc.low %vm1102, %vm1102
        %vm1127 = vmpackc.low %vm1103, %vm1103
        %vm1128 = vmpackc.low %vm1104, %vm1104
        %vm1129 = vmpackc.low %vm1105, %vm1105
        %vm1130 = vmpackc.low %vm1106, %vm1106
        %vm1131 = vmpackc.low %vm1107, %vm1107
        %vm1132 = vmpackc.low %vm1108, %vm1108
        %v1133 = vsel %vm1117, 65537, 0
        %v1134 = vsel %vm1118, 65537, 0
        %v1135 = vsel %vm1119, 65537, 0
        %v1136 = vsel %vm1120, 65537, 0
        %v1137 = vsel %vm1121, 65537, 0
        %v1138 = vsel %vm1122, 65537, 0
        %v1139 = vsel %vm1123, 65537, 0
        %v1140 = vsel %vm1124, 65537, 0
        %v1141 = vsel %vm1125, 65537, 0
        %v1142 = vsel %vm1126, 65537, 0
        %v1143 = vsel %vm1127, 65537, 0
        %v1144 = vsel %vm1128, 65537, 0
        %v1145 = vsel %vm1129, 65537, 0
        %v1146 = vsel %vm1130, 65537, 0
        %v1147 = vsel %vm1131, 65537, 0
        %v1148 = vsel %vm1132, 65537, 0
        %v1149 = vunpack.c.l.b16 %v1133
        %v1150 = vunpack.c.l.b16 %v1134
        %v1151 = vunpack.c.l.b16 %v1135
        %v1152 = vunpack.c.l.b16 %v1136
        %v1153 = vunpack.c.l.b16 %v1137
        %v1154 = vunpack.c.l.b16 %v1138
        %v1155 = vunpack.c.l.b16 %v1139
        %v1156 = vunpack.c.l.b16 %v1140
        %v1157 = vunpack.c.l.b16 %v1141
        %v1158 = vunpack.c.l.b16 %v1142
        %v1159 = vunpack.c.l.b16 %v1143
        %v1160 = vunpack.c.l.b16 %v1144
        %v1161 = vunpack.c.l.b16 %v1145
        %v1162 = vunpack.c.l.b16 %v1146
        %v1163 = vunpack.c.l.b16 %v1147
        %v1164 = vunpack.c.l.b16 %v1148
        %v1165 = vpack.c.b16 %v1150, %v1149
        %v1166 = vpack.c.b16 %v1152, %v1151
        %v1167 = vpack.c.b16 %v1154, %v1153
        %v1168 = vpack.c.b16 %v1156, %v1155
        %v1169 = vpack.c.b16 %v1158, %v1157
        %v1170 = vpack.c.b16 %v1160, %v1159
        %v1171 = vpack.c.b16 %v1162, %v1161
        %v1172 = vpack.c.b16 %v1164, %v1163
        %vm1173 = vcmp.ne.s16.totalorder %v1165, 0
        %vm1174 = vcmp.ne.s16.totalorder %v1166, 0
        %vm1175 = vcmp.ne.s16.totalorder %v1167, 0
        %vm1176 = vcmp.ne.s16.totalorder %v1168, 0
        %vm1177 = vcmp.ne.s16.totalorder %v1169, 0
        %vm1178 = vcmp.ne.s16.totalorder %v1170, 0
        %vm1179 = vcmp.ne.s16.totalorder %v1171, 0
        %vm1180 = vcmp.ne.s16.totalorder %v1172, 0
        %v1181 = vsel %vm1173, %v1109, 0
        %v1182 = vsel %vm1174, %v1110, 0
        %v1183 = vsel %vm1175, %v1111, 0
        %v1184 = vsel %vm1176, %v1112, 0
        %v1185 = vsel %vm1177, %v1113, 0
        %v1186 = vsel %vm1178, %v1114, 0
        %v1187 = vsel %vm1179, %v1115, 0
        %v1188 = vsel %vm1180, %v1116, 0
        %v1189 = vadd.s32 %v724, 4294967288
        %v1190 = vadd.s32 %v725, 4294967288
        %v1191 = vadd.s32 %v726, 4294967288
        %v1192 = vadd.s32 %v727, 4294967288
        %v1193 = vadd.s32 %v728, 4294967288
        %v1194 = vadd.s32 %v729, 4294967288
        %v1195 = vadd.s32 %v730, 4294967288
        %v1196 = vadd.s32 %v731, 4294967288
        %v1197 = vadd.s32 %v732, 4294967288
        %v1198 = vadd.s32 %v733, 4294967288
        %v1199 = vadd.s32 %v734, 4294967288
        %v1200 = vadd.s32 %v735, 4294967288
        %v1201 = vadd.s32 %v736, 4294967288
        %v1202 = vadd.s32 %v737, 4294967288
        %v1203 = vadd.s32 %v738, 4294967288
        %v1204 = vadd.s32 %v739, 4294967288
        %vm1205 = vcmp.ge.s32.totalorder %v1189, 0
        %vm1206 = vcmp.ge.s32.totalorder %v1190, 0
        %vm1207 = vcmp.ge.s32.totalorder %v1191, 0
        %vm1208 = vcmp.ge.s32.totalorder %v1192, 0
        %vm1209 = vcmp.ge.s32.totalorder %v1193, 0
        %vm1210 = vcmp.ge.s32.totalorder %v1194, 0
        %vm1211 = vcmp.ge.s32.totalorder %v1195, 0
        %vm1212 = vcmp.ge.s32.totalorder %v1196, 0
        %vm1213 = vcmp.ge.s32.totalorder %v1197, 0
        %vm1214 = vcmp.ge.s32.totalorder %v1198, 0
        %vm1215 = vcmp.ge.s32.totalorder %v1199, 0
        %vm1216 = vcmp.ge.s32.totalorder %v1200, 0
        %vm1217 = vcmp.ge.s32.totalorder %v1201, 0
        %vm1218 = vcmp.ge.s32.totalorder %v1202, 0
        %vm1219 = vcmp.ge.s32.totalorder %v1203, 0
        %vm1220 = vcmp.ge.s32.totalorder %v1204, 0
        %vm1221 = vcmp.lt.s32.totalorder %v1189, 64
        %vm1222 = vcmp.lt.s32.totalorder %v1190, 64
        %vm1223 = vcmp.lt.s32.totalorder %v1191, 64
        %vm1224 = vcmp.lt.s32.totalorder %v1192, 64
        %vm1225 = vcmp.lt.s32.totalorder %v1193, 64
        %vm1226 = vcmp.lt.s32.totalorder %v1194, 64
        %vm1227 = vcmp.lt.s32.totalorder %v1195, 64
        %vm1228 = vcmp.lt.s32.totalorder %v1196, 64
        %vm1229 = vcmp.lt.s32.totalorder %v1197, 64
        %vm1230 = vcmp.lt.s32.totalorder %v1198, 64
        %vm1231 = vcmp.lt.s32.totalorder %v1199, 64
        %vm1232 = vcmp.lt.s32.totalorder %v1200, 64
        %vm1233 = vcmp.lt.s32.totalorder %v1201, 64
        %vm1234 = vcmp.lt.s32.totalorder %v1202, 64
        %vm1235 = vcmp.lt.s32.totalorder %v1203, 64
        %vm1236 = vcmp.lt.s32.totalorder %v1204, 64
        %vm1237 = vmand %vm1205, %vm1221
        %vm1238 = vmand %vm1206, %vm1222
        %vm1239 = vmand %vm1207, %vm1223
        %vm1240 = vmand %vm1208, %vm1224
        %vm1241 = vmand %vm1209, %vm1225
        %vm1242 = vmand %vm1210, %vm1226
        %vm1243 = vmand %vm1211, %vm1227
        %vm1244 = vmand %vm1212, %vm1228
        %vm1245 = vmand %vm1213, %vm1229
        %vm1246 = vmand %vm1214, %vm1230
        %vm1247 = vmand %vm1215, %vm1231
        %vm1248 = vmand %vm1216, %vm1232
        %vm1249 = vmand %vm1217, %vm1233
        %vm1250 = vmand %vm1218, %vm1234
        %vm1251 = vmand %vm1219, %vm1235
        %vm1252 = vmand %vm1220, %vm1236
        %vm1253 = vcmp.ge.s32.totalorder %v916, 0
        %vm1254 = vcmp.ge.s32.totalorder %v917, 0
        %vm1255 = vcmp.ge.s32.totalorder %v918, 0
        %vm1256 = vcmp.ge.s32.totalorder %v919, 0
        %vm1257 = vcmp.ge.s32.totalorder %v920, 0
        %vm1258 = vcmp.ge.s32.totalorder %v921, 0
        %vm1259 = vcmp.ge.s32.totalorder %v922, 0
        %vm1260 = vcmp.ge.s32.totalorder %v923, 0
        %vm1261 = vcmp.ge.s32.totalorder %v924, 0
        %vm1262 = vcmp.ge.s32.totalorder %v925, 0
        %vm1263 = vcmp.ge.s32.totalorder %v926, 0
        %vm1264 = vcmp.ge.s32.totalorder %v927, 0
        %vm1265 = vcmp.ge.s32.totalorder %v928, 0
        %vm1266 = vcmp.ge.s32.totalorder %v929, 0
        %vm1267 = vcmp.ge.s32.totalorder %v930, 0
        %vm1268 = vcmp.ge.s32.totalorder %v931, 0
        %vm1269 = vmand %vm1237, %vm1253
        %vm1270 = vmand %vm1238, %vm1254
        %vm1271 = vmand %vm1239, %vm1255
        %vm1272 = vmand %vm1240, %vm1256
        %vm1273 = vmand %vm1241, %vm1257
        %vm1274 = vmand %vm1242, %vm1258
        %vm1275 = vmand %vm1243, %vm1259
        %vm1276 = vmand %vm1244, %vm1260
        %vm1277 = vmand %vm1245, %vm1261
        %vm1278 = vmand %vm1246, %vm1262
        %vm1279 = vmand %vm1247, %vm1263
        %vm1280 = vmand %vm1248, %vm1264
        %vm1281 = vmand %vm1249, %vm1265
        %vm1282 = vmand %vm1250, %vm1266
        %vm1283 = vmand %vm1251, %vm1267
        %vm1284 = vmand %vm1252, %vm1268
        %vm1285 = vcmp.lt.s32.totalorder %v916, 8
        %vm1286 = vcmp.lt.s32.totalorder %v917, 8
        %vm1287 = vcmp.lt.s32.totalorder %v918, 8
        %vm1288 = vcmp.lt.s32.totalorder %v919, 8
        %vm1289 = vcmp.lt.s32.totalorder %v920, 8
        %vm1290 = vcmp.lt.s32.totalorder %v921, 8
        %vm1291 = vcmp.lt.s32.totalorder %v922, 8
        %vm1292 = vcmp.lt.s32.totalorder %v923, 8
        %vm1293 = vcmp.lt.s32.totalorder %v924, 8
        %vm1294 = vcmp.lt.s32.totalorder %v925, 8
        %vm1295 = vcmp.lt.s32.totalorder %v926, 8
        %vm1296 = vcmp.lt.s32.totalorder %v927, 8
        %vm1297 = vcmp.lt.s32.totalorder %v928, 8
        %vm1298 = vcmp.lt.s32.totalorder %v929, 8
        %vm1299 = vcmp.lt.s32.totalorder %v930, 8
        %vm1300 = vcmp.lt.s32.totalorder %v931, 8
        %vm1301 = vmand %vm1269, %vm1285
        %vm1302 = vmand %vm1270, %vm1286
        %vm1303 = vmand %vm1271, %vm1287
        %vm1304 = vmand %vm1272, %vm1288
        %vm1305 = vmand %vm1273, %vm1289
        %vm1306 = vmand %vm1274, %vm1290
        %vm1307 = vmand %vm1275, %vm1291
        %vm1308 = vmand %vm1276, %vm1292
        %vm1309 = vmand %vm1277, %vm1293
        %vm1310 = vmand %vm1278, %vm1294
        %vm1311 = vmand %vm1279, %vm1295
        %vm1312 = vmand %vm1280, %vm1296
        %vm1313 = vmand %vm1281, %vm1297
        %vm1314 = vmand %vm1282, %vm1298
        %vm1315 = vmand %vm1283, %vm1299
        %vm1316 = vmand %vm1284, %vm1300
        %v1317 = vpack.c.bf16 %v515, %v530
        %v1318 = vpack.c.bf16 %v517, %v516
        %v1319 = vpack.c.bf16 %v519, %v518
        %v1320 = vpack.c.bf16 %v521, %v520
        %v1321 = vpack.c.bf16 %v523, %v522
        %v1322 = vpack.c.bf16 %v525, %v524
        %v1323 = vpack.c.bf16 %v527, %v526
        %v1324 = vpack.c.bf16 %v529, %v528
        %vm1325 = vmpackc.low %vm1301, %vm1301
        %vm1326 = vmpackc.low %vm1302, %vm1302
        %vm1327 = vmpackc.low %vm1303, %vm1303
        %vm1328 = vmpackc.low %vm1304, %vm1304
        %vm1329 = vmpackc.low %vm1305, %vm1305
        %vm1330 = vmpackc.low %vm1306, %vm1306
        %vm1331 = vmpackc.low %vm1307, %vm1307
        %vm1332 = vmpackc.low %vm1308, %vm1308
        %vm1333 = vmpackc.low %vm1309, %vm1309
        %vm1334 = vmpackc.low %vm1310, %vm1310
        %vm1335 = vmpackc.low %vm1311, %vm1311
        %vm1336 = vmpackc.low %vm1312, %vm1312
        %vm1337 = vmpackc.low %vm1313, %vm1313
        %vm1338 = vmpackc.low %vm1314, %vm1314
        %vm1339 = vmpackc.low %vm1315, %vm1315
        %vm1340 = vmpackc.low %vm1316, %vm1316
        %v1341 = vsel %vm1325, 65537, 0
        %v1342 = vsel %vm1326, 65537, 0
        %v1343 = vsel %vm1327, 65537, 0
        %v1344 = vsel %vm1328, 65537, 0
        %v1345 = vsel %vm1329, 65537, 0
        %v1346 = vsel %vm1330, 65537, 0
        %v1347 = vsel %vm1331, 65537, 0
        %v1348 = vsel %vm1332, 65537, 0
        %v1349 = vsel %vm1333, 65537, 0
        %v1350 = vsel %vm1334, 65537, 0
        %v1351 = vsel %vm1335, 65537, 0
        %v1352 = vsel %vm1336, 65537, 0
        %v1353 = vsel %vm1337, 65537, 0
        %v1354 = vsel %vm1338, 65537, 0
        %v1355 = vsel %vm1339, 65537, 0
        %v1356 = vsel %vm1340, 65537, 0
        %v1357 = vunpack.c.l.b16 %v1341
        %v1358 = vunpack.c.l.b16 %v1342
        %v1359 = vunpack.c.l.b16 %v1343
        %v1360 = vunpack.c.l.b16 %v1344
        %v1361 = vunpack.c.l.b16 %v1345
        %v1362 = vunpack.c.l.b16 %v1346
        %v1363 = vunpack.c.l.b16 %v1347
        %v1364 = vunpack.c.l.b16 %v1348
        %v1365 = vunpack.c.l.b16 %v1349
        %v1366 = vunpack.c.l.b16 %v1350
        %v1367 = vunpack.c.l.b16 %v1351
        %v1368 = vunpack.c.l.b16 %v1352
        %v1369 = vunpack.c.l.b16 %v1353
        %v1370 = vunpack.c.l.b16 %v1354
        %v1371 = vunpack.c.l.b16 %v1355
        %v1372 = vunpack.c.l.b16 %v1356
        %v1373 = vpack.c.b16 %v1358, %v1357
        %v1374 = vpack.c.b16 %v1360, %v1359
        %v1375 = vpack.c.b16 %v1362, %v1361
        %v1376 = vpack.c.b16 %v1364, %v1363
        %v1377 = vpack.c.b16 %v1366, %v1365
        %v1378 = vpack.c.b16 %v1368, %v1367
        %v1379 = vpack.c.b16 %v1370, %v1369
        %v1380 = vpack.c.b16 %v1372, %v1371
        %vm1381 = vcmp.ne.s16.totalorder %v1373, 0
        %vm1382 = vcmp.ne.s16.totalorder %v1374, 0
        %vm1383 = vcmp.ne.s16.totalorder %v1375, 0
        %vm1384 = vcmp.ne.s16.totalorder %v1376, 0
        %vm1385 = vcmp.ne.s16.totalorder %v1377, 0
        %vm1386 = vcmp.ne.s16.totalorder %v1378, 0
        %vm1387 = vcmp.ne.s16.totalorder %v1379, 0
        %vm1388 = vcmp.ne.s16.totalorder %v1380, 0
        %v1389 = vsel %vm1381, %v1317, 0
        %v1390 = vsel %vm1382, %v1318, 0
        %v1391 = vsel %vm1383, %v1319, 0
        %v1392 = vsel %vm1384, %v1320, 0
        %v1393 = vsel %vm1385, %v1321, 0
        %v1394 = vsel %vm1386, %v1322, 0
        %v1395 = vsel %vm1387, %v1323, 0
        %v1396 = vsel %vm1388, %v1324, 0
        %v1397 = vrot.slane %v515, 1
        %v1398 = vrot.slane %v516, 1
        %v1399 = vrot.slane %v517, 1
        %v1400 = vrot.slane %v518, 1
        %v1401 = vrot.slane %v519, 1
        %v1402 = vrot.slane %v520, 1
        %v1403 = vrot.slane %v521, 1
        %v1404 = vrot.slane %v522, 1
        %v1405 = vrot.slane %v523, 1
        %v1406 = vrot.slane %v524, 1
        %v1407 = vrot.slane %v525, 1
        %v1408 = vrot.slane %v526, 1
        %v1409 = vrot.slane %v527, 1
        %v1410 = vrot.slane %v528, 1
        %v1411 = vrot.slane %v529, 1
        %v1412 = vrot.slane %v530, 1
        %vm1413 = vcmp.lt.s32.totalorder %v532, 7
        %v1414 = vsel %vm1413, %v1411, %v1412
        %v1415 = vsel %vm1413, %v1410, %v1411
        %v1416 = vsel %vm1413, %v1409, %v1410
        %v1417 = vsel %vm1413, %v1408, %v1409
        %v1418 = vsel %vm1413, %v1407, %v1408
        %v1419 = vsel %vm1413, %v1406, %v1407
        %v1420 = vsel %vm1413, %v1405, %v1406
        %v1421 = vsel %vm1413, %v1404, %v1405
        %v1422 = vsel %vm1413, %v1403, %v1404
        %v1423 = vsel %vm1413, %v1402, %v1403
        %v1424 = vsel %vm1413, %v1401, %v1402
        %v1425 = vsel %vm1413, %v1400, %v1401
        %v1426 = vsel %vm1413, %v1399, %v1400
        %v1427 = vsel %vm1413, %v1398, %v1399
        %v1428 = vsel %vm1413, %v1397, %v1398
        %v1429 = vsel %vm1413, %v1412, %v1397
        %v1430 = vadd.s32 %v724, 4294967289
        %v1431 = vadd.s32 %v725, 4294967289
        %v1432 = vadd.s32 %v726, 4294967289
        %v1433 = vadd.s32 %v727, 4294967289
        %v1434 = vadd.s32 %v728, 4294967289
        %v1435 = vadd.s32 %v729, 4294967289
        %v1436 = vadd.s32 %v730, 4294967289
        %v1437 = vadd.s32 %v731, 4294967289
        %v1438 = vadd.s32 %v732, 4294967289
        %v1439 = vadd.s32 %v733, 4294967289
        %v1440 = vadd.s32 %v734, 4294967289
        %v1441 = vadd.s32 %v735, 4294967289
        %v1442 = vadd.s32 %v736, 4294967289
        %v1443 = vadd.s32 %v737, 4294967289
        %v1444 = vadd.s32 %v738, 4294967289
        %v1445 = vadd.s32 %v739, 4294967289
        %vm1446 = vcmp.ge.s32.totalorder %v1430, 0
        %vm1447 = vcmp.ge.s32.totalorder %v1431, 0
        %vm1448 = vcmp.ge.s32.totalorder %v1432, 0
        %vm1449 = vcmp.ge.s32.totalorder %v1433, 0
        %vm1450 = vcmp.ge.s32.totalorder %v1434, 0
        %vm1451 = vcmp.ge.s32.totalorder %v1435, 0
        %vm1452 = vcmp.ge.s32.totalorder %v1436, 0
        %vm1453 = vcmp.ge.s32.totalorder %v1437, 0
        %vm1454 = vcmp.ge.s32.totalorder %v1438, 0
        %vm1455 = vcmp.ge.s32.totalorder %v1439, 0
        %vm1456 = vcmp.ge.s32.totalorder %v1440, 0
        %vm1457 = vcmp.ge.s32.totalorder %v1441, 0
        %vm1458 = vcmp.ge.s32.totalorder %v1442, 0
        %vm1459 = vcmp.ge.s32.totalorder %v1443, 0
        %vm1460 = vcmp.ge.s32.totalorder %v1444, 0
        %vm1461 = vcmp.ge.s32.totalorder %v1445, 0
        %vm1462 = vcmp.lt.s32.totalorder %v1430, 64
        %vm1463 = vcmp.lt.s32.totalorder %v1431, 64
        %vm1464 = vcmp.lt.s32.totalorder %v1432, 64
        %vm1465 = vcmp.lt.s32.totalorder %v1433, 64
        %vm1466 = vcmp.lt.s32.totalorder %v1434, 64
        %vm1467 = vcmp.lt.s32.totalorder %v1435, 64
        %vm1468 = vcmp.lt.s32.totalorder %v1436, 64
        %vm1469 = vcmp.lt.s32.totalorder %v1437, 64
        %vm1470 = vcmp.lt.s32.totalorder %v1438, 64
        %vm1471 = vcmp.lt.s32.totalorder %v1439, 64
        %vm1472 = vcmp.lt.s32.totalorder %v1440, 64
        %vm1473 = vcmp.lt.s32.totalorder %v1441, 64
        %vm1474 = vcmp.lt.s32.totalorder %v1442, 64
        %vm1475 = vcmp.lt.s32.totalorder %v1443, 64
        %vm1476 = vcmp.lt.s32.totalorder %v1444, 64
        %vm1477 = vcmp.lt.s32.totalorder %v1445, 64
        %vm1478 = vmand %vm1446, %vm1462
        %vm1479 = vmand %vm1447, %vm1463
        %vm1480 = vmand %vm1448, %vm1464
        %vm1481 = vmand %vm1449, %vm1465
        %vm1482 = vmand %vm1450, %vm1466
        %vm1483 = vmand %vm1451, %vm1467
        %vm1484 = vmand %vm1452, %vm1468
        %vm1485 = vmand %vm1453, %vm1469
        %vm1486 = vmand %vm1454, %vm1470
        %vm1487 = vmand %vm1455, %vm1471
        %vm1488 = vmand %vm1456, %vm1472
        %vm1489 = vmand %vm1457, %vm1473
        %vm1490 = vmand %vm1458, %vm1474
        %vm1491 = vmand %vm1459, %vm1475
        %vm1492 = vmand %vm1460, %vm1476
        %vm1493 = vmand %vm1461, %vm1477
        %v1494 = vadd.s32 %v916, 1
        %v1495 = vadd.s32 %v917, 1
        %v1496 = vadd.s32 %v918, 1
        %v1497 = vadd.s32 %v919, 1
        %v1498 = vadd.s32 %v920, 1
        %v1499 = vadd.s32 %v921, 1
        %v1500 = vadd.s32 %v922, 1
        %v1501 = vadd.s32 %v923, 1
        %v1502 = vadd.s32 %v924, 1
        %v1503 = vadd.s32 %v925, 1
        %v1504 = vadd.s32 %v926, 1
        %v1505 = vadd.s32 %v927, 1
        %v1506 = vadd.s32 %v928, 1
        %v1507 = vadd.s32 %v929, 1
        %v1508 = vadd.s32 %v930, 1
        %v1509 = vadd.s32 %v931, 1
        %vm1510 = vcmp.ge.s32.totalorder %v1494, 0
        %vm1511 = vcmp.ge.s32.totalorder %v1495, 0
        %vm1512 = vcmp.ge.s32.totalorder %v1496, 0
        %vm1513 = vcmp.ge.s32.totalorder %v1497, 0
        %vm1514 = vcmp.ge.s32.totalorder %v1498, 0
        %vm1515 = vcmp.ge.s32.totalorder %v1499, 0
        %vm1516 = vcmp.ge.s32.totalorder %v1500, 0
        %vm1517 = vcmp.ge.s32.totalorder %v1501, 0
        %vm1518 = vcmp.ge.s32.totalorder %v1502, 0
        %vm1519 = vcmp.ge.s32.totalorder %v1503, 0
        %vm1520 = vcmp.ge.s32.totalorder %v1504, 0
        %vm1521 = vcmp.ge.s32.totalorder %v1505, 0
        %vm1522 = vcmp.ge.s32.totalorder %v1506, 0
        %vm1523 = vcmp.ge.s32.totalorder %v1507, 0
        %vm1524 = vcmp.ge.s32.totalorder %v1508, 0
        %vm1525 = vcmp.ge.s32.totalorder %v1509, 0
        %vm1526 = vmand %vm1478, %vm1510
        %vm1527 = vmand %vm1479, %vm1511
        %vm1528 = vmand %vm1480, %vm1512
        %vm1529 = vmand %vm1481, %vm1513
        %vm1530 = vmand %vm1482, %vm1514
        %vm1531 = vmand %vm1483, %vm1515
        %vm1532 = vmand %vm1484, %vm1516
        %vm1533 = vmand %vm1485, %vm1517
        %vm1534 = vmand %vm1486, %vm1518
        %vm1535 = vmand %vm1487, %vm1519
        %vm1536 = vmand %vm1488, %vm1520
        %vm1537 = vmand %vm1489, %vm1521
        %vm1538 = vmand %vm1490, %vm1522
        %vm1539 = vmand %vm1491, %vm1523
        %vm1540 = vmand %vm1492, %vm1524
        %vm1541 = vmand %vm1493, %vm1525
        %vm1542 = vcmp.lt.s32.totalorder %v1494, 8
        %vm1543 = vcmp.lt.s32.totalorder %v1495, 8
        %vm1544 = vcmp.lt.s32.totalorder %v1496, 8
        %vm1545 = vcmp.lt.s32.totalorder %v1497, 8
        %vm1546 = vcmp.lt.s32.totalorder %v1498, 8
        %vm1547 = vcmp.lt.s32.totalorder %v1499, 8
        %vm1548 = vcmp.lt.s32.totalorder %v1500, 8
        %vm1549 = vcmp.lt.s32.totalorder %v1501, 8
        %vm1550 = vcmp.lt.s32.totalorder %v1502, 8
        %vm1551 = vcmp.lt.s32.totalorder %v1503, 8
        %vm1552 = vcmp.lt.s32.totalorder %v1504, 8
        %vm1553 = vcmp.lt.s32.totalorder %v1505, 8
        %vm1554 = vcmp.lt.s32.totalorder %v1506, 8
        %vm1555 = vcmp.lt.s32.totalorder %v1507, 8
        %vm1556 = vcmp.lt.s32.totalorder %v1508, 8
        %vm1557 = vcmp.lt.s32.totalorder %v1509, 8
        %vm1558 = vmand %vm1526, %vm1542
        %vm1559 = vmand %vm1527, %vm1543
        %vm1560 = vmand %vm1528, %vm1544
        %vm1561 = vmand %vm1529, %vm1545
        %vm1562 = vmand %vm1530, %vm1546
        %vm1563 = vmand %vm1531, %vm1547
        %vm1564 = vmand %vm1532, %vm1548
        %vm1565 = vmand %vm1533, %vm1549
        %vm1566 = vmand %vm1534, %vm1550
        %vm1567 = vmand %vm1535, %vm1551
        %vm1568 = vmand %vm1536, %vm1552
        %vm1569 = vmand %vm1537, %vm1553
        %vm1570 = vmand %vm1538, %vm1554
        %vm1571 = vmand %vm1539, %vm1555
        %vm1572 = vmand %vm1540, %vm1556
        %vm1573 = vmand %vm1541, %vm1557
        %v1574 = vpack.c.bf16 %v1428, %v1429
        %v1575 = vpack.c.bf16 %v1426, %v1427
        %v1576 = vpack.c.bf16 %v1424, %v1425
        %v1577 = vpack.c.bf16 %v1422, %v1423
        %v1578 = vpack.c.bf16 %v1420, %v1421
        %v1579 = vpack.c.bf16 %v1418, %v1419
        %v1580 = vpack.c.bf16 %v1416, %v1417
        %v1581 = vpack.c.bf16 %v1414, %v1415
        %vm1582 = vmpackc.low %vm1558, %vm1558
        %vm1583 = vmpackc.low %vm1559, %vm1559
        %vm1584 = vmpackc.low %vm1560, %vm1560
        %vm1585 = vmpackc.low %vm1561, %vm1561
        %vm1586 = vmpackc.low %vm1562, %vm1562
        %vm1587 = vmpackc.low %vm1563, %vm1563
        %vm1588 = vmpackc.low %vm1564, %vm1564
        %vm1589 = vmpackc.low %vm1565, %vm1565
        %vm1590 = vmpackc.low %vm1566, %vm1566
        %vm1591 = vmpackc.low %vm1567, %vm1567
        %vm1592 = vmpackc.low %vm1568, %vm1568
        %vm1593 = vmpackc.low %vm1569, %vm1569
        %vm1594 = vmpackc.low %vm1570, %vm1570
        %vm1595 = vmpackc.low %vm1571, %vm1571
        %vm1596 = vmpackc.low %vm1572, %vm1572
        %vm1597 = vmpackc.low %vm1573, %vm1573
        %v1598 = vsel %vm1582, 65537, 0
        %v1599 = vsel %vm1583, 65537, 0
        %v1600 = vsel %vm1584, 65537, 0
        %v1601 = vsel %vm1585, 65537, 0
        %v1602 = vsel %vm1586, 65537, 0
        %v1603 = vsel %vm1587, 65537, 0
        %v1604 = vsel %vm1588, 65537, 0
        %v1605 = vsel %vm1589, 65537, 0
        %v1606 = vsel %vm1590, 65537, 0
        %v1607 = vsel %vm1591, 65537, 0
        %v1608 = vsel %vm1592, 65537, 0
        %v1609 = vsel %vm1593, 65537, 0
        %v1610 = vsel %vm1594, 65537, 0
        %v1611 = vsel %vm1595, 65537, 0
        %v1612 = vsel %vm1596, 65537, 0
        %v1613 = vsel %vm1597, 65537, 0
        %v1614 = vunpack.c.l.b16 %v1598
        %v1615 = vunpack.c.l.b16 %v1599
        %v1616 = vunpack.c.l.b16 %v1600
        %v1617 = vunpack.c.l.b16 %v1601
        %v1618 = vunpack.c.l.b16 %v1602
        %v1619 = vunpack.c.l.b16 %v1603
        %v1620 = vunpack.c.l.b16 %v1604
        %v1621 = vunpack.c.l.b16 %v1605
        %v1622 = vunpack.c.l.b16 %v1606
        %v1623 = vunpack.c.l.b16 %v1607
        %v1624 = vunpack.c.l.b16 %v1608
        %v1625 = vunpack.c.l.b16 %v1609
        %v1626 = vunpack.c.l.b16 %v1610
        %v1627 = vunpack.c.l.b16 %v1611
        %v1628 = vunpack.c.l.b16 %v1612
        %v1629 = vunpack.c.l.b16 %v1613
        %v1630 = vpack.c.b16 %v1615, %v1614
        %v1631 = vpack.c.b16 %v1617, %v1616
        %v1632 = vpack.c.b16 %v1619, %v1618
        %v1633 = vpack.c.b16 %v1621, %v1620
        %v1634 = vpack.c.b16 %v1623, %v1622
        %v1635 = vpack.c.b16 %v1625, %v1624
        %v1636 = vpack.c.b16 %v1627, %v1626
        %v1637 = vpack.c.b16 %v1629, %v1628
        %vm1638 = vcmp.ne.s16.totalorder %v1630, 0
        %vm1639 = vcmp.ne.s16.totalorder %v1631, 0
        %vm1640 = vcmp.ne.s16.totalorder %v1632, 0
        %vm1641 = vcmp.ne.s16.totalorder %v1633, 0
        %vm1642 = vcmp.ne.s16.totalorder %v1634, 0
        %vm1643 = vcmp.ne.s16.totalorder %v1635, 0
        %vm1644 = vcmp.ne.s16.totalorder %v1636, 0
        %vm1645 = vcmp.ne.s16.totalorder %v1637, 0
        %v1646 = vsel %vm1638, %v1574, 0
        %v1647 = vsel %vm1639, %v1575, 0
        %v1648 = vsel %vm1640, %v1576, 0
        %v1649 = vsel %vm1641, %v1577, 0
        %v1650 = vsel %vm1642, %v1578, 0
        %v1651 = vsel %vm1643, %v1579, 0
        %v1652 = vsel %vm1644, %v1580, 0
        %v1653 = vsel %vm1645, %v1581, 0
        %v1654 = vadd.s32 %v724, 4294967295
        %v1655 = vadd.s32 %v725, 4294967295
        %v1656 = vadd.s32 %v726, 4294967295
        %v1657 = vadd.s32 %v727, 4294967295
        %v1658 = vadd.s32 %v728, 4294967295
        %v1659 = vadd.s32 %v729, 4294967295
        %v1660 = vadd.s32 %v730, 4294967295
        %v1661 = vadd.s32 %v731, 4294967295
        %v1662 = vadd.s32 %v732, 4294967295
        %v1663 = vadd.s32 %v733, 4294967295
        %v1664 = vadd.s32 %v734, 4294967295
        %v1665 = vadd.s32 %v735, 4294967295
        %v1666 = vadd.s32 %v736, 4294967295
        %v1667 = vadd.s32 %v737, 4294967295
        %v1668 = vadd.s32 %v738, 4294967295
        %v1669 = vadd.s32 %v739, 4294967295
        %vm1670 = vcmp.ge.s32.totalorder %v1654, 0
        %vm1671 = vcmp.ge.s32.totalorder %v1655, 0
        %vm1672 = vcmp.ge.s32.totalorder %v1656, 0
        %vm1673 = vcmp.ge.s32.totalorder %v1657, 0
        %vm1674 = vcmp.ge.s32.totalorder %v1658, 0
        %vm1675 = vcmp.ge.s32.totalorder %v1659, 0
        %vm1676 = vcmp.ge.s32.totalorder %v1660, 0
        %vm1677 = vcmp.ge.s32.totalorder %v1661, 0
        %vm1678 = vcmp.ge.s32.totalorder %v1662, 0
        %vm1679 = vcmp.ge.s32.totalorder %v1663, 0
        %vm1680 = vcmp.ge.s32.totalorder %v1664, 0
        %vm1681 = vcmp.ge.s32.totalorder %v1665, 0
        %vm1682 = vcmp.ge.s32.totalorder %v1666, 0
        %vm1683 = vcmp.ge.s32.totalorder %v1667, 0
        %vm1684 = vcmp.ge.s32.totalorder %v1668, 0
        %vm1685 = vcmp.ge.s32.totalorder %v1669, 0
        %vm1686 = vcmp.lt.s32.totalorder %v1654, 64
        %vm1687 = vcmp.lt.s32.totalorder %v1655, 64
        %vm1688 = vcmp.lt.s32.totalorder %v1656, 64
        %vm1689 = vcmp.lt.s32.totalorder %v1657, 64
        %vm1690 = vcmp.lt.s32.totalorder %v1658, 64
        %vm1691 = vcmp.lt.s32.totalorder %v1659, 64
        %vm1692 = vcmp.lt.s32.totalorder %v1660, 64
        %vm1693 = vcmp.lt.s32.totalorder %v1661, 64
        %vm1694 = vcmp.lt.s32.totalorder %v1662, 64
        %vm1695 = vcmp.lt.s32.totalorder %v1663, 64
        %vm1696 = vcmp.lt.s32.totalorder %v1664, 64
        %vm1697 = vcmp.lt.s32.totalorder %v1665, 64
        %vm1698 = vcmp.lt.s32.totalorder %v1666, 64
        %vm1699 = vcmp.lt.s32.totalorder %v1667, 64
        %vm1700 = vcmp.lt.s32.totalorder %v1668, 64
        %vm1701 = vcmp.lt.s32.totalorder %v1669, 64
        %vm1702 = vmand %vm1670, %vm1686
        %vm1703 = vmand %vm1671, %vm1687
        %vm1704 = vmand %vm1672, %vm1688
        %vm1705 = vmand %vm1673, %vm1689
        %vm1706 = vmand %vm1674, %vm1690
        %vm1707 = vmand %vm1675, %vm1691
        %vm1708 = vmand %vm1676, %vm1692
        %vm1709 = vmand %vm1677, %vm1693
        %vm1710 = vmand %vm1678, %vm1694
        %vm1711 = vmand %vm1679, %vm1695
        %vm1712 = vmand %vm1680, %vm1696
        %vm1713 = vmand %vm1681, %vm1697
        %vm1714 = vmand %vm1682, %vm1698
        %vm1715 = vmand %vm1683, %vm1699
        %vm1716 = vmand %vm1684, %vm1700
        %vm1717 = vmand %vm1685, %vm1701
        %vm1718 = vmand %vm1702, %vm1045
        %vm1719 = vmand %vm1703, %vm1046
        %vm1720 = vmand %vm1704, %vm1047
        %vm1721 = vmand %vm1705, %vm1048
        %vm1722 = vmand %vm1706, %vm1049
        %vm1723 = vmand %vm1707, %vm1050
        %vm1724 = vmand %vm1708, %vm1051
        %vm1725 = vmand %vm1709, %vm1052
        %vm1726 = vmand %vm1710, %vm1053
        %vm1727 = vmand %vm1711, %vm1054
        %vm1728 = vmand %vm1712, %vm1055
        %vm1729 = vmand %vm1713, %vm1056
        %vm1730 = vmand %vm1714, %vm1057
        %vm1731 = vmand %vm1715, %vm1058
        %vm1732 = vmand %vm1716, %vm1059
        %vm1733 = vmand %vm1717, %vm1060
        %vm1734 = vmand %vm1718, %vm1077
        %vm1735 = vmand %vm1719, %vm1078
        %vm1736 = vmand %vm1720, %vm1079
        %vm1737 = vmand %vm1721, %vm1080
        %vm1738 = vmand %vm1722, %vm1081
        %vm1739 = vmand %vm1723, %vm1082
        %vm1740 = vmand %vm1724, %vm1083
        %vm1741 = vmand %vm1725, %vm1084
        %vm1742 = vmand %vm1726, %vm1085
        %vm1743 = vmand %vm1727, %vm1086
        %vm1744 = vmand %vm1728, %vm1087
        %vm1745 = vmand %vm1729, %vm1088
        %vm1746 = vmand %vm1730, %vm1089
        %vm1747 = vmand %vm1731, %vm1090
        %vm1748 = vmand %vm1732, %vm1091
        %vm1749 = vmand %vm1733, %vm1092
        %v1750 = vpack.c.bf16 %v963, %v964
        %v1751 = vpack.c.bf16 %v961, %v962
        %v1752 = vpack.c.bf16 %v959, %v960
        %v1753 = vpack.c.bf16 %v957, %v958
        %v1754 = vpack.c.bf16 %v955, %v956
        %v1755 = vpack.c.bf16 %v953, %v954
        %v1756 = vpack.c.bf16 %v951, %v952
        %v1757 = vpack.c.bf16 %v949, %v950
        %vm1758 = vmpackc.low %vm1734, %vm1734
        %vm1759 = vmpackc.low %vm1735, %vm1735
        %vm1760 = vmpackc.low %vm1736, %vm1736
        %vm1761 = vmpackc.low %vm1737, %vm1737
        %vm1762 = vmpackc.low %vm1738, %vm1738
        %vm1763 = vmpackc.low %vm1739, %vm1739
        %vm1764 = vmpackc.low %vm1740, %vm1740
        %vm1765 = vmpackc.low %vm1741, %vm1741
        %vm1766 = vmpackc.low %vm1742, %vm1742
        %vm1767 = vmpackc.low %vm1743, %vm1743
        %vm1768 = vmpackc.low %vm1744, %vm1744
        %vm1769 = vmpackc.low %vm1745, %vm1745
        %vm1770 = vmpackc.low %vm1746, %vm1746
        %vm1771 = vmpackc.low %vm1747, %vm1747
        %vm1772 = vmpackc.low %vm1748, %vm1748
        %vm1773 = vmpackc.low %vm1749, %vm1749
        %v1774 = vsel %vm1758, 65537, 0
        %v1775 = vsel %vm1759, 65537, 0
        %v1776 = vsel %vm1760, 65537, 0
        %v1777 = vsel %vm1761, 65537, 0
        %v1778 = vsel %vm1762, 65537, 0
        %v1779 = vsel %vm1763, 65537, 0
        %v1780 = vsel %vm1764, 65537, 0
        %v1781 = vsel %vm1765, 65537, 0
        %v1782 = vsel %vm1766, 65537, 0
        %v1783 = vsel %vm1767, 65537, 0
        %v1784 = vsel %vm1768, 65537, 0
        %v1785 = vsel %vm1769, 65537, 0
        %v1786 = vsel %vm1770, 65537, 0
        %v1787 = vsel %vm1771, 65537, 0
        %v1788 = vsel %vm1772, 65537, 0
        %v1789 = vsel %vm1773, 65537, 0
        %v1790 = vunpack.c.l.b16 %v1774
        %v1791 = vunpack.c.l.b16 %v1775
        %v1792 = vunpack.c.l.b16 %v1776
        %v1793 = vunpack.c.l.b16 %v1777
        %v1794 = vunpack.c.l.b16 %v1778
        %v1795 = vunpack.c.l.b16 %v1779
        %v1796 = vunpack.c.l.b16 %v1780
        %v1797 = vunpack.c.l.b16 %v1781
        %v1798 = vunpack.c.l.b16 %v1782
        %v1799 = vunpack.c.l.b16 %v1783
        %v1800 = vunpack.c.l.b16 %v1784
        %v1801 = vunpack.c.l.b16 %v1785
        %v1802 = vunpack.c.l.b16 %v1786
        %v1803 = vunpack.c.l.b16 %v1787
        %v1804 = vunpack.c.l.b16 %v1788
        %v1805 = vunpack.c.l.b16 %v1789
        %v1806 = vpack.c.b16 %v1791, %v1790
        %v1807 = vpack.c.b16 %v1793, %v1792
        %v1808 = vpack.c.b16 %v1795, %v1794
        %v1809 = vpack.c.b16 %v1797, %v1796
        %v1810 = vpack.c.b16 %v1799, %v1798
        %v1811 = vpack.c.b16 %v1801, %v1800
        %v1812 = vpack.c.b16 %v1803, %v1802
        %v1813 = vpack.c.b16 %v1805, %v1804
        %vm1814 = vcmp.ne.s16.totalorder %v1806, 0
        %vm1815 = vcmp.ne.s16.totalorder %v1807, 0
        %vm1816 = vcmp.ne.s16.totalorder %v1808, 0
        %vm1817 = vcmp.ne.s16.totalorder %v1809, 0
        %vm1818 = vcmp.ne.s16.totalorder %v1810, 0
        %vm1819 = vcmp.ne.s16.totalorder %v1811, 0
        %vm1820 = vcmp.ne.s16.totalorder %v1812, 0
        %vm1821 = vcmp.ne.s16.totalorder %v1813, 0
        %v1822 = vsel %vm1814, %v1750, 0
        %v1823 = vsel %vm1815, %v1751, 0
        %v1824 = vsel %vm1816, %v1752, 0
        %v1825 = vsel %vm1817, %v1753, 0
        %v1826 = vsel %vm1818, %v1754, 0
        %v1827 = vsel %vm1819, %v1755, 0
        %v1828 = vsel %vm1820, %v1756, 0
        %v1829 = vsel %vm1821, %v1757, 0
        %v1830 = vpack.c.bf16 %v516, %v515
        %v1831 = vpack.c.bf16 %v518, %v517
        %v1832 = vpack.c.bf16 %v520, %v519
        %v1833 = vpack.c.bf16 %v522, %v521
        %v1834 = vpack.c.bf16 %v524, %v523
        %v1835 = vpack.c.bf16 %v526, %v525
        %v1836 = vpack.c.bf16 %v528, %v527
        %v1837 = vpack.c.bf16 %v530, %v529
        %v1838 = vadd.s32 %v724, 1
        %v1839 = vadd.s32 %v725, 1
        %v1840 = vadd.s32 %v726, 1
        %v1841 = vadd.s32 %v727, 1
        %v1842 = vadd.s32 %v728, 1
        %v1843 = vadd.s32 %v729, 1
        %v1844 = vadd.s32 %v730, 1
        %v1845 = vadd.s32 %v731, 1
        %v1846 = vadd.s32 %v732, 1
        %v1847 = vadd.s32 %v733, 1
        %v1848 = vadd.s32 %v734, 1
        %v1849 = vadd.s32 %v735, 1
        %v1850 = vadd.s32 %v736, 1
        %v1851 = vadd.s32 %v737, 1
        %v1852 = vadd.s32 %v738, 1
        %v1853 = vadd.s32 %v739, 1
        %vm1854 = vcmp.ge.s32.totalorder %v1838, 0
        %vm1855 = vcmp.ge.s32.totalorder %v1839, 0
        %vm1856 = vcmp.ge.s32.totalorder %v1840, 0
        %vm1857 = vcmp.ge.s32.totalorder %v1841, 0
        %vm1858 = vcmp.ge.s32.totalorder %v1842, 0
        %vm1859 = vcmp.ge.s32.totalorder %v1843, 0
        %vm1860 = vcmp.ge.s32.totalorder %v1844, 0
        %vm1861 = vcmp.ge.s32.totalorder %v1845, 0
        %vm1862 = vcmp.ge.s32.totalorder %v1846, 0
        %vm1863 = vcmp.ge.s32.totalorder %v1847, 0
        %vm1864 = vcmp.ge.s32.totalorder %v1848, 0
        %vm1865 = vcmp.ge.s32.totalorder %v1849, 0
        %vm1866 = vcmp.ge.s32.totalorder %v1850, 0
        %vm1867 = vcmp.ge.s32.totalorder %v1851, 0
        %vm1868 = vcmp.ge.s32.totalorder %v1852, 0
        %vm1869 = vcmp.ge.s32.totalorder %v1853, 0
        %vm1870 = vcmp.lt.s32.totalorder %v1838, 64
        %vm1871 = vcmp.lt.s32.totalorder %v1839, 64
        %vm1872 = vcmp.lt.s32.totalorder %v1840, 64
        %vm1873 = vcmp.lt.s32.totalorder %v1841, 64
        %vm1874 = vcmp.lt.s32.totalorder %v1842, 64
        %vm1875 = vcmp.lt.s32.totalorder %v1843, 64
        %vm1876 = vcmp.lt.s32.totalorder %v1844, 64
        %vm1877 = vcmp.lt.s32.totalorder %v1845, 64
        %vm1878 = vcmp.lt.s32.totalorder %v1846, 64
        %vm1879 = vcmp.lt.s32.totalorder %v1847, 64
        %vm1880 = vcmp.lt.s32.totalorder %v1848, 64
        %vm1881 = vcmp.lt.s32.totalorder %v1849, 64
        %vm1882 = vcmp.lt.s32.totalorder %v1850, 64
        %vm1883 = vcmp.lt.s32.totalorder %v1851, 64
        %vm1884 = vcmp.lt.s32.totalorder %v1852, 64
        %vm1885 = vcmp.lt.s32.totalorder %v1853, 64
        %vm1886 = vmand %vm1854, %vm1870
        %vm1887 = vmand %vm1855, %vm1871
        %vm1888 = vmand %vm1856, %vm1872
        %vm1889 = vmand %vm1857, %vm1873
        %vm1890 = vmand %vm1858, %vm1874
        %vm1891 = vmand %vm1859, %vm1875
        %vm1892 = vmand %vm1860, %vm1876
        %vm1893 = vmand %vm1861, %vm1877
        %vm1894 = vmand %vm1862, %vm1878
        %vm1895 = vmand %vm1863, %vm1879
        %vm1896 = vmand %vm1864, %vm1880
        %vm1897 = vmand %vm1865, %vm1881
        %vm1898 = vmand %vm1866, %vm1882
        %vm1899 = vmand %vm1867, %vm1883
        %vm1900 = vmand %vm1868, %vm1884
        %vm1901 = vmand %vm1869, %vm1885
        %vm1902 = vmand %vm1886, %vm1510
        %vm1903 = vmand %vm1887, %vm1511
        %vm1904 = vmand %vm1888, %vm1512
        %vm1905 = vmand %vm1889, %vm1513
        %vm1906 = vmand %vm1890, %vm1514
        %vm1907 = vmand %vm1891, %vm1515
        %vm1908 = vmand %vm1892, %vm1516
        %vm1909 = vmand %vm1893, %vm1517
        %vm1910 = vmand %vm1894, %vm1518
        %vm1911 = vmand %vm1895, %vm1519
        %vm1912 = vmand %vm1896, %vm1520
        %vm1913 = vmand %vm1897, %vm1521
        %vm1914 = vmand %vm1898, %vm1522
        %vm1915 = vmand %vm1899, %vm1523
        %vm1916 = vmand %vm1900, %vm1524
        %vm1917 = vmand %vm1901, %vm1525
        %vm1918 = vmand %vm1902, %vm1542
        %vm1919 = vmand %vm1903, %vm1543
        %vm1920 = vmand %vm1904, %vm1544
        %vm1921 = vmand %vm1905, %vm1545
        %vm1922 = vmand %vm1906, %vm1546
        %vm1923 = vmand %vm1907, %vm1547
        %vm1924 = vmand %vm1908, %vm1548
        %vm1925 = vmand %vm1909, %vm1549
        %vm1926 = vmand %vm1910, %vm1550
        %vm1927 = vmand %vm1911, %vm1551
        %vm1928 = vmand %vm1912, %vm1552
        %vm1929 = vmand %vm1913, %vm1553
        %vm1930 = vmand %vm1914, %vm1554
        %vm1931 = vmand %vm1915, %vm1555
        %vm1932 = vmand %vm1916, %vm1556
        %vm1933 = vmand %vm1917, %vm1557
        %v1934 = vpack.c.bf16 %v1427, %v1428
        %v1935 = vpack.c.bf16 %v1425, %v1426
        %v1936 = vpack.c.bf16 %v1423, %v1424
        %v1937 = vpack.c.bf16 %v1421, %v1422
        %v1938 = vpack.c.bf16 %v1419, %v1420
        %v1939 = vpack.c.bf16 %v1417, %v1418
        %v1940 = vpack.c.bf16 %v1415, %v1416
        %v1941 = vpack.c.bf16 %v1429, %v1414
        %vm1942 = vmpackc.low %vm1918, %vm1918
        %vm1943 = vmpackc.low %vm1919, %vm1919
        %vm1944 = vmpackc.low %vm1920, %vm1920
        %vm1945 = vmpackc.low %vm1921, %vm1921
        %vm1946 = vmpackc.low %vm1922, %vm1922
        %vm1947 = vmpackc.low %vm1923, %vm1923
        %vm1948 = vmpackc.low %vm1924, %vm1924
        %vm1949 = vmpackc.low %vm1925, %vm1925
        %vm1950 = vmpackc.low %vm1926, %vm1926
        %vm1951 = vmpackc.low %vm1927, %vm1927
        %vm1952 = vmpackc.low %vm1928, %vm1928
        %vm1953 = vmpackc.low %vm1929, %vm1929
        %vm1954 = vmpackc.low %vm1930, %vm1930
        %vm1955 = vmpackc.low %vm1931, %vm1931
        %vm1956 = vmpackc.low %vm1932, %vm1932
        %vm1957 = vmpackc.low %vm1933, %vm1933
        %v1958 = vsel %vm1942, 65537, 0
        %v1959 = vsel %vm1943, 65537, 0
        %v1960 = vsel %vm1944, 65537, 0
        %v1961 = vsel %vm1945, 65537, 0
        %v1962 = vsel %vm1946, 65537, 0
        %v1963 = vsel %vm1947, 65537, 0
        %v1964 = vsel %vm1948, 65537, 0
        %v1965 = vsel %vm1949, 65537, 0
        %v1966 = vsel %vm1950, 65537, 0
        %v1967 = vsel %vm1951, 65537, 0
        %v1968 = vsel %vm1952, 65537, 0
        %v1969 = vsel %vm1953, 65537, 0
        %v1970 = vsel %vm1954, 65537, 0
        %v1971 = vsel %vm1955, 65537, 0
        %v1972 = vsel %vm1956, 65537, 0
        %v1973 = vsel %vm1957, 65537, 0
        %v1974 = vunpack.c.l.b16 %v1958
        %v1975 = vunpack.c.l.b16 %v1959
        %v1976 = vunpack.c.l.b16 %v1960
        %v1977 = vunpack.c.l.b16 %v1961
        %v1978 = vunpack.c.l.b16 %v1962
        %v1979 = vunpack.c.l.b16 %v1963
        %v1980 = vunpack.c.l.b16 %v1964
        %v1981 = vunpack.c.l.b16 %v1965
        %v1982 = vunpack.c.l.b16 %v1966
        %v1983 = vunpack.c.l.b16 %v1967
        %v1984 = vunpack.c.l.b16 %v1968
        %v1985 = vunpack.c.l.b16 %v1969
        %v1986 = vunpack.c.l.b16 %v1970
        %v1987 = vunpack.c.l.b16 %v1971
        %v1988 = vunpack.c.l.b16 %v1972
        %v1989 = vunpack.c.l.b16 %v1973
        %v1990 = vpack.c.b16 %v1975, %v1974
        %v1991 = vpack.c.b16 %v1977, %v1976
        %v1992 = vpack.c.b16 %v1979, %v1978
        %v1993 = vpack.c.b16 %v1981, %v1980
        %v1994 = vpack.c.b16 %v1983, %v1982
        %v1995 = vpack.c.b16 %v1985, %v1984
        %v1996 = vpack.c.b16 %v1987, %v1986
        %v1997 = vpack.c.b16 %v1989, %v1988
        %vm1998 = vcmp.ne.s16.totalorder %v1990, 0
        %vm1999 = vcmp.ne.s16.totalorder %v1991, 0
        %vm2000 = vcmp.ne.s16.totalorder %v1992, 0
        %vm2001 = vcmp.ne.s16.totalorder %v1993, 0
        %vm2002 = vcmp.ne.s16.totalorder %v1994, 0
        %vm2003 = vcmp.ne.s16.totalorder %v1995, 0
        %vm2004 = vcmp.ne.s16.totalorder %v1996, 0
        %vm2005 = vcmp.ne.s16.totalorder %v1997, 0
        %v2006 = vsel %vm1998, %v1934, 0
        %v2007 = vsel %vm1999, %v1935, 0
        %v2008 = vsel %vm2000, %v1936, 0
        %v2009 = vsel %vm2001, %v1937, 0
        %v2010 = vsel %vm2002, %v1938, 0
        %v2011 = vsel %vm2003, %v1939, 0
        %v2012 = vsel %vm2004, %v1940, 0
        %v2013 = vsel %vm2005, %v1941, 0
        %v2014 = vadd.s32 %v724, 7
        %v2015 = vadd.s32 %v725, 7
        %v2016 = vadd.s32 %v726, 7
        %v2017 = vadd.s32 %v727, 7
        %v2018 = vadd.s32 %v728, 7
        %v2019 = vadd.s32 %v729, 7
        %v2020 = vadd.s32 %v730, 7
        %v2021 = vadd.s32 %v731, 7
        %v2022 = vadd.s32 %v732, 7
        %v2023 = vadd.s32 %v733, 7
        %v2024 = vadd.s32 %v734, 7
        %v2025 = vadd.s32 %v735, 7
        %v2026 = vadd.s32 %v736, 7
        %v2027 = vadd.s32 %v737, 7
        %v2028 = vadd.s32 %v738, 7
        %v2029 = vadd.s32 %v739, 7
        %vm2030 = vcmp.ge.s32.totalorder %v2014, 0
        %vm2031 = vcmp.ge.s32.totalorder %v2015, 0
        %vm2032 = vcmp.ge.s32.totalorder %v2016, 0
        %vm2033 = vcmp.ge.s32.totalorder %v2017, 0
        %vm2034 = vcmp.ge.s32.totalorder %v2018, 0
        %vm2035 = vcmp.ge.s32.totalorder %v2019, 0
        %vm2036 = vcmp.ge.s32.totalorder %v2020, 0
        %vm2037 = vcmp.ge.s32.totalorder %v2021, 0
        %vm2038 = vcmp.ge.s32.totalorder %v2022, 0
        %vm2039 = vcmp.ge.s32.totalorder %v2023, 0
        %vm2040 = vcmp.ge.s32.totalorder %v2024, 0
        %vm2041 = vcmp.ge.s32.totalorder %v2025, 0
        %vm2042 = vcmp.ge.s32.totalorder %v2026, 0
        %vm2043 = vcmp.ge.s32.totalorder %v2027, 0
        %vm2044 = vcmp.ge.s32.totalorder %v2028, 0
        %vm2045 = vcmp.ge.s32.totalorder %v2029, 0
        %vm2046 = vcmp.lt.s32.totalorder %v2014, 64
        %vm2047 = vcmp.lt.s32.totalorder %v2015, 64
        %vm2048 = vcmp.lt.s32.totalorder %v2016, 64
        %vm2049 = vcmp.lt.s32.totalorder %v2017, 64
        %vm2050 = vcmp.lt.s32.totalorder %v2018, 64
        %vm2051 = vcmp.lt.s32.totalorder %v2019, 64
        %vm2052 = vcmp.lt.s32.totalorder %v2020, 64
        %vm2053 = vcmp.lt.s32.totalorder %v2021, 64
        %vm2054 = vcmp.lt.s32.totalorder %v2022, 64
        %vm2055 = vcmp.lt.s32.totalorder %v2023, 64
        %vm2056 = vcmp.lt.s32.totalorder %v2024, 64
        %vm2057 = vcmp.lt.s32.totalorder %v2025, 64
        %vm2058 = vcmp.lt.s32.totalorder %v2026, 64
        %vm2059 = vcmp.lt.s32.totalorder %v2027, 64
        %vm2060 = vcmp.lt.s32.totalorder %v2028, 64
        %vm2061 = vcmp.lt.s32.totalorder %v2029, 64
        %vm2062 = vmand %vm2030, %vm2046
        %vm2063 = vmand %vm2031, %vm2047
        %vm2064 = vmand %vm2032, %vm2048
        %vm2065 = vmand %vm2033, %vm2049
        %vm2066 = vmand %vm2034, %vm2050
        %vm2067 = vmand %vm2035, %vm2051
        %vm2068 = vmand %vm2036, %vm2052
        %vm2069 = vmand %vm2037, %vm2053
        %vm2070 = vmand %vm2038, %vm2054
        %vm2071 = vmand %vm2039, %vm2055
        %vm2072 = vmand %vm2040, %vm2056
        %vm2073 = vmand %vm2041, %vm2057
        %vm2074 = vmand %vm2042, %vm2058
        %vm2075 = vmand %vm2043, %vm2059
        %vm2076 = vmand %vm2044, %vm2060
        %vm2077 = vmand %vm2045, %vm2061
        %vm2078 = vmand %vm2062, %vm1045
        %vm2079 = vmand %vm2063, %vm1046
        %vm2080 = vmand %vm2064, %vm1047
        %vm2081 = vmand %vm2065, %vm1048
        %vm2082 = vmand %vm2066, %vm1049
        %vm2083 = vmand %vm2067, %vm1050
        %vm2084 = vmand %vm2068, %vm1051
        %vm2085 = vmand %vm2069, %vm1052
        %vm2086 = vmand %vm2070, %vm1053
        %vm2087 = vmand %vm2071, %vm1054
        %vm2088 = vmand %vm2072, %vm1055
        %vm2089 = vmand %vm2073, %vm1056
        %vm2090 = vmand %vm2074, %vm1057
        %vm2091 = vmand %vm2075, %vm1058
        %vm2092 = vmand %vm2076, %vm1059
        %vm2093 = vmand %vm2077, %vm1060
        %vm2094 = vmand %vm2078, %vm1077
        %vm2095 = vmand %vm2079, %vm1078
        %vm2096 = vmand %vm2080, %vm1079
        %vm2097 = vmand %vm2081, %vm1080
        %vm2098 = vmand %vm2082, %vm1081
        %vm2099 = vmand %vm2083, %vm1082
        %vm2100 = vmand %vm2084, %vm1083
        %vm2101 = vmand %vm2085, %vm1084
        %vm2102 = vmand %vm2086, %vm1085
        %vm2103 = vmand %vm2087, %vm1086
        %vm2104 = vmand %vm2088, %vm1087
        %vm2105 = vmand %vm2089, %vm1088
        %vm2106 = vmand %vm2090, %vm1089
        %vm2107 = vmand %vm2091, %vm1090
        %vm2108 = vmand %vm2092, %vm1091
        %vm2109 = vmand %vm2093, %vm1092
        %vm2110 = vmpackc.low %vm2094, %vm2094
        %vm2111 = vmpackc.low %vm2095, %vm2095
        %vm2112 = vmpackc.low %vm2096, %vm2096
        %vm2113 = vmpackc.low %vm2097, %vm2097
        %vm2114 = vmpackc.low %vm2098, %vm2098
        %vm2115 = vmpackc.low %vm2099, %vm2099
        %vm2116 = vmpackc.low %vm2100, %vm2100
        %vm2117 = vmpackc.low %vm2101, %vm2101
        %vm2118 = vmpackc.low %vm2102, %vm2102
        %vm2119 = vmpackc.low %vm2103, %vm2103
        %vm2120 = vmpackc.low %vm2104, %vm2104
        %vm2121 = vmpackc.low %vm2105, %vm2105
        %vm2122 = vmpackc.low %vm2106, %vm2106
        %vm2123 = vmpackc.low %vm2107, %vm2107
        %vm2124 = vmpackc.low %vm2108, %vm2108
        %vm2125 = vmpackc.low %vm2109, %vm2109
        %v2126 = vsel %vm2110, 65537, 0
        %v2127 = vsel %vm2111, 65537, 0
        %v2128 = vsel %vm2112, 65537, 0
        %v2129 = vsel %vm2113, 65537, 0
        %v2130 = vsel %vm2114, 65537, 0
        %v2131 = vsel %vm2115, 65537, 0
        %v2132 = vsel %vm2116, 65537, 0
        %v2133 = vsel %vm2117, 65537, 0
        %v2134 = vsel %vm2118, 65537, 0
        %v2135 = vsel %vm2119, 65537, 0
        %v2136 = vsel %vm2120, 65537, 0
        %v2137 = vsel %vm2121, 65537, 0
        %v2138 = vsel %vm2122, 65537, 0
        %v2139 = vsel %vm2123, 65537, 0
        %v2140 = vsel %vm2124, 65537, 0
        %v2141 = vsel %vm2125, 65537, 0
        %v2142 = vunpack.c.l.b16 %v2126
        %v2143 = vunpack.c.l.b16 %v2127
        %v2144 = vunpack.c.l.b16 %v2128
        %v2145 = vunpack.c.l.b16 %v2129
        %v2146 = vunpack.c.l.b16 %v2130
        %v2147 = vunpack.c.l.b16 %v2131
        %v2148 = vunpack.c.l.b16 %v2132
        %v2149 = vunpack.c.l.b16 %v2133
        %v2150 = vunpack.c.l.b16 %v2134
        %v2151 = vunpack.c.l.b16 %v2135
        %v2152 = vunpack.c.l.b16 %v2136
        %v2153 = vunpack.c.l.b16 %v2137
        %v2154 = vunpack.c.l.b16 %v2138
        %v2155 = vunpack.c.l.b16 %v2139
        %v2156 = vunpack.c.l.b16 %v2140
        %v2157 = vunpack.c.l.b16 %v2141
        %v2158 = vpack.c.b16 %v2143, %v2142
        %v2159 = vpack.c.b16 %v2145, %v2144
        %v2160 = vpack.c.b16 %v2147, %v2146
        %v2161 = vpack.c.b16 %v2149, %v2148
        %v2162 = vpack.c.b16 %v2151, %v2150
        %v2163 = vpack.c.b16 %v2153, %v2152
        %v2164 = vpack.c.b16 %v2155, %v2154
        %v2165 = vpack.c.b16 %v2157, %v2156
        %vm2166 = vcmp.ne.s16.totalorder %v2158, 0
        %vm2167 = vcmp.ne.s16.totalorder %v2159, 0
        %vm2168 = vcmp.ne.s16.totalorder %v2160, 0
        %vm2169 = vcmp.ne.s16.totalorder %v2161, 0
        %vm2170 = vcmp.ne.s16.totalorder %v2162, 0
        %vm2171 = vcmp.ne.s16.totalorder %v2163, 0
        %vm2172 = vcmp.ne.s16.totalorder %v2164, 0
        %vm2173 = vcmp.ne.s16.totalorder %v2165, 0
        %v2174 = vsel %vm2166, %v1110, 0
        %v2175 = vsel %vm2167, %v1111, 0
        %v2176 = vsel %vm2168, %v1112, 0
        %v2177 = vsel %vm2169, %v1113, 0
        %v2178 = vsel %vm2170, %v1114, 0
        %v2179 = vsel %vm2171, %v1115, 0
        %v2180 = vsel %vm2172, %v1116, 0
        %v2181 = vsel %vm2173, %v1109, 0
        %v2182 = vadd.s32 %v724, 8
        %v2183 = vadd.s32 %v725, 8
        %v2184 = vadd.s32 %v726, 8
        %v2185 = vadd.s32 %v727, 8
        %v2186 = vadd.s32 %v728, 8
        %v2187 = vadd.s32 %v729, 8
        %v2188 = vadd.s32 %v730, 8
        %v2189 = vadd.s32 %v731, 8
        %v2190 = vadd.s32 %v732, 8
        %v2191 = vadd.s32 %v733, 8
        %v2192 = vadd.s32 %v734, 8
        %v2193 = vadd.s32 %v735, 8
        %v2194 = vadd.s32 %v736, 8
        %v2195 = vadd.s32 %v737, 8
        %v2196 = vadd.s32 %v738, 8
        %v2197 = vadd.s32 %v739, 8
        %vm2198 = vcmp.ge.s32.totalorder %v2182, 0
        %vm2199 = vcmp.ge.s32.totalorder %v2183, 0
        %vm2200 = vcmp.ge.s32.totalorder %v2184, 0
        %vm2201 = vcmp.ge.s32.totalorder %v2185, 0
        %vm2202 = vcmp.ge.s32.totalorder %v2186, 0
        %vm2203 = vcmp.ge.s32.totalorder %v2187, 0
        %vm2204 = vcmp.ge.s32.totalorder %v2188, 0
        %vm2205 = vcmp.ge.s32.totalorder %v2189, 0
        %vm2206 = vcmp.ge.s32.totalorder %v2190, 0
        %vm2207 = vcmp.ge.s32.totalorder %v2191, 0
        %vm2208 = vcmp.ge.s32.totalorder %v2192, 0
        %vm2209 = vcmp.ge.s32.totalorder %v2193, 0
        %vm2210 = vcmp.ge.s32.totalorder %v2194, 0
        %vm2211 = vcmp.ge.s32.totalorder %v2195, 0
        %vm2212 = vcmp.ge.s32.totalorder %v2196, 0
        %vm2213 = vcmp.ge.s32.totalorder %v2197, 0
        %vm2214 = vcmp.lt.s32.totalorder %v2182, 64
        %vm2215 = vcmp.lt.s32.totalorder %v2183, 64
        %vm2216 = vcmp.lt.s32.totalorder %v2184, 64
        %vm2217 = vcmp.lt.s32.totalorder %v2185, 64
        %vm2218 = vcmp.lt.s32.totalorder %v2186, 64
        %vm2219 = vcmp.lt.s32.totalorder %v2187, 64
        %vm2220 = vcmp.lt.s32.totalorder %v2188, 64
        %vm2221 = vcmp.lt.s32.totalorder %v2189, 64
        %vm2222 = vcmp.lt.s32.totalorder %v2190, 64
        %vm2223 = vcmp.lt.s32.totalorder %v2191, 64
        %vm2224 = vcmp.lt.s32.totalorder %v2192, 64
        %vm2225 = vcmp.lt.s32.totalorder %v2193, 64
        %vm2226 = vcmp.lt.s32.totalorder %v2194, 64
        %vm2227 = vcmp.lt.s32.totalorder %v2195, 64
        %vm2228 = vcmp.lt.s32.totalorder %v2196, 64
        %vm2229 = vcmp.lt.s32.totalorder %v2197, 64
        %vm2230 = vmand %vm2198, %vm2214
        %vm2231 = vmand %vm2199, %vm2215
        %vm2232 = vmand %vm2200, %vm2216
        %vm2233 = vmand %vm2201, %vm2217
        %vm2234 = vmand %vm2202, %vm2218
        %vm2235 = vmand %vm2203, %vm2219
        %vm2236 = vmand %vm2204, %vm2220
        %vm2237 = vmand %vm2205, %vm2221
        %vm2238 = vmand %vm2206, %vm2222
        %vm2239 = vmand %vm2207, %vm2223
        %vm2240 = vmand %vm2208, %vm2224
        %vm2241 = vmand %vm2209, %vm2225
        %vm2242 = vmand %vm2210, %vm2226
        %vm2243 = vmand %vm2211, %vm2227
        %vm2244 = vmand %vm2212, %vm2228
        %vm2245 = vmand %vm2213, %vm2229
        %vm2246 = vmand %vm2230, %vm1253
        %vm2247 = vmand %vm2231, %vm1254
        %vm2248 = vmand %vm2232, %vm1255
        %vm2249 = vmand %vm2233, %vm1256
        %vm2250 = vmand %vm2234, %vm1257
        %vm2251 = vmand %vm2235, %vm1258
        %vm2252 = vmand %vm2236, %vm1259
        %vm2253 = vmand %vm2237, %vm1260
        %vm2254 = vmand %vm2238, %vm1261
        %vm2255 = vmand %vm2239, %vm1262
        %vm2256 = vmand %vm2240, %vm1263
        %vm2257 = vmand %vm2241, %vm1264
        %vm2258 = vmand %vm2242, %vm1265
        %vm2259 = vmand %vm2243, %vm1266
        %vm2260 = vmand %vm2244, %vm1267
        %vm2261 = vmand %vm2245, %vm1268
        %vm2262 = vmand %vm2246, %vm1285
        %vm2263 = vmand %vm2247, %vm1286
        %vm2264 = vmand %vm2248, %vm1287
        %vm2265 = vmand %vm2249, %vm1288
        %vm2266 = vmand %vm2250, %vm1289
        %vm2267 = vmand %vm2251, %vm1290
        %vm2268 = vmand %vm2252, %vm1291
        %vm2269 = vmand %vm2253, %vm1292
        %vm2270 = vmand %vm2254, %vm1293
        %vm2271 = vmand %vm2255, %vm1294
        %vm2272 = vmand %vm2256, %vm1295
        %vm2273 = vmand %vm2257, %vm1296
        %vm2274 = vmand %vm2258, %vm1297
        %vm2275 = vmand %vm2259, %vm1298
        %vm2276 = vmand %vm2260, %vm1299
        %vm2277 = vmand %vm2261, %vm1300
        %vm2278 = vmpackc.low %vm2262, %vm2262
        %vm2279 = vmpackc.low %vm2263, %vm2263
        %vm2280 = vmpackc.low %vm2264, %vm2264
        %vm2281 = vmpackc.low %vm2265, %vm2265
        %vm2282 = vmpackc.low %vm2266, %vm2266
        %vm2283 = vmpackc.low %vm2267, %vm2267
        %vm2284 = vmpackc.low %vm2268, %vm2268
        %vm2285 = vmpackc.low %vm2269, %vm2269
        %vm2286 = vmpackc.low %vm2270, %vm2270
        %vm2287 = vmpackc.low %vm2271, %vm2271
        %vm2288 = vmpackc.low %vm2272, %vm2272
        %vm2289 = vmpackc.low %vm2273, %vm2273
        %vm2290 = vmpackc.low %vm2274, %vm2274
        %vm2291 = vmpackc.low %vm2275, %vm2275
        %vm2292 = vmpackc.low %vm2276, %vm2276
        %vm2293 = vmpackc.low %vm2277, %vm2277
        %v2294 = vsel %vm2278, 65537, 0
        %v2295 = vsel %vm2279, 65537, 0
        %v2296 = vsel %vm2280, 65537, 0
        %v2297 = vsel %vm2281, 65537, 0
        %v2298 = vsel %vm2282, 65537, 0
        %v2299 = vsel %vm2283, 65537, 0
        %v2300 = vsel %vm2284, 65537, 0
        %v2301 = vsel %vm2285, 65537, 0
        %v2302 = vsel %vm2286, 65537, 0
        %v2303 = vsel %vm2287, 65537, 0
        %v2304 = vsel %vm2288, 65537, 0
        %v2305 = vsel %vm2289, 65537, 0
        %v2306 = vsel %vm2290, 65537, 0
        %v2307 = vsel %vm2291, 65537, 0
        %v2308 = vsel %vm2292, 65537, 0
        %v2309 = vsel %vm2293, 65537, 0
        %v2310 = vunpack.c.l.b16 %v2294
        %v2311 = vunpack.c.l.b16 %v2295
        %v2312 = vunpack.c.l.b16 %v2296
        %v2313 = vunpack.c.l.b16 %v2297
        %v2314 = vunpack.c.l.b16 %v2298
        %v2315 = vunpack.c.l.b16 %v2299
        %v2316 = vunpack.c.l.b16 %v2300
        %v2317 = vunpack.c.l.b16 %v2301
        %v2318 = vunpack.c.l.b16 %v2302
        %v2319 = vunpack.c.l.b16 %v2303
        %v2320 = vunpack.c.l.b16 %v2304
        %v2321 = vunpack.c.l.b16 %v2305
        %v2322 = vunpack.c.l.b16 %v2306
        %v2323 = vunpack.c.l.b16 %v2307
        %v2324 = vunpack.c.l.b16 %v2308
        %v2325 = vunpack.c.l.b16 %v2309
        %v2326 = vpack.c.b16 %v2311, %v2310
        %v2327 = vpack.c.b16 %v2313, %v2312
        %v2328 = vpack.c.b16 %v2315, %v2314
        %v2329 = vpack.c.b16 %v2317, %v2316
        %v2330 = vpack.c.b16 %v2319, %v2318
        %v2331 = vpack.c.b16 %v2321, %v2320
        %v2332 = vpack.c.b16 %v2323, %v2322
        %v2333 = vpack.c.b16 %v2325, %v2324
        %vm2334 = vcmp.ne.s16.totalorder %v2326, 0
        %vm2335 = vcmp.ne.s16.totalorder %v2327, 0
        %vm2336 = vcmp.ne.s16.totalorder %v2328, 0
        %vm2337 = vcmp.ne.s16.totalorder %v2329, 0
        %vm2338 = vcmp.ne.s16.totalorder %v2330, 0
        %vm2339 = vcmp.ne.s16.totalorder %v2331, 0
        %vm2340 = vcmp.ne.s16.totalorder %v2332, 0
        %vm2341 = vcmp.ne.s16.totalorder %v2333, 0
        %v2342 = vsel %vm2334, %v1318, 0
        %v2343 = vsel %vm2335, %v1319, 0
        %v2344 = vsel %vm2336, %v1320, 0
        %v2345 = vsel %vm2337, %v1321, 0
        %v2346 = vsel %vm2338, %v1322, 0
        %v2347 = vsel %vm2339, %v1323, 0
        %v2348 = vsel %vm2340, %v1324, 0
        %v2349 = vsel %vm2341, %v1317, 0
        %v2350 = vadd.s32 %v724, 9
        %v2351 = vadd.s32 %v725, 9
        %v2352 = vadd.s32 %v726, 9
        %v2353 = vadd.s32 %v727, 9
        %v2354 = vadd.s32 %v728, 9
        %v2355 = vadd.s32 %v729, 9
        %v2356 = vadd.s32 %v730, 9
        %v2357 = vadd.s32 %v731, 9
        %v2358 = vadd.s32 %v732, 9
        %v2359 = vadd.s32 %v733, 9
        %v2360 = vadd.s32 %v734, 9
        %v2361 = vadd.s32 %v735, 9
        %v2362 = vadd.s32 %v736, 9
        %v2363 = vadd.s32 %v737, 9
        %v2364 = vadd.s32 %v738, 9
        %v2365 = vadd.s32 %v739, 9
        %vm2366 = vcmp.ge.s32.totalorder %v2350, 0
        %vm2367 = vcmp.ge.s32.totalorder %v2351, 0
        %vm2368 = vcmp.ge.s32.totalorder %v2352, 0
        %vm2369 = vcmp.ge.s32.totalorder %v2353, 0
        %vm2370 = vcmp.ge.s32.totalorder %v2354, 0
        %vm2371 = vcmp.ge.s32.totalorder %v2355, 0
        %vm2372 = vcmp.ge.s32.totalorder %v2356, 0
        %vm2373 = vcmp.ge.s32.totalorder %v2357, 0
        %vm2374 = vcmp.ge.s32.totalorder %v2358, 0
        %vm2375 = vcmp.ge.s32.totalorder %v2359, 0
        %vm2376 = vcmp.ge.s32.totalorder %v2360, 0
        %vm2377 = vcmp.ge.s32.totalorder %v2361, 0
        %vm2378 = vcmp.ge.s32.totalorder %v2362, 0
        %vm2379 = vcmp.ge.s32.totalorder %v2363, 0
        %vm2380 = vcmp.ge.s32.totalorder %v2364, 0
        %vm2381 = vcmp.ge.s32.totalorder %v2365, 0
        %vm2382 = vcmp.lt.s32.totalorder %v2350, 64
        %vm2383 = vcmp.lt.s32.totalorder %v2351, 64
        %vm2384 = vcmp.lt.s32.totalorder %v2352, 64
        %vm2385 = vcmp.lt.s32.totalorder %v2353, 64
        %vm2386 = vcmp.lt.s32.totalorder %v2354, 64
        %vm2387 = vcmp.lt.s32.totalorder %v2355, 64
        %vm2388 = vcmp.lt.s32.totalorder %v2356, 64
        %vm2389 = vcmp.lt.s32.totalorder %v2357, 64
        %vm2390 = vcmp.lt.s32.totalorder %v2358, 64
        %vm2391 = vcmp.lt.s32.totalorder %v2359, 64
        %vm2392 = vcmp.lt.s32.totalorder %v2360, 64
        %vm2393 = vcmp.lt.s32.totalorder %v2361, 64
        %vm2394 = vcmp.lt.s32.totalorder %v2362, 64
        %vm2395 = vcmp.lt.s32.totalorder %v2363, 64
        %vm2396 = vcmp.lt.s32.totalorder %v2364, 64
        %vm2397 = vcmp.lt.s32.totalorder %v2365, 64
        %vm2398 = vmand %vm2366, %vm2382
        %vm2399 = vmand %vm2367, %vm2383
        %vm2400 = vmand %vm2368, %vm2384
        %vm2401 = vmand %vm2369, %vm2385
        %vm2402 = vmand %vm2370, %vm2386
        %vm2403 = vmand %vm2371, %vm2387
        %vm2404 = vmand %vm2372, %vm2388
        %vm2405 = vmand %vm2373, %vm2389
        %vm2406 = vmand %vm2374, %vm2390
        %vm2407 = vmand %vm2375, %vm2391
        %vm2408 = vmand %vm2376, %vm2392
        %vm2409 = vmand %vm2377, %vm2393
        %vm2410 = vmand %vm2378, %vm2394
        %vm2411 = vmand %vm2379, %vm2395
        %vm2412 = vmand %vm2380, %vm2396
        %vm2413 = vmand %vm2381, %vm2397
        %vm2414 = vmand %vm2398, %vm1510
        %vm2415 = vmand %vm2399, %vm1511
        %vm2416 = vmand %vm2400, %vm1512
        %vm2417 = vmand %vm2401, %vm1513
        %vm2418 = vmand %vm2402, %vm1514
        %vm2419 = vmand %vm2403, %vm1515
        %vm2420 = vmand %vm2404, %vm1516
        %vm2421 = vmand %vm2405, %vm1517
        %vm2422 = vmand %vm2406, %vm1518
        %vm2423 = vmand %vm2407, %vm1519
        %vm2424 = vmand %vm2408, %vm1520
        %vm2425 = vmand %vm2409, %vm1521
        %vm2426 = vmand %vm2410, %vm1522
        %vm2427 = vmand %vm2411, %vm1523
        %vm2428 = vmand %vm2412, %vm1524
        %vm2429 = vmand %vm2413, %vm1525
        %vm2430 = vmand %vm2414, %vm1542
        %vm2431 = vmand %vm2415, %vm1543
        %vm2432 = vmand %vm2416, %vm1544
        %vm2433 = vmand %vm2417, %vm1545
        %vm2434 = vmand %vm2418, %vm1546
        %vm2435 = vmand %vm2419, %vm1547
        %vm2436 = vmand %vm2420, %vm1548
        %vm2437 = vmand %vm2421, %vm1549
        %vm2438 = vmand %vm2422, %vm1550
        %vm2439 = vmand %vm2423, %vm1551
        %vm2440 = vmand %vm2424, %vm1552
        %vm2441 = vmand %vm2425, %vm1553
        %vm2442 = vmand %vm2426, %vm1554
        %vm2443 = vmand %vm2427, %vm1555
        %vm2444 = vmand %vm2428, %vm1556
        %vm2445 = vmand %vm2429, %vm1557
        %vm2446 = vmpackc.low %vm2430, %vm2430
        %vm2447 = vmpackc.low %vm2431, %vm2431
        %vm2448 = vmpackc.low %vm2432, %vm2432
        %vm2449 = vmpackc.low %vm2433, %vm2433
        %vm2450 = vmpackc.low %vm2434, %vm2434
        %vm2451 = vmpackc.low %vm2435, %vm2435
        %vm2452 = vmpackc.low %vm2436, %vm2436
        %vm2453 = vmpackc.low %vm2437, %vm2437
        %vm2454 = vmpackc.low %vm2438, %vm2438
        %vm2455 = vmpackc.low %vm2439, %vm2439
        %vm2456 = vmpackc.low %vm2440, %vm2440
        %vm2457 = vmpackc.low %vm2441, %vm2441
        %vm2458 = vmpackc.low %vm2442, %vm2442
        %vm2459 = vmpackc.low %vm2443, %vm2443
        %vm2460 = vmpackc.low %vm2444, %vm2444
        %vm2461 = vmpackc.low %vm2445, %vm2445
        %v2462 = vsel %vm2446, 65537, 0
        %v2463 = vsel %vm2447, 65537, 0
        %v2464 = vsel %vm2448, 65537, 0
        %v2465 = vsel %vm2449, 65537, 0
        %v2466 = vsel %vm2450, 65537, 0
        %v2467 = vsel %vm2451, 65537, 0
        %v2468 = vsel %vm2452, 65537, 0
        %v2469 = vsel %vm2453, 65537, 0
        %v2470 = vsel %vm2454, 65537, 0
        %v2471 = vsel %vm2455, 65537, 0
        %v2472 = vsel %vm2456, 65537, 0
        %v2473 = vsel %vm2457, 65537, 0
        %v2474 = vsel %vm2458, 65537, 0
        %v2475 = vsel %vm2459, 65537, 0
        %v2476 = vsel %vm2460, 65537, 0
        %v2477 = vsel %vm2461, 65537, 0
        %v2478 = vunpack.c.l.b16 %v2462
        %v2479 = vunpack.c.l.b16 %v2463
        %v2480 = vunpack.c.l.b16 %v2464
        %v2481 = vunpack.c.l.b16 %v2465
        %v2482 = vunpack.c.l.b16 %v2466
        %v2483 = vunpack.c.l.b16 %v2467
        %v2484 = vunpack.c.l.b16 %v2468
        %v2485 = vunpack.c.l.b16 %v2469
        %v2486 = vunpack.c.l.b16 %v2470
        %v2487 = vunpack.c.l.b16 %v2471
        %v2488 = vunpack.c.l.b16 %v2472
        %v2489 = vunpack.c.l.b16 %v2473
        %v2490 = vunpack.c.l.b16 %v2474
        %v2491 = vunpack.c.l.b16 %v2475
        %v2492 = vunpack.c.l.b16 %v2476
        %v2493 = vunpack.c.l.b16 %v2477
        %v2494 = vpack.c.b16 %v2479, %v2478
        %v2495 = vpack.c.b16 %v2481, %v2480
        %v2496 = vpack.c.b16 %v2483, %v2482
        %v2497 = vpack.c.b16 %v2485, %v2484
        %v2498 = vpack.c.b16 %v2487, %v2486
        %v2499 = vpack.c.b16 %v2489, %v2488
        %v2500 = vpack.c.b16 %v2491, %v2490
        %v2501 = vpack.c.b16 %v2493, %v2492
        %vm2502 = vcmp.ne.s16.totalorder %v2494, 0
        %vm2503 = vcmp.ne.s16.totalorder %v2495, 0
        %vm2504 = vcmp.ne.s16.totalorder %v2496, 0
        %vm2505 = vcmp.ne.s16.totalorder %v2497, 0
        %vm2506 = vcmp.ne.s16.totalorder %v2498, 0
        %vm2507 = vcmp.ne.s16.totalorder %v2499, 0
        %vm2508 = vcmp.ne.s16.totalorder %v2500, 0
        %vm2509 = vcmp.ne.s16.totalorder %v2501, 0
        %v2510 = vsel %vm2502, %v1575, 0
        %v2511 = vsel %vm2503, %v1576, 0
        %v2512 = vsel %vm2504, %v1577, 0
        %v2513 = vsel %vm2505, %v1578, 0
        %v2514 = vsel %vm2506, %v1579, 0
        %v2515 = vsel %vm2507, %v1580, 0
        %v2516 = vsel %vm2508, %v1581, 0
        %v2517 = vsel %vm2509, %v1574, 0
        %2526 = vrot.lane.b32.xlu0 %v1389, 32
        %v2527 = vpop.permute.xlu0 %2526
        %2528 = vrot.lane.b32.xlu0 %v1390, 32
        %v2529 = vpop.permute.xlu0 %2528
        %2530 = vrot.lane.b32.xlu0 %v1391, 32
        %v2531 = vpop.permute.xlu0 %2530
        %2532 = vrot.lane.b32.xlu0 %v1392, 32
        %v2533 = vpop.permute.xlu0 %2532
        %2534 = vrot.lane.b32.xlu0 %v1393, 32
        %v2535 = vpop.permute.xlu0 %2534
        %2536 = vrot.lane.b32.xlu0 %v1394, 32
        %v2537 = vpop.permute.xlu0 %2536
        %2538 = vrot.lane.b32.xlu0 %v1395, 32
        %v2539 = vpop.permute.xlu0 %2538
        %2540 = vrot.lane.b32.xlu0 %v1396, 32
        %v2541 = vpop.permute.xlu0 %2540
        %2550 = vrot.lane.b32.xlu0 %v1646, 64
        %v2551 = vpop.permute.xlu0 %2550
        %2552 = vrot.lane.b32.xlu0 %v1647, 64
        %v2553 = vpop.permute.xlu0 %2552
        %2554 = vrot.lane.b32.xlu0 %v1648, 64
        %v2555 = vpop.permute.xlu0 %2554
        %2556 = vrot.lane.b32.xlu0 %v1649, 64
        %v2557 = vpop.permute.xlu0 %2556
        %2558 = vrot.lane.b32.xlu0 %v1650, 64
        %v2559 = vpop.permute.xlu0 %2558
        %2560 = vrot.lane.b32.xlu0 %v1651, 64
        %v2561 = vpop.permute.xlu0 %2560
        %2562 = vrot.lane.b32.xlu0 %v1652, 64
        %v2563 = vpop.permute.xlu0 %2562
        %2564 = vrot.lane.b32.xlu0 %v1653, 64
        %v2565 = vpop.permute.xlu0 %2564
        %2574 = vrot.lane.b32.xlu0 %v1822, 96
        %v2575 = vpop.permute.xlu0 %2574
        %2576 = vrot.lane.b32.xlu0 %v1823, 96
        %v2577 = vpop.permute.xlu0 %2576
        %2578 = vrot.lane.b32.xlu0 %v1824, 96
        %v2579 = vpop.permute.xlu0 %2578
        %2580 = vrot.lane.b32.xlu0 %v1825, 96
        %v2581 = vpop.permute.xlu0 %2580
        %2582 = vrot.lane.b32.xlu0 %v1826, 96
        %v2583 = vpop.permute.xlu0 %2582
        %2584 = vrot.lane.b32.xlu0 %v1827, 96
        %v2585 = vpop.permute.xlu0 %2584
        %2586 = vrot.lane.b32.xlu0 %v1828, 96
        %v2587 = vpop.permute.xlu0 %2586
        %2588 = vrot.lane.b32.xlu0 %v1829, 96
        %v2589 = vpop.permute.xlu0 %2588
        %2598 = vrot.lane.b32.xlu0 %v2006, 32
        %v2599 = vpop.permute.xlu0 %2598
        %2600 = vrot.lane.b32.xlu0 %v2007, 32
        %v2601 = vpop.permute.xlu0 %2600
        %2602 = vrot.lane.b32.xlu0 %v2008, 32
        %v2603 = vpop.permute.xlu0 %2602
        %2604 = vrot.lane.b32.xlu0 %v2009, 32
        %v2605 = vpop.permute.xlu0 %2604
        %2606 = vrot.lane.b32.xlu0 %v2010, 32
        %v2607 = vpop.permute.xlu0 %2606
        %2608 = vrot.lane.b32.xlu0 %v2011, 32
        %v2609 = vpop.permute.xlu0 %2608
        %2610 = vrot.lane.b32.xlu0 %v2012, 32
        %v2611 = vpop.permute.xlu0 %2610
        %2612 = vrot.lane.b32.xlu0 %v2013, 32
        %v2613 = vpop.permute.xlu0 %2612
        %2622 = vrot.lane.b32.xlu0 %v2174, 64
        %v2623 = vpop.permute.xlu0 %2622
        %2624 = vrot.lane.b32.xlu0 %v2175, 64
        %v2625 = vpop.permute.xlu0 %2624
        %2626 = vrot.lane.b32.xlu0 %v2176, 64
        %v2627 = vpop.permute.xlu0 %2626
        %2628 = vrot.lane.b32.xlu0 %v2177, 64
        %v2629 = vpop.permute.xlu0 %2628
        %2630 = vrot.lane.b32.xlu0 %v2178, 64
        %v2631 = vpop.permute.xlu0 %2630
        %2632 = vrot.lane.b32.xlu0 %v2179, 64
        %v2633 = vpop.permute.xlu0 %2632
        %2634 = vrot.lane.b32.xlu0 %v2180, 64
        %v2635 = vpop.permute.xlu0 %2634
        %2636 = vrot.lane.b32.xlu0 %v2181, 64
        %v2637 = vpop.permute.xlu0 %2636
        %2646 = vrot.lane.b32.xlu0 %v2342, 96
        %v2647 = vpop.permute.xlu0 %2646
        %2648 = vrot.lane.b32.xlu0 %v2343, 96
        %v2649 = vpop.permute.xlu0 %2648
        %2650 = vrot.lane.b32.xlu0 %v2344, 96
        %v2651 = vpop.permute.xlu0 %2650
        %2652 = vrot.lane.b32.xlu0 %v2345, 96
        %v2653 = vpop.permute.xlu0 %2652
        %2654 = vrot.lane.b32.xlu0 %v2346, 96
        %v2655 = vpop.permute.xlu0 %2654
        %2656 = vrot.lane.b32.xlu0 %v2347, 96
        %v2657 = vpop.permute.xlu0 %2656
        %2658 = vrot.lane.b32.xlu0 %v2348, 96
        %v2659 = vpop.permute.xlu0 %2658
        %2660 = vrot.lane.b32.xlu0 %v2349, 96
        %v2661 = vpop.permute.xlu0 %2660
        %vm2662 = vcmask 261120
        %v2665 = vsel %vm2662, %v1181, %v2527
        %v2668 = vsel %vm2662, %v1182, %v2529
        %v2671 = vsel %vm2662, %v1183, %v2531
        %v2674 = vsel %vm2662, %v1184, %v2533
        %v2677 = vsel %vm2662, %v1185, %v2535
        %v2680 = vsel %vm2662, %v1186, %v2537
        %v2683 = vsel %vm2662, %v1187, %v2539
        %v2686 = vsel %vm2662, %v1188, %v2541
        %vm2687 = vcmask 523264
        %v2689 = vsel %vm2687, %v2665, %v2551
        %v2691 = vsel %vm2687, %v2668, %v2553
        %v2693 = vsel %vm2687, %v2671, %v2555
        %v2695 = vsel %vm2687, %v2674, %v2557
        %v2697 = vsel %vm2687, %v2677, %v2559
        %v2699 = vsel %vm2687, %v2680, %v2561
        %v2701 = vsel %vm2687, %v2683, %v2563
        %v2703 = vsel %vm2687, %v2686, %v2565
        %vm2704 = vcmask 785408
        %v2706 = vsel %vm2704, %v2689, %v2575
        %v2709 = vsel %vm2704, %v2691, %v2577
        %v2712 = vsel %vm2704, %v2693, %v2579
        %v2715 = vsel %vm2704, %v2695, %v2581
        %v2718 = vsel %vm2704, %v2697, %v2583
        %v2721 = vsel %vm2704, %v2699, %v2585
        %v2724 = vsel %vm2704, %v2701, %v2587
        %v2727 = vsel %vm2704, %v2703, %v2589
        %v2731 = vsel %vm2662, %v1830, %v2599
        %v2734 = vsel %vm2662, %v1831, %v2601
        %v2737 = vsel %vm2662, %v1832, %v2603
        %v2740 = vsel %vm2662, %v1833, %v2605
        %v2743 = vsel %vm2662, %v1834, %v2607
        %v2746 = vsel %vm2662, %v1835, %v2609
        %v2749 = vsel %vm2662, %v1836, %v2611
        %v2752 = vsel %vm2662, %v1837, %v2613
        %v2754 = vsel %vm2687, %v2731, %v2623
        %v2756 = vsel %vm2687, %v2734, %v2625
        %v2758 = vsel %vm2687, %v2737, %v2627
        %v2760 = vsel %vm2687, %v2740, %v2629
        %v2762 = vsel %vm2687, %v2743, %v2631
        %v2764 = vsel %vm2687, %v2746, %v2633
        %v2766 = vsel %vm2687, %v2749, %v2635
        %v2768 = vsel %vm2687, %v2752, %v2637
        %v2770 = vsel %vm2704, %v2754, %v2647
        %v2773 = vsel %vm2704, %v2756, %v2649
        %v2776 = vsel %vm2704, %v2758, %v2651
        %v2779 = vsel %vm2704, %v2760, %v2653
        %v2782 = vsel %vm2704, %v2762, %v2655
        %v2785 = vsel %vm2704, %v2764, %v2657
        %v2788 = vsel %vm2704, %v2766, %v2659
        %v2791 = vsel %vm2704, %v2768, %v2661
        %v2793 = vld [vmem:[%s3] sm:$0xf]
        %v2794 = vld [vmem:[%s3 + $0x4] sm:$0xf]
        %v2795 = vld [vmem:[%s3 + $0x8] sm:$0xf]
        %v2796 = vld [vmem:[%s3 + $0xc] sm:$0xf]
        %v2797 = vld [vmem:[%s3 + $0x10] sm:$0xf]
        %v2798 = vld [vmem:[%s3 + $0x14] sm:$0xf]
        %v2799 = vld [vmem:[%s3 + $0x18] sm:$0xf]
        %v2800 = vld [vmem:[%s3 + $0x1c] sm:$0xf]
        %v2801 = vld [vmem:[%s3 + $0x20] sm:$0xf]
        %v2802 = vld [vmem:[%s3 + $0x24] sm:$0xf]
        %v2803 = vld [vmem:[%s3 + $0x28] sm:$0xf]
        %v2804 = vld [vmem:[%s3 + $0x2c] sm:$0xf]
        %v2805 = vld [vmem:[%s3 + $0x30] sm:$0xf]
        %v2806 = vld [vmem:[%s3 + $0x34] sm:$0xf]
        %v2807 = vld [vmem:[%s3 + $0x38] sm:$0xf]
        %v2808 = vld [vmem:[%s3 + $0x3c] sm:$0xf]
        %v2809 = vld [vmem:[%s3 + $0x40] sm:$0xf]
        %v2810 = vld [vmem:[%s3 + $0x44] sm:$0xf]
        %v2811 = vld [vmem:[%s3 + $0x48] sm:$0xf]
        %v2812 = vld [vmem:[%s3 + $0x4c] sm:$0xf]
        %v2813 = vld [vmem:[%s3 + $0x50] sm:$0xf]
        %v2814 = vld [vmem:[%s3 + $0x54] sm:$0xf]
        %v2815 = vld [vmem:[%s3 + $0x58] sm:$0xf]
        %v2816 = vld [vmem:[%s3 + $0x5c] sm:$0xf]
        %v2817 = vld [vmem:[%s3 + $0x60] sm:$0xf]
        %v2818 = vld [vmem:[%s3 + $0x64] sm:$0xf]
        %v2819 = vld [vmem:[%s3 + $0x68] sm:$0xf]
        %v2820 = vld [vmem:[%s3 + $0x6c] sm:$0xf]
        %v2821 = vld [vmem:[%s3 + $0x70] sm:$0xf]
        %v2822 = vld [vmem:[%s3 + $0x74] sm:$0xf]
        %v2823 = vld [vmem:[%s3 + $0x78] sm:$0xf]
        %v2824 = vld [vmem:[%s3 + $0x7c] sm:$0xf]
        %v2825 = vld [vmem:[%s3 + $0x80] sm:$0xf]
        %v2826 = vld [vmem:[%s3 + $0x84] sm:$0xf]
        %v2827 = vld [vmem:[%s3 + $0x88] sm:$0xf]
        %v2828 = vld [vmem:[%s3 + $0x8c] sm:$0xf]
        %v2829 = vld [vmem:[%s4] sm:$0x1]
        %v2831 = vlaneseq
        %v2832 = vshrl.u32 %v2831, 7
        %v2833 = vsub.s32 0, %v2832
        %v2834 = vrot.slane %v2829, %v2833
        %v2872 = vunpack.c.l.b16 %v2793
        %v2873 = vunpack.c.l.b16 %v2794
        %v2874 = vunpack.c.l.b16 %v2795
        %v2875 = vunpack.c.l.b16 %v2796
        %v2876 = vunpack.c.l.b16 %v2797
        %v2877 = vunpack.c.l.b16 %v2798
        %v2878 = vunpack.c.l.b16 %v2799
        %v2879 = vunpack.c.l.b16 %v2800
        %v2880 = vunpack.c.l.b16 %v2801
        %v2881 = vunpack.c.l.b16 %v2802
        %v2882 = vunpack.c.l.b16 %v2803
        %v2883 = vunpack.c.l.b16 %v2804
        %v2884 = vunpack.c.l.b16 %v2805
        %v2885 = vunpack.c.l.b16 %v2806
        %v2886 = vunpack.c.l.b16 %v2807
        %v2887 = vunpack.c.l.b16 %v2808
        %v2888 = vunpack.c.l.b16 %v2809
        %v2889 = vunpack.c.l.b16 %v2810
        %v2890 = vunpack.c.l.b16 %v2811
        %v2891 = vunpack.c.l.b16 %v2812
        %v2892 = vunpack.c.l.b16 %v2813
        %v2893 = vunpack.c.l.b16 %v2814
        %v2894 = vunpack.c.l.b16 %v2815
        %v2895 = vunpack.c.l.b16 %v2816
        %v2896 = vunpack.c.l.b16 %v2817
        %v2897 = vunpack.c.l.b16 %v2818
        %v2898 = vunpack.c.l.b16 %v2819
        %v2899 = vunpack.c.l.b16 %v2820
        %v2900 = vunpack.c.l.b16 %v2821
        %v2901 = vunpack.c.l.b16 %v2822
        %v2902 = vunpack.c.l.b16 %v2823
        %v2903 = vunpack.c.l.b16 %v2824
        %v2904 = vunpack.c.l.b16 %v2825
        %v2905 = vunpack.c.l.b16 %v2826
        %v2906 = vunpack.c.l.b16 %v2827
        %v2907 = vunpack.c.l.b16 %v2828
        %v2908 = vpack.c.b16 %v2873, %v2872
        %v2909 = vpack.c.b16 %v2875, %v2874
        %v2910 = vpack.c.b16 %v2877, %v2876
        %v2911 = vpack.c.b16 %v2879, %v2878
        %v2912 = vpack.c.b16 %v2881, %v2880
        %v2913 = vpack.c.b16 %v2883, %v2882
        %v2914 = vpack.c.b16 %v2885, %v2884
        %v2915 = vpack.c.b16 %v2887, %v2886
        %v2916 = vpack.c.b16 %v2889, %v2888
        %v2917 = vpack.c.b16 %v2891, %v2890
        %v2918 = vpack.c.b16 %v2893, %v2892
        %v2919 = vpack.c.b16 %v2895, %v2894
        %v2920 = vpack.c.b16 %v2897, %v2896
        %v2921 = vpack.c.b16 %v2899, %v2898
        %v2922 = vpack.c.b16 %v2901, %v2900
        %v2923 = vpack.c.b16 %v2903, %v2902
        %v2924 = vpack.c.b16 %v2905, %v2904
        %v2925 = vpack.c.b16 %v2907, %v2906
        %v2945 = vsel %vm2662, %v2510, 0
        %v2948 = vsel %vm2662, %v2511, 0
        %v2951 = vsel %vm2662, %v2512, 0
        %v2954 = vsel %vm2662, %v2513, 0
        %v2957 = vsel %vm2662, %v2514, 0
        %v2960 = vsel %vm2662, %v2515, 0
        %v2963 = vsel %vm2662, %v2516, 0
        %v2966 = vsel %vm2662, %v2517, 0
        %2968 = vmatprep.subr.bf16.mxu0 0
        %2969 = vmatpush1.bf16.msra.mxu0 %v2908
        %2970 = vmatprep.subr.bf16.mxu0 0
        %2971 = vmatpush1.bf16.msra.mxu0 %v2909
        %2972 = vmatprep.subr.bf16.mxu0 0
        %2973 = vmatpush1.bf16.msra.mxu0 %v2910
        %2974 = vmatprep.subr.bf16.mxu0 0
        %2975 = vmatpush1.bf16.msra.mxu0 %v2911
        %2976 = vmatprep.subr.bf16.mxu0 0
        %2977 = vmatpush1.bf16.msra.mxu0 %v2912
        %2978 = vmatprep.subr.bf16.mxu0 0
        %2979 = vmatpush1.bf16.msra.mxu0 %v2913
        %2980 = vmatprep.subr.bf16.mxu0 0
        %2981 = vmatpush1.bf16.msra.mxu0 %v2914
        %2982 = vmatprep.subr.bf16.mxu0 0
        %2983 = vmatpush1.bf16.msra.mxu0 %v2915
        %2984 = vmatprep.subr.bf16.mxu0 0
        %2985 = vmatpush1.bf16.msra.mxu0 %v2916
        %2986 = vmatprep.subr.bf16.mxu0 0
        %2987 = vmatpush1.bf16.msra.mxu0 %v2917
        %2988 = vmatprep.subr.bf16.mxu0 0
        %2989 = vmatpush1.bf16.msra.mxu0 %v2918
        %2990 = vmatprep.subr.bf16.mxu0 0
        %2991 = vmatpush1.bf16.msra.mxu0 %v2919
        %2992 = vmatprep.subr.bf16.mxu0 0
        %2993 = vmatpush1.bf16.msra.mxu0 %v2920
        %2994 = vmatprep.subr.bf16.mxu0 0
        %2995 = vmatpush1.bf16.msra.mxu0 %v2921
        %2996 = vmatprep.subr.bf16.mxu0 0
        %2997 = vmatpush1.bf16.msra.mxu0 %v2922
        %2998 = vmatprep.subr.bf16.mxu0 0
        %2999 = vmatpush1.bf16.msra.mxu0 %v2923
        %3000 = vmatprep.mubr.bf16.mxu0 %v2770
        %3001 = vmatmul.mubr.bf16.gmra.mrb[0].mxu0 %v2706
        %v3002 = vpop.f32.mrb[0].mxu0
        %v3003 = vadd.f32 %v2834, %v3002
        %v3004 = vpop.f32.mrb[0].mxu0
        %v3005 = vpop.f32.mrb[0].mxu0
        %v3006 = vadd.f32 %v2834, %v3005
        %v3007 = vpop.f32.mrb[0].mxu0
        %3008 = vmatprep.mubr.bf16.mxu0 %v2773
        %3009 = vmatmul.mubr.bf16.gmra.mrb[0].mxu0 %v2709
        %v3010 = vpop.f32.mrb[0].mxu0
        %v3011 = vadd.f32 %v2834, %v3010
        %v3012 = vpop.f32.mrb[0].mxu0
        %v3013 = vpop.f32.mrb[0].mxu0
        %v3014 = vadd.f32 %v2834, %v3013
        %v3015 = vpop.f32.mrb[0].mxu0
        %3016 = vmatprep.mubr.bf16.mxu0 %v2776
        %3017 = vmatmul.mubr.bf16.gmra.mrb[0].mxu0 %v2712
        %v3018 = vpop.f32.mrb[0].mxu0
        %v3019 = vadd.f32 %v2834, %v3018
        %v3020 = vpop.f32.mrb[0].mxu0
        %v3021 = vpop.f32.mrb[0].mxu0
        %v3022 = vadd.f32 %v2834, %v3021
        %v3023 = vpop.f32.mrb[0].mxu0
        %3024 = vmatprep.mubr.bf16.mxu0 %v2779
        %3025 = vmatmul.mubr.bf16.gmra.mrb[0].mxu0 %v2715
        %v3026 = vpop.f32.mrb[0].mxu0
        %v3027 = vadd.f32 %v2834, %v3026
        %v3028 = vpop.f32.mrb[0].mxu0
        %v3029 = vpop.f32.mrb[0].mxu0
        %v3030 = vadd.f32 %v2834, %v3029
        %v3031 = vpop.f32.mrb[0].mxu0
        %3032 = vmatprep.mubr.bf16.mxu0 %v2782
        %3033 = vmatmul.mubr.bf16.gmra.mrb[0].mxu0 %v2718
        %v3034 = vpop.f32.mrb[0].mxu0
        %v3035 = vadd.f32 %v2834, %v3034
        %v3036 = vpop.f32.mrb[0].mxu0
        %v3037 = vpop.f32.mrb[0].mxu0
        %v3038 = vadd.f32 %v2834, %v3037
        %v3039 = vpop.f32.mrb[0].mxu0
        %3040 = vmatprep.mubr.bf16.mxu0 %v2785
        %3041 = vmatmul.mubr.bf16.gmra.mrb[0].mxu0 %v2721
        %v3042 = vpop.f32.mrb[0].mxu0
        %v3043 = vadd.f32 %v2834, %v3042
        %v3044 = vpop.f32.mrb[0].mxu0
        %v3045 = vpop.f32.mrb[0].mxu0
        %v3046 = vadd.f32 %v2834, %v3045
        %v3047 = vpop.f32.mrb[0].mxu0
        %3048 = vmatprep.mubr.bf16.mxu0 %v2788
        %3049 = vmatmul.mubr.bf16.gmra.mrb[0].mxu0 %v2724
        %v3050 = vpop.f32.mrb[0].mxu0
        %v3051 = vadd.f32 %v2834, %v3050
        %v3052 = vpop.f32.mrb[0].mxu0
        %v3053 = vpop.f32.mrb[0].mxu0
        %v3054 = vadd.f32 %v2834, %v3053
        %v3055 = vpop.f32.mrb[0].mxu0
        %3056 = vmatprep.mubr.bf16.mxu0 %v2791
        %3057 = vmatmul.mubr.bf16.gmra.mrb[0].mxu0 %v2727
        %v3058 = vpop.f32.mrb[0].mxu0
        %v3059 = vadd.f32 %v2834, %v3058
        %v3060 = vpop.f32.mrb[0].mxu0
        %v3061 = vpop.f32.mrb[0].mxu0
        %v3062 = vadd.f32 %v2834, %v3061
        %v3063 = vpop.f32.mrb[0].mxu0
        %3064 = vdwg.mxu0
        %3065 = vmatprep.subr.bf16.mxu0 0
        %3066 = vmatpush1.bf16.msra.mxu0 %v2924
        %3067 = vmatprep.subr.bf16.mxu0 0
        %3068 = vmatpush1.bf16.msra.mxu0 %v2925
        %3069 = vmatprep.subr.bf16.mxu0 0
        %3070 = vmatpush1.bf16.msra.mxu0 0
        %3071 = vmatprep.subr.bf16.mxu0 0
        %3072 = vmatpush1.bf16.msra.mxu0 0
        %3073 = vmatprep.subr.bf16.mxu0 0
        %3074 = vmatpush1.bf16.msra.mxu0 0
        %3075 = vmatprep.subr.bf16.mxu0 0
        %3076 = vmatpush1.bf16.msra.mxu0 0
        %3077 = vmatprep.subr.bf16.mxu0 0
        %3078 = vmatpush1.bf16.msra.mxu0 0
        %3079 = vmatprep.subr.bf16.mxu0 0
        %3080 = vmatpush1.bf16.msra.mxu0 0
        %3081 = vmatprep.subr.bf16.mxu0 0
        %3082 = vmatpush1.bf16.msra.mxu0 0
        %3083 = vmatprep.subr.bf16.mxu0 0
        %3084 = vmatpush1.bf16.msra.mxu0 0
        %3085 = vmatprep.subr.bf16.mxu0 0
        %3086 = vmatpush1.bf16.msra.mxu0 0
        %3087 = vmatprep.subr.bf16.mxu0 0
        %3088 = vmatpush1.bf16.msra.mxu0 0
        %3089 = vmatprep.subr.bf16.mxu0 0
        %3090 = vmatpush1.bf16.msra.mxu0 0
        %3091 = vmatprep.subr.bf16.mxu0 0
        %3092 = vmatpush1.bf16.msra.mxu0 0
        %3093 = vmatprep.subr.bf16.mxu0 0
        %3094 = vmatpush1.bf16.msra.mxu0 0
        %3095 = vmatprep.subr.bf16.mxu0 0
        %3096 = vmatpush1.bf16.msra.mxu0 0
        %3097 = vmatprep.mubr.bf16.mxu0 0
        %3098 = vmatmul.mubr.bf16.gmra.mrb[0].mxu0 %v2945
        %v3099 = vpop.f32.mrb[0].mxu0
        %v3100 = vadd.f32 %v3003, %v3099
        %v3101 = vpop.f32.mrb[0].mxu0
        %v3102 = vpop.f32.mrb[0].mxu0
        %v3103 = vadd.f32 %v3006, %v3102
        %v3104 = vpop.f32.mrb[0].mxu0
        %3105 = vmatprep.mubr.bf16.mxu0 0
        %3106 = vmatmul.mubr.bf16.gmra.mrb[0].mxu0 %v2948
        %v3107 = vpop.f32.mrb[0].mxu0
        %v3108 = vadd.f32 %v3011, %v3107
        %v3109 = vpop.f32.mrb[0].mxu0
        %v3110 = vpop.f32.mrb[0].mxu0
        %v3111 = vadd.f32 %v3014, %v3110
        %v3112 = vpop.f32.mrb[0].mxu0
        %3113 = vmatprep.mubr.bf16.mxu0 0
        %3114 = vmatmul.mubr.bf16.gmra.mrb[0].mxu0 %v2951
        %v3115 = vpop.f32.mrb[0].mxu0
        %v3116 = vadd.f32 %v3019, %v3115
        %v3117 = vpop.f32.mrb[0].mxu0
        %v3118 = vpop.f32.mrb[0].mxu0
        %v3119 = vadd.f32 %v3022, %v3118
        %v3120 = vpop.f32.mrb[0].mxu0
        %3121 = vmatprep.mubr.bf16.mxu0 0
        %3122 = vmatmul.mubr.bf16.gmra.mrb[0].mxu0 %v2954
        %v3123 = vpop.f32.mrb[0].mxu0
        %v3124 = vadd.f32 %v3027, %v3123
        %v3125 = vpop.f32.mrb[0].mxu0
        %v3126 = vpop.f32.mrb[0].mxu0
        %v3127 = vadd.f32 %v3030, %v3126
        %v3128 = vpop.f32.mrb[0].mxu0
        %3129 = vmatprep.mubr.bf16.mxu0 0
        %3130 = vmatmul.mubr.bf16.gmra.mrb[0].mxu0 %v2957
        %v3131 = vpop.f32.mrb[0].mxu0
        %v3132 = vadd.f32 %v3035, %v3131
        %v3133 = vpop.f32.mrb[0].mxu0
        %v3134 = vpop.f32.mrb[0].mxu0
        %v3135 = vadd.f32 %v3038, %v3134
        %v3136 = vpop.f32.mrb[0].mxu0
        %3137 = vmatprep.mubr.bf16.mxu0 0
        %3138 = vmatmul.mubr.bf16.gmra.mrb[0].mxu0 %v2960
        %v3139 = vpop.f32.mrb[0].mxu0
        %v3140 = vadd.f32 %v3043, %v3139
        %v3141 = vpop.f32.mrb[0].mxu0
        %v3142 = vpop.f32.mrb[0].mxu0
        %v3143 = vadd.f32 %v3046, %v3142
        %v3144 = vpop.f32.mrb[0].mxu0
        %3145 = vmatprep.mubr.bf16.mxu0 0
        %3146 = vmatmul.mubr.bf16.gmra.mrb[0].mxu0 %v2963
        %v3147 = vpop.f32.mrb[0].mxu0
        %v3148 = vadd.f32 %v3051, %v3147
        %v3149 = vpop.f32.mrb[0].mxu0
        %v3150 = vpop.f32.mrb[0].mxu0
        %v3151 = vadd.f32 %v3054, %v3150
        %v3152 = vpop.f32.mrb[0].mxu0
        %3153 = vmatprep.mubr.bf16.mxu0 0
        %3154 = vmatmul.mubr.bf16.gmra.mrb[0].mxu0 %v2966
        %v3155 = vpop.f32.mrb[0].mxu0
        %v3156 = vadd.f32 %v3059, %v3155
        %v3157 = vpop.f32.mrb[0].mxu0
        %v3158 = vpop.f32.mrb[0].mxu0
        %v3159 = vadd.f32 %v3062, %v3158
        %v3160 = vpop.f32.mrb[0].mxu0
        %3161 = vdwg.mxu0
        %v3162 = vmax.f32 %v3100, 0.0
        %v3163 = vmax.f32 %v3103, 0.0
        %v3164 = vmax.f32 %v3108, 0.0
        %v3165 = vmax.f32 %v3111, 0.0
        %v3166 = vmax.f32 %v3116, 0.0
        %v3167 = vmax.f32 %v3119, 0.0
        %v3168 = vmax.f32 %v3124, 0.0
        %v3169 = vmax.f32 %v3127, 0.0
        %v3170 = vmax.f32 %v3132, 0.0
        %v3171 = vmax.f32 %v3135, 0.0
        %v3172 = vmax.f32 %v3140, 0.0
        %v3173 = vmax.f32 %v3143, 0.0
        %v3174 = vmax.f32 %v3148, 0.0
        %v3175 = vmax.f32 %v3151, 0.0
        %v3176 = vmax.f32 %v3156, 0.0
        %v3177 = vmax.f32 %v3159, 0.0
        %v3178 = vpack.c.bf16 %v3163, %v3162
        %v3179 = vpack.c.bf16 %v3165, %v3164
        %v3180 = vpack.c.bf16 %v3167, %v3166
        %v3181 = vpack.c.bf16 %v3169, %v3168
        %v3182 = vpack.c.bf16 %v3171, %v3170
        %v3183 = vpack.c.bf16 %v3173, %v3172
        %v3184 = vpack.c.bf16 %v3175, %v3174
        %v3185 = vpack.c.bf16 %v3177, %v3176
        %v3186 = vld [vmem:[%s5] sm:$0xf]
        %v3187 = vld [vmem:[%s5 + $0x4] sm:$0xf]
        %v3188 = vld [vmem:[%s5 + $0x8] sm:$0xf]
        %v3189 = vld [vmem:[%s5 + $0xc] sm:$0xf]
        %v3190 = vunpack.c.l.bf16 %v283
        %v3191 = vunpack.c.l.bf16 %v284
        %v3192 = vunpack.c.l.bf16 %v285
        %v3193 = vunpack.c.l.bf16 %v286
        %v3194 = vunpack.c.l.bf16 %v287
        %v3195 = vunpack.c.l.bf16 %v288
        %v3196 = vunpack.c.l.bf16 %v289
        %v3197 = vunpack.c.l.bf16 %v290
        %v3198 = vunpack.c.l.bf16 %v291
        %v3199 = vunpack.c.l.bf16 %v292
        %v3200 = vunpack.c.l.bf16 %v293
        %v3201 = vunpack.c.l.bf16 %v294
        %v3202 = vunpack.c.l.bf16 %v295
        %v3203 = vunpack.c.l.bf16 %v296
        %v3204 = vunpack.c.l.bf16 %v297
        %v3205 = vunpack.c.l.bf16 %v298
        %v3206 = vld [vmem:[%s6] sm:$0x1]
        %v3208 = vlaneseq
        %v3209 = vshrl.u32 %v3208, 7
        %v3210 = vsub.s32 0, %v3209
        %v3211 = vrot.slane %v3206, %v3210
        %v3217 = vunpack.c.l.b16 %v3186
        %v3218 = vunpack.c.l.b16 %v3187
        %v3219 = vunpack.c.l.b16 %v3188
        %v3220 = vunpack.c.l.b16 %v3189
        %v3221 = vpack.c.b16 %v3218, %v3217
        %v3222 = vpack.c.b16 %v3220, %v3219
        %v3226 = vsel %vm2662, %v3178, 0
        %v3229 = vsel %vm2662, %v3179, 0
        %v3232 = vsel %vm2662, %v3180, 0
        %v3235 = vsel %vm2662, %v3181, 0
        %v3238 = vsel %vm2662, %v3182, 0
        %v3241 = vsel %vm2662, %v3183, 0
        %v3244 = vsel %vm2662, %v3184, 0
        %v3247 = vsel %vm2662, %v3185, 0
        %3249 = vmatprep.subr.bf16.mxu0 0
        %3250 = vmatpush1.bf16.msra.mxu0 %v3221
        %3251 = vmatprep.subr.bf16.mxu0 0
        %3252 = vmatpush1.bf16.msra.mxu0 %v3222
        %3253 = vmatprep.subr.bf16.mxu0 0
        %3254 = vmatpush1.bf16.msra.mxu0 0
        %3255 = vmatprep.subr.bf16.mxu0 0
        %3256 = vmatpush1.bf16.msra.mxu0 0
        %3257 = vmatprep.subr.bf16.mxu0 0
        %3258 = vmatpush1.bf16.msra.mxu0 0
        %3259 = vmatprep.subr.bf16.mxu0 0
        %3260 = vmatpush1.bf16.msra.mxu0 0
        %3261 = vmatprep.subr.bf16.mxu0 0
        %3262 = vmatpush1.bf16.msra.mxu0 0
        %3263 = vmatprep.subr.bf16.mxu0 0
        %3264 = vmatpush1.bf16.msra.mxu0 0
        %3265 = vmatprep.subr.bf16.mxu0 0
        %3266 = vmatpush1.bf16.msra.mxu0 0
        %3267 = vmatprep.subr.bf16.mxu0 0
        %3268 = vmatpush1.bf16.msra.mxu0 0
        %3269 = vmatprep.subr.bf16.mxu0 0
        %3270 = vmatpush1.bf16.msra.mxu0 0
        %3271 = vmatprep.subr.bf16.mxu0 0
        %3272 = vmatpush1.bf16.msra.mxu0 0
        %3273 = vmatprep.subr.bf16.mxu0 0
        %3274 = vmatpush1.bf16.msra.mxu0 0
        %3275 = vmatprep.subr.bf16.mxu0 0
        %3276 = vmatpush1.bf16.msra.mxu0 0
        %3277 = vmatprep.subr.bf16.mxu0 0
        %3278 = vmatpush1.bf16.msra.mxu0 0
        %3279 = vmatprep.subr.bf16.mxu0 0
        %3280 = vmatpush1.bf16.msra.mxu0 0
        %3281 = vmatprep.mubr.bf16.mxu0 0
        %3282 = vmatmul.mubr.bf16.gmra.mrb[0].mxu0 %v3226
        %v3283 = vpop.f32.mrb[0].mxu0
        %v3284 = vadd.f32 %v3211, %v3283
        %v3285 = vpop.f32.mrb[0].mxu0
        %v3286 = vpop.f32.mrb[0].mxu0
        %v3287 = vadd.f32 %v3211, %v3286
        %v3288 = vpop.f32.mrb[0].mxu0
        %3289 = vmatprep.mubr.bf16.mxu0 0
        %3290 = vmatmul.mubr.bf16.gmra.mrb[0].mxu0 %v3229
        %v3291 = vpop.f32.mrb[0].mxu0
        %v3292 = vadd.f32 %v3211, %v3291
        %v3293 = vpop.f32.mrb[0].mxu0
        %v3294 = vpop.f32.mrb[0].mxu0
        %v3295 = vadd.f32 %v3211, %v3294
        %v3296 = vpop.f32.mrb[0].mxu0
        %3297 = vmatprep.mubr.bf16.mxu0 0
        %3298 = vmatmul.mubr.bf16.gmra.mrb[0].mxu0 %v3232
        %v3299 = vpop.f32.mrb[0].mxu0
        %v3300 = vadd.f32 %v3211, %v3299
        %v3301 = vpop.f32.mrb[0].mxu0
        %v3302 = vpop.f32.mrb[0].mxu0
        %v3303 = vadd.f32 %v3211, %v3302
        %v3304 = vpop.f32.mrb[0].mxu0
        %3305 = vmatprep.mubr.bf16.mxu0 0
        %3306 = vmatmul.mubr.bf16.gmra.mrb[0].mxu0 %v3235
        %v3307 = vpop.f32.mrb[0].mxu0
        %v3308 = vadd.f32 %v3211, %v3307
        %v3309 = vpop.f32.mrb[0].mxu0
        %v3310 = vpop.f32.mrb[0].mxu0
        %v3311 = vadd.f32 %v3211, %v3310
        %v3312 = vpop.f32.mrb[0].mxu0
        %3313 = vmatprep.mubr.bf16.mxu0 0
        %3314 = vmatmul.mubr.bf16.gmra.mrb[0].mxu0 %v3238
        %v3315 = vpop.f32.mrb[0].mxu0
        %v3316 = vadd.f32 %v3211, %v3315
        %v3317 = vpop.f32.mrb[0].mxu0
        %v3318 = vpop.f32.mrb[0].mxu0
        %v3319 = vadd.f32 %v3211, %v3318
        %v3320 = vpop.f32.mrb[0].mxu0
        %3321 = vmatprep.mubr.bf16.mxu0 0
        %3322 = vmatmul.mubr.bf16.gmra.mrb[0].mxu0 %v3241
        %v3323 = vpop.f32.mrb[0].mxu0
        %v3324 = vadd.f32 %v3211, %v3323
        %v3325 = vpop.f32.mrb[0].mxu0
        %v3326 = vpop.f32.mrb[0].mxu0
        %v3327 = vadd.f32 %v3211, %v3326
        %v3328 = vpop.f32.mrb[0].mxu0
        %3329 = vmatprep.mubr.bf16.mxu0 0
        %3330 = vmatmul.mubr.bf16.gmra.mrb[0].mxu0 %v3244
        %v3331 = vpop.f32.mrb[0].mxu0
        %v3332 = vadd.f32 %v3211, %v3331
        %v3333 = vpop.f32.mrb[0].mxu0
        %v3334 = vpop.f32.mrb[0].mxu0
        %v3335 = vadd.f32 %v3211, %v3334
        %v3336 = vpop.f32.mrb[0].mxu0
        %3337 = vmatprep.mubr.bf16.mxu0 0
        %3338 = vmatmul.mubr.bf16.gmra.mrb[0].mxu0 %v3247
        %v3339 = vpop.f32.mrb[0].mxu0
        %v3340 = vadd.f32 %v3211, %v3339
        %v3341 = vpop.f32.mrb[0].mxu0
        %v3342 = vpop.f32.mrb[0].mxu0
        %v3343 = vadd.f32 %v3211, %v3342
        %v3344 = vpop.f32.mrb[0].mxu0
        %3345 = vdwg.mxu0
        %v3346 = vadd.f32 %v3284, %v3190
        %v3347 = vadd.f32 %v3287, %v3191
        %v3348 = vadd.f32 %v3292, %v3192
        %v3349 = vadd.f32 %v3295, %v3193
        %v3350 = vadd.f32 %v3300, %v3194
        %v3351 = vadd.f32 %v3303, %v3195
        %v3352 = vadd.f32 %v3308, %v3196
        %v3353 = vadd.f32 %v3311, %v3197
        %v3354 = vadd.f32 %v3316, %v3198
        %v3355 = vadd.f32 %v3319, %v3199
        %v3356 = vadd.f32 %v3324, %v3200
        %v3357 = vadd.f32 %v3327, %v3201
        %v3358 = vadd.f32 %v3332, %v3202
        %v3359 = vadd.f32 %v3335, %v3203
        %v3360 = vadd.f32 %v3340, %v3204
        %v3361 = vadd.f32 %v3343, %v3205
        %v3362 = vmax.f32 %v3346, 0.0
        %v3363 = vmax.f32 %v3347, 0.0
        %v3364 = vmax.f32 %v3348, 0.0
        %v3365 = vmax.f32 %v3349, 0.0
        %v3366 = vmax.f32 %v3350, 0.0
        %v3367 = vmax.f32 %v3351, 0.0
        %v3368 = vmax.f32 %v3352, 0.0
        %v3369 = vmax.f32 %v3353, 0.0
        %v3370 = vmax.f32 %v3354, 0.0
        %v3371 = vmax.f32 %v3355, 0.0
        %v3372 = vmax.f32 %v3356, 0.0
        %v3373 = vmax.f32 %v3357, 0.0
        %v3374 = vmax.f32 %v3358, 0.0
        %v3375 = vmax.f32 %v3359, 0.0
        %v3376 = vmax.f32 %v3360, 0.0
        %v3377 = vmax.f32 %v3361, 0.0
        %3378 = vst [vmem:[%s272] sm:$0xff] %v3362
        %3379 = vst [vmem:[%s272 + $0x8] sm:$0xff] %v3363
        %3380 = vst [vmem:[%s272 + $0x10] sm:$0xff] %v3364
        %3381 = vst [vmem:[%s272 + $0x18] sm:$0xff] %v3365
        %3382 = vst [vmem:[%s272 + $0x20] sm:$0xff] %v3366
        %3383 = vst [vmem:[%s272 + $0x28] sm:$0xff] %v3367
        %3384 = vst [vmem:[%s272 + $0x30] sm:$0xff] %v3368
        %3385 = vst [vmem:[%s272 + $0x38] sm:$0xff] %v3369
        %3386 = vst [vmem:[%s272 + $0x40] sm:$0xff] %v3370
        %3387 = vst [vmem:[%s272 + $0x48] sm:$0xff] %v3371
        %3388 = vst [vmem:[%s272 + $0x50] sm:$0xff] %v3372
        %3389 = vst [vmem:[%s272 + $0x58] sm:$0xff] %v3373
        %3390 = vst [vmem:[%s272 + $0x60] sm:$0xff] %v3374
        %3391 = vst [vmem:[%s272 + $0x68] sm:$0xff] %v3375
        %3392 = vst [vmem:[%s272 + $0x70] sm:$0xff] %v3376
        %3393 = vst [vmem:[%s272 + $0x78] sm:$0xff] %v3377
        %s3394 = sand.u32 %s181, 1
        %s3395 = scalar_lea.sflag [#allocation3], %s3394
        %s3396 = sand.u32 %s181, 1
        %s3397 = smul.addr %s3396, 128
        %s3398 = scalar_lea.vmem [#allocation2], %s3397
        // Predicated region
        $region49: #{tpu_custom_call.1} parent=47 // pred_check
          %p3399 = pneg %p191
        $region50: #{tpu_custom_call.1} parent=47 // pred_check_branch
          %3401 = sbr.rel (%p3399) target = $region52
        $region51: #{tpu_custom_call.1} parent=47 // pred_region
          %s3402 = smul.u32 16, %s21
          %s3404 = ssub.s32 2048, 2048
          %3405 = vsyncadd %s3395, %s3404
          %s3406 = smul.addr %s3402, 128
          %s3407 = scalar_lea.hbm %s7, %s3406
          %s3408 = sshll.u32 %s3398, 4
          %s3409 = int_to_ptr.vmem [resolvable:$true] %s3408
          %3414 = dma.vmem_to_hbm [thread:$0]  %s3409, 2048, %s3407, %s3395, 128, 128, 8
        $region52: #{tpu_custom_call.1} parent=47 // pred_fallthru
          _
      $region48: #{tpu_custom_call.1} parent=5 // pred_fallthru
        _
      %p3415 = scmp.le.s32.totalorder 2, %s16
      // Predicated region
      $region53: #{tpu_custom_call.1} parent=5 // pred_check
        %p3416 = pneg %p3415
      $region54: #{tpu_custom_call.1} parent=5 // pred_check_branch
        %3418 = sbr.rel (%p3416) target = $region56
      $region55: #{tpu_custom_call.1} parent=5 // pred_region
        %s3419 = ssub.s32 %s16, 2
        // Predicated region
        $region57: #{tpu_custom_call.1} parent=55 // pred_check
          %p3420 = pneg %p197
        $region58: #{tpu_custom_call.1} parent=55 // pred_check_branch
          %3422 = sbr.rel (%p3420) target = $region60
        $region59: #{tpu_custom_call.1} parent=55 // pred_region
          %s3423 = sand.u32 %s182, 1
          %s3424 = scalar_lea.sflag [#allocation3], %s3423
          %s3425 = sand.u32 %s182, 1
          %s3426 = smul.addr %s3425, 128
          %s3427 = scalar_lea.vmem [#allocation2], %s3426
          %3428 = dma.done %s3424, 2048
        $region60: #{tpu_custom_call.1} parent=55 // pred_fallthru
          _
      $region56: #{tpu_custom_call.1} parent=5 // pred_fallthru
        _
    $region6: #{tpu_custom_call.1} parent=1 // loop_footer
      %s20 = sadd.s32 1, %s16
    $region7: #{tpu_custom_call.1} parent=1 // loop_footer_branch
      %15 = sbr.rel target = $region3
    $region8: #{tpu_custom_call.1} parent=1 // loop_exit
      _
    %3429 = vsyncpa [#allocation3], 1
    %s3430 = scalar_lea.sflag [#allocation3], 1
    %3431 = vsyncpa %s3430, 1

</llo_original>
